<compile_context>
chip_gen: v7x
topology: tpu7x:2x2x1
jax: 0.10.0
libtpu: 0.0.40
codegen_flags: <defaults>
</compile_context>

<pallas_src>
import math
import functools

import jax
import jax.numpy as jnp
from jax.experimental import pallas as pl

LN_EPS = 1e-12

# Per-layer parameter ordering used to flatten params into pallas_call args.
LAYER_KEYS = ("wq", "wk", "wv", "bq", "bk", "bv", "wo", "bo",
              "ln1_g", "ln1_b", "w1", "b1", "w2", "b2", "ln2_g", "ln2_b")
PER_LAYER = len(LAYER_KEYS)


# ----------------------------------------------------------------------------
# In-kernel helpers (traced inside the Pallas kernel body)
# ----------------------------------------------------------------------------

def _layer_norm(x, gamma, beta, eps=LN_EPS):
    mu = jnp.mean(x, axis=-1, keepdims=True)
    d = x - mu
    var = jnp.mean(d * d, axis=-1, keepdims=True)
    return d * jax.lax.rsqrt(var + eps) * gamma + beta


def _gelu(x):
    # tanh-approximation GELU (EUP tanh). HF BERT default is exact erf-GELU;
    # difference is tiny and irrelevant for this synthetic config.
    c = math.sqrt(2.0 / math.pi)
    return 0.5 * x * (1.0 + jnp.tanh(c * (x + 0.044715 * x * x * x)))


# ----------------------------------------------------------------------------
# Fused whole-forward kernel
# ----------------------------------------------------------------------------

def _bert_fused_kernel(B, S, nheads, dh, vocab, max_pos, type_vocab, n_layers,
                       *refs):
    o_ref = refs[-1]
    (wid_ref, pid_ref, tid_ref,
     wemb_ref, pemb_ref, temb_ref, eg_ref, eb_ref) = refs[:8]
    rest = refs[8:-1]

    h = nheads * dh
    rows = B * S
    G = B * nheads

    # ---- embeddings: one-hot-matmul gather (tables are VMEM resident) ------
    def onehot_embed(ids_ref, table_ref, n):
        iot = jax.lax.broadcasted_iota(jnp.int32, (rows, n), 1)
        oh = (iot == ids_ref[...]).astype(jnp.float32)
        return jnp.dot(oh, table_ref[...], preferred_element_type=jnp.float32)

    x = (onehot_embed(wid_ref, wemb_ref, vocab)
         + onehot_embed(pid_ref, pemb_ref, max_pos)
         + onehot_embed(tid_ref, temb_ref, type_vocab))
    x = _layer_norm(x, eg_ref[...], eb_ref[...])            # (B*S, H)

    # ---- encoder layers (static unroll; tiny static layer count) -----------
    for li in range(n_layers):
        (wq_ref, wk_ref, wv_ref, bq_ref, bk_ref, bv_ref, wo_ref, bo_ref,
         ln1g_ref, ln1b_ref, w1_ref, b1_ref, w2_ref, b2_ref,
         ln2g_ref, ln2b_ref) = rest[li * PER_LAYER:(li + 1) * PER_LAYER]

        # Flatten (batch, head) into one leading batch dim G for batched
        # einsums; only leading dims are split/merged (lane layout untouched).
        xg = jnp.broadcast_to(
            x.reshape(B, 1, S, h), (B, nheads, S, h)).reshape(G, S, h)

        def bh(w_ref):
            # (nheads, a, b) -> (G, a, b)  (replicate per batch element)
            w = w_ref[...]
            return jnp.broadcast_to(
                w[None], (B,) + w.shape).reshape((G,) + w.shape[1:])

        # NOTE: no attention padding mask — matches the reference call, which
        # passes no attention_mask (HF BERT then uses an all-ones mask).
        # Attention scale 1/sqrt(dh) is folded into wq/bq at init time.
        q = jnp.einsum('gsk,gkd->gsd', xg, bh(wq_ref),
                       preferred_element_type=jnp.float32) + bh(bq_ref)
        k = jnp.einsum('gsk,gkd->gsd', xg, bh(wk_ref),
                       preferred_element_type=jnp.float32) + bh(bk_ref)
        v = jnp.einsum('gsk,gkd->gsd', xg, bh(wv_ref),
                       preferred_element_type=jnp.float32) + bh(bv_ref)

        s = jnp.einsum('gqd,gkd->gqk', q, k,
                       preferred_element_type=jnp.float32)  # (G, S, S)
        m = jnp.max(s, axis=-1, keepdims=True)
        p = jnp.exp(s - m)
        p = p * pl.reciprocal(jnp.sum(p, axis=-1, keepdims=True), approx=True)
        ctx = jnp.einsum('gqk,gkd->gqd', p, v,
                         preferred_element_type=jnp.float32)  # (G, S, Dh)

        # Per-head output projection then sum over heads == ctx_concat @ Wo.
        ho = jnp.einsum('gsd,gdo->gso', ctx, bh(wo_ref),
                        preferred_element_type=jnp.float32)   # (G, S, H)
        attn = ho.reshape(B, nheads, S, h).sum(axis=1).reshape(rows, h)
        attn = attn + bo_ref[...]
        x1 = _layer_norm(x + attn, ln1g_ref[...], ln1b_ref[...])

        # Feed-forward: (B*S,H)@(H,I) GELU (B*S,I)@(I,H) + residual + LN.
        ff = jnp.dot(x1, w1_ref[...],
                     preferred_element_type=jnp.float32) + b1_ref[...]
        ff = _gelu(ff)
        ff = jnp.dot(ff, w2_ref[...],
                     preferred_element_type=jnp.float32) + b2_ref[...]
        x = _layer_norm(x1 + ff, ln2g_ref[...], ln2b_ref[...])

    # ---- CLS rows (row b*S per batch element) via one-hot selection matmul --
    sel = (jax.lax.broadcasted_iota(jnp.int32, (B, rows), 1)
           == S * jax.lax.broadcasted_iota(jnp.int32, (B, rows), 0)
           ).astype(jnp.float32)
    cls = jnp.dot(sel, x, preferred_element_type=jnp.float32)   # (B, H)

    # ---- pooler (tanh) + dropout(identity at inference) + classifier --------
    wp_ref, bp_ref, wd_ref, bd_ref = rest[n_layers * PER_LAYER:]
    pooled = jnp.tanh(jnp.dot(cls, wp_ref[...],
                              preferred_element_type=jnp.float32) + bp_ref[...])
    # TODO(synk): training-mode dropout (pltpu stateful PRNG mask) not applied.
    o_ref[...] = (jnp.dot(pooled, wd_ref[...],
                          preferred_element_type=jnp.float32) + bd_ref[...])


# ----------------------------------------------------------------------------
# Tiny BERT + NLI head (deterministic synthetic parameters)
# ----------------------------------------------------------------------------

class Config:
    vocab_size = 30
    type_vocab_size = 2
    max_position = 16
    hidden = 32            # opt.bert_dim
    heads = 2
    head_dim = 16
    intermediate = 64
    layers = 2
    polarities = 3         # opt.polarities_dim
    dropout = 0.1          # identity at inference


def init_params(cfg, key):
    ks = iter(jax.random.split(key, 256))
    norm = lambda shape: 0.02 * jax.random.normal(next(ks), shape, jnp.float32)
    zeros = lambda shape: jnp.zeros(shape, jnp.float32)
    ones = lambda shape: jnp.ones(shape, jnp.float32)
    h, inter, nh, dh = cfg.hidden, cfg.intermediate, cfg.heads, cfg.head_dim
    scale = 1.0 / math.sqrt(dh)

    def to_heads_in(w):      # (H, H) K-major -> (nheads, H, Dh) per-head
        return w.reshape(h, nh, dh).transpose(1, 0, 2)

    p = {
        "word_emb": norm((cfg.vocab_size, h)),
        "pos_emb": norm((cfg.max_position, h)),
        "type_emb": norm((cfg.type_vocab_size, h)),
        "emb_ln_g": ones((1, h)),
        "emb_ln_b": zeros((1, h)),
        "layers": [],
        "pooler_w": norm((h, h)),
        "pooler_b": zeros((1, h)),
        "dense_w": norm((h, cfg.polarities)),   # nn.Linear(bert_dim, polarities)
        "dense_b": zeros((1, cfg.polarities)),
    }
    for _ in range(cfg.layers):
        wq, wk, wv, wo = norm((h, h)), norm((h, h)), norm((h, h)), norm((h, h))
        p["layers"].append({
            # attention scale folded into Q weight AND Q bias (zero here).
            "wq": to_heads_in(wq) * scale,
            "wk": to_heads_in(wk),
            "wv": to_heads_in(wv),
            "bq": zeros((nh, 1, dh)) * scale,
            "bk": zeros((nh, 1, dh)),
            "bv": zeros((nh, 1, dh)),
            "wo": wo.reshape(nh, dh, h),        # (nheads, Dh, H) per-head rows
            "bo": zeros((1, h)),
            "ln1_g": ones((1, h)), "ln1_b": zeros((1, h)),
            "w1": norm((h, inter)), "b1": zeros((1, inter)),
            "w2": norm((inter, h)), "b2": zeros((1, h)),
            "ln2_g": ones((1, h)), "ln2_b": zeros((1, h)),
        })
    return p


def bert_nli_forward(params, cfg, text_bert_indices, bert_segments_ids):
    b, s = text_bert_indices.shape

    # Integer id inputs (tiny, int32). The actual gather happens in-kernel.
    word_ids = text_bert_indices.reshape(b * s, 1).astype(jnp.int32)
    pos_ids = jnp.tile(jnp.arange(s, dtype=jnp.int32), b).reshape(b * s, 1)
    type_ids = bert_segments_ids.reshape(b * s, 1).astype(jnp.int32)

    flat_args = [word_ids, pos_ids, type_ids,
                 params["word_emb"], params["pos_emb"], params["type_emb"],
                 params["emb_ln_g"], params["emb_ln_b"]]
    for lp in params["layers"]:
        flat_args += [lp[k] for k in LAYER_KEYS]
    flat_args += [params["pooler_w"], params["pooler_b"],
                  params["dense_w"], params["dense_b"]]

    kernel = functools.partial(
        _bert_fused_kernel, b, s, cfg.heads, cfg.head_dim,
        cfg.vocab_size, cfg.max_position, cfg.type_vocab_size, cfg.layers)

    return pl.pallas_call(
        kernel,
        out_shape=jax.ShapeDtypeStruct((b, cfg.polarities), jnp.float32),
    )(*flat_args)                                      # (B, polarities)


# ----------------------------------------------------------------------------
# Main
# ----------------------------------------------------------------------------

if __name__ == "__main__":
    cfg = Config()
    key = jax.random.PRNGKey(0)
    pkey, ikey, skey = jax.random.split(key, 3)

    params = init_params(cfg, pkey)

    batch, seq = 2, 8
    text_bert_indices = jax.random.randint(
        ikey, (batch, seq), 0, cfg.vocab_size, dtype=jnp.int32)
    bert_segments_ids = jax.random.randint(
        skey, (batch, seq), 0, cfg.type_vocab_size, dtype=jnp.int32)

    fwd = jax.jit(lambda p, ti, ts: bert_nli_forward(p, cfg, ti, ts))
    logits = jax.block_until_ready(
        fwd(params, text_bert_indices, bert_segments_ids))

    assert logits.shape == (batch, cfg.polarities)
    assert jnp.all(jnp.isfinite(logits))
    print("KERNEL_OK")
</pallas_src>

<mosaic_0001>
module attributes {stable_mosaic.version = 11 : i64} {
  func.func @_bert_fused_kernel(%arg0: memref<16x1xi32, #tpu.memory_space<vmem>>, %arg1: memref<16x1xi32, #tpu.memory_space<vmem>>, %arg2: memref<16x1xi32, #tpu.memory_space<vmem>>, %arg3: memref<30x32xf32, #tpu.memory_space<vmem>>, %arg4: memref<16x32xf32, #tpu.memory_space<vmem>>, %arg5: memref<2x32xf32, #tpu.memory_space<vmem>>, %arg6: memref<1x32xf32, #tpu.memory_space<vmem>>, %arg7: memref<1x32xf32, #tpu.memory_space<vmem>>, %arg8: memref<2x32x16xf32, #tpu.memory_space<vmem>>, %arg9: memref<2x32x16xf32, #tpu.memory_space<vmem>>, %arg10: memref<2x32x16xf32, #tpu.memory_space<vmem>>, %arg11: memref<2x1x16xf32, #tpu.memory_space<vmem>>, %arg12: memref<2x1x16xf32, #tpu.memory_space<vmem>>, %arg13: memref<2x1x16xf32, #tpu.memory_space<vmem>>, %arg14: memref<2x16x32xf32, #tpu.memory_space<vmem>>, %arg15: memref<1x32xf32, #tpu.memory_space<vmem>>, %arg16: memref<1x32xf32, #tpu.memory_space<vmem>>, %arg17: memref<1x32xf32, #tpu.memory_space<vmem>>, %arg18: memref<32x64xf32, #tpu.memory_space<vmem>>, %arg19: memref<1x64xf32, #tpu.memory_space<vmem>>, %arg20: memref<64x32xf32, #tpu.memory_space<vmem>>, %arg21: memref<1x32xf32, #tpu.memory_space<vmem>>, %arg22: memref<1x32xf32, #tpu.memory_space<vmem>>, %arg23: memref<1x32xf32, #tpu.memory_space<vmem>>, %arg24: memref<2x32x16xf32, #tpu.memory_space<vmem>>, %arg25: memref<2x32x16xf32, #tpu.memory_space<vmem>>, %arg26: memref<2x32x16xf32, #tpu.memory_space<vmem>>, %arg27: memref<2x1x16xf32, #tpu.memory_space<vmem>>, %arg28: memref<2x1x16xf32, #tpu.memory_space<vmem>>, %arg29: memref<2x1x16xf32, #tpu.memory_space<vmem>>, %arg30: memref<2x16x32xf32, #tpu.memory_space<vmem>>, %arg31: memref<1x32xf32, #tpu.memory_space<vmem>>, %arg32: memref<1x32xf32, #tpu.memory_space<vmem>>, %arg33: memref<1x32xf32, #tpu.memory_space<vmem>>, %arg34: memref<32x64xf32, #tpu.memory_space<vmem>>, %arg35: memref<1x64xf32, #tpu.memory_space<vmem>>, %arg36: memref<64x32xf32, #tpu.memory_space<vmem>>, %arg37: memref<1x32xf32, #tpu.memory_space<vmem>>, %arg38: memref<1x32xf32, #tpu.memory_space<vmem>>, %arg39: memref<1x32xf32, #tpu.memory_space<vmem>>, %arg40: memref<32x32xf32, #tpu.memory_space<vmem>>, %arg41: memref<1x32xf32, #tpu.memory_space<vmem>>, %arg42: memref<32x3xf32, #tpu.memory_space<vmem>>, %arg43: memref<1x3xf32, #tpu.memory_space<vmem>>, %arg44: memref<2x3xf32, #tpu.memory_space<vmem>>) attributes {dimension_semantics = [], scalar_prefetch = 0 : i64, scratch_operands = 0 : i64, tpu.core_type = #tpu.core_type<tc>} {
    %0 = tpu.iota {dimensions = array<i32: 1>} : vector<16x30xi32>
    %c0 = arith.constant 0 : index
    %c0_0 = arith.constant 0 : index
    %1 = vector.load %arg0[%c0, %c0_0] : memref<16x1xi32, #tpu.memory_space<vmem>>, vector<16x1xi32>
    %2 = vector.broadcast %1 : vector<16x1xi32> to vector<16x30xi32>
    %3 = arith.cmpi eq, %0, %2 : vector<16x30xi32>
    %4 = arith.extui %3 : vector<16x30xi1> to vector<16x30xi32>
    %5 = arith.sitofp %4 : vector<16x30xi32> to vector<16x30xf32>
    %c0_1 = arith.constant 0 : index
    %c0_2 = arith.constant 0 : index
    %6 = vector.load %arg3[%c0_1, %c0_2] : memref<30x32xf32, #tpu.memory_space<vmem>>, vector<30x32xf32>
    %cst = arith.constant dense<0.000000e+00> : vector<16x32xf32>
    %7 = tpu.matmul %5, %6, %cst {dimension_numbers = #tpu.dot_dimension_numbers<[1], [0], [0], [1], [0, 0, 1, 1], [], []>} : vector<16x30xf32>, vector<30x32xf32>, vector<16x32xf32> -> vector<16x32xf32>
    %8 = tpu.iota {dimensions = array<i32: 1>} : vector<16x16xi32>
    %c0_3 = arith.constant 0 : index
    %c0_4 = arith.constant 0 : index
    %9 = vector.load %arg1[%c0_3, %c0_4] : memref<16x1xi32, #tpu.memory_space<vmem>>, vector<16x1xi32>
    %10 = vector.broadcast %9 : vector<16x1xi32> to vector<16x16xi32>
    %11 = arith.cmpi eq, %8, %10 : vector<16x16xi32>
    %12 = arith.extui %11 : vector<16x16xi1> to vector<16x16xi32>
    %13 = arith.sitofp %12 : vector<16x16xi32> to vector<16x16xf32>
    %c0_5 = arith.constant 0 : index
    %c0_6 = arith.constant 0 : index
    %14 = vector.load %arg4[%c0_5, %c0_6] : memref<16x32xf32, #tpu.memory_space<vmem>>, vector<16x32xf32>
    %cst_7 = arith.constant dense<0.000000e+00> : vector<16x32xf32>
    %15 = tpu.matmul %13, %14, %cst_7 {dimension_numbers = #tpu.dot_dimension_numbers<[1], [0], [0], [1], [0, 0, 1, 1], [], []>} : vector<16x16xf32>, vector<16x32xf32>, vector<16x32xf32> -> vector<16x32xf32>
    %16 = arith.addf %7, %15 : vector<16x32xf32>
    %17 = tpu.iota {dimensions = array<i32: 1>} : vector<16x2xi32>
    %c0_8 = arith.constant 0 : index
    %c0_9 = arith.constant 0 : index
    %18 = vector.load %arg2[%c0_8, %c0_9] : memref<16x1xi32, #tpu.memory_space<vmem>>, vector<16x1xi32>
    %19 = vector.broadcast %18 : vector<16x1xi32> to vector<16x2xi32>
    %20 = arith.cmpi eq, %17, %19 : vector<16x2xi32>
    %21 = arith.extui %20 : vector<16x2xi1> to vector<16x2xi32>
    %22 = arith.sitofp %21 : vector<16x2xi32> to vector<16x2xf32>
    %c0_10 = arith.constant 0 : index
    %c0_11 = arith.constant 0 : index
    %23 = vector.load %arg5[%c0_10, %c0_11] : memref<2x32xf32, #tpu.memory_space<vmem>>, vector<2x32xf32>
    %cst_12 = arith.constant dense<0.000000e+00> : vector<16x32xf32>
    %24 = tpu.matmul %22, %23, %cst_12 {dimension_numbers = #tpu.dot_dimension_numbers<[1], [0], [0], [1], [0, 0, 1, 1], [], []>} : vector<16x2xf32>, vector<2x32xf32>, vector<16x32xf32> -> vector<16x32xf32>
    %25 = arith.addf %16, %24 : vector<16x32xf32>
    %c0_13 = arith.constant 0 : index
    %c0_14 = arith.constant 0 : index
    %26 = vector.load %arg6[%c0_13, %c0_14] : memref<1x32xf32, #tpu.memory_space<vmem>>, vector<1x32xf32>
    %c0_15 = arith.constant 0 : index
    %c0_16 = arith.constant 0 : index
    %27 = vector.load %arg7[%c0_15, %c0_16] : memref<1x32xf32, #tpu.memory_space<vmem>>, vector<1x32xf32>
    %cst_17 = arith.constant dense<0.000000e+00> : vector<16xf32>
    %28 = vector.multi_reduction <add>, %25, %cst_17 [1] : vector<16x32xf32> to vector<16xf32>
    %29 = vector.shape_cast %28 : vector<16xf32> to vector<16x1xf32>
    %cst_18 = arith.constant 3.200000e+01 : f32
    %30 = vector.broadcast %cst_18 : f32 to vector<16x1xf32>
    %31 = arith.divf %29, %30 : vector<16x1xf32>
    %32 = vector.broadcast %31 : vector<16x1xf32> to vector<16x32xf32>
    %33 = arith.subf %25, %32 : vector<16x32xf32>
    %34 = arith.mulf %33, %33 : vector<16x32xf32>
    %cst_19 = arith.constant dense<0.000000e+00> : vector<16xf32>
    %35 = vector.multi_reduction <add>, %34, %cst_19 [1] : vector<16x32xf32> to vector<16xf32>
    %36 = vector.shape_cast %35 : vector<16xf32> to vector<16x1xf32>
    %cst_20 = arith.constant 3.200000e+01 : f32
    %37 = vector.broadcast %cst_20 : f32 to vector<16x1xf32>
    %38 = arith.divf %36, %37 : vector<16x1xf32>
    %cst_21 = arith.constant 9.99999996E-13 : f32
    %39 = vector.broadcast %cst_21 : f32 to vector<16x1xf32>
    %40 = arith.addf %38, %39 : vector<16x1xf32>
    %41 = math.rsqrt %40 : vector<16x1xf32>
    %42 = vector.broadcast %41 : vector<16x1xf32> to vector<16x32xf32>
    %43 = arith.mulf %33, %42 : vector<16x32xf32>
    %44 = vector.broadcast %26 : vector<1x32xf32> to vector<16x32xf32>
    %45 = arith.mulf %43, %44 : vector<16x32xf32>
    %46 = vector.broadcast %27 : vector<1x32xf32> to vector<16x32xf32>
    %47 = arith.addf %45, %46 : vector<16x32xf32>
    %48 = vector.shape_cast %47 : vector<16x32xf32> to vector<2x1x8x32xf32>
    %49 = vector.shape_cast %48 : vector<2x1x8x32xf32> to vector<2x1x8x32xf32>
    %50 = vector.broadcast %49 : vector<2x1x8x32xf32> to vector<2x2x8x32xf32>
    %51 = vector.shape_cast %50 : vector<2x2x8x32xf32> to vector<4x8x32xf32>
    %c0_22 = arith.constant 0 : index
    %c0_23 = arith.constant 0 : index
    %c0_24 = arith.constant 0 : index
    %52 = vector.load %arg8[%c0_22, %c0_23, %c0_24] : memref<2x32x16xf32, #tpu.memory_space<vmem>>, vector<2x32x16xf32>
    %53 = vector.shape_cast %52 : vector<2x32x16xf32> to vector<1x2x32x16xf32>
    %54 = vector.shape_cast %53 : vector<1x2x32x16xf32> to vector<1x2x32x16xf32>
    %55 = vector.broadcast %54 : vector<1x2x32x16xf32> to vector<2x2x32x16xf32>
    %56 = vector.shape_cast %55 : vector<2x2x32x16xf32> to vector<4x32x16xf32>
    "tpu.trace_start"() <{level = 10 : i32, message = "gsk,gkd->gsd"}> : () -> ()
    %cst_25 = arith.constant dense<0.000000e+00> : vector<4x8x16xf32>
    %57 = tpu.matmul %51, %56, %cst_25 {dimension_numbers = #tpu.dot_dimension_numbers<[2], [1], [1], [2], [0, 0, 0, 1, 1, 2], [0], [0]>} : vector<4x8x32xf32>, vector<4x32x16xf32>, vector<4x8x16xf32> -> vector<4x8x16xf32>
    "tpu.trace_stop"() : () -> ()
    %c0_26 = arith.constant 0 : index
    %c0_27 = arith.constant 0 : index
    %c0_28 = arith.constant 0 : index
    %58 = vector.load %arg11[%c0_26, %c0_27, %c0_28] : memref<2x1x16xf32, #tpu.memory_space<vmem>>, vector<2x1x16xf32>
    %59 = vector.shape_cast %58 : vector<2x1x16xf32> to vector<1x2x1x16xf32>
    %60 = vector.shape_cast %59 : vector<1x2x1x16xf32> to vector<1x2x1x16xf32>
    %61 = vector.broadcast %60 : vector<1x2x1x16xf32> to vector<2x2x1x16xf32>
    %62 = vector.shape_cast %61 : vector<2x2x1x16xf32> to vector<4x1x16xf32>
    %63 = vector.broadcast %62 : vector<4x1x16xf32> to vector<4x8x16xf32>
    %64 = arith.addf %57, %63 : vector<4x8x16xf32>
    %c0_29 = arith.constant 0 : index
    %c0_30 = arith.constant 0 : index
    %c0_31 = arith.constant 0 : index
    %65 = vector.load %arg9[%c0_29, %c0_30, %c0_31] : memref<2x32x16xf32, #tpu.memory_space<vmem>>, vector<2x32x16xf32>
    %66 = vector.shape_cast %65 : vector<2x32x16xf32> to vector<1x2x32x16xf32>
    %67 = vector.shape_cast %66 : vector<1x2x32x16xf32> to vector<1x2x32x16xf32>
    %68 = vector.broadcast %67 : vector<1x2x32x16xf32> to vector<2x2x32x16xf32>
    %69 = vector.shape_cast %68 : vector<2x2x32x16xf32> to vector<4x32x16xf32>
    "tpu.trace_start"() <{level = 10 : i32, message = "gsk,gkd->gsd"}> : () -> ()
    %cst_32 = arith.constant dense<0.000000e+00> : vector<4x8x16xf32>
    %70 = tpu.matmul %51, %69, %cst_32 {dimension_numbers = #tpu.dot_dimension_numbers<[2], [1], [1], [2], [0, 0, 0, 1, 1, 2], [0], [0]>} : vector<4x8x32xf32>, vector<4x32x16xf32>, vector<4x8x16xf32> -> vector<4x8x16xf32>
    "tpu.trace_stop"() : () -> ()
    %c0_33 = arith.constant 0 : index
    %c0_34 = arith.constant 0 : index
    %c0_35 = arith.constant 0 : index
    %71 = vector.load %arg12[%c0_33, %c0_34, %c0_35] : memref<2x1x16xf32, #tpu.memory_space<vmem>>, vector<2x1x16xf32>
    %72 = vector.shape_cast %71 : vector<2x1x16xf32> to vector<1x2x1x16xf32>
    %73 = vector.shape_cast %72 : vector<1x2x1x16xf32> to vector<1x2x1x16xf32>
    %74 = vector.broadcast %73 : vector<1x2x1x16xf32> to vector<2x2x1x16xf32>
    %75 = vector.shape_cast %74 : vector<2x2x1x16xf32> to vector<4x1x16xf32>
    %76 = vector.broadcast %75 : vector<4x1x16xf32> to vector<4x8x16xf32>
    %77 = arith.addf %70, %76 : vector<4x8x16xf32>
    %c0_36 = arith.constant 0 : index
    %c0_37 = arith.constant 0 : index
    %c0_38 = arith.constant 0 : index
    %78 = vector.load %arg10[%c0_36, %c0_37, %c0_38] : memref<2x32x16xf32, #tpu.memory_space<vmem>>, vector<2x32x16xf32>
    %79 = vector.shape_cast %78 : vector<2x32x16xf32> to vector<1x2x32x16xf32>
    %80 = vector.shape_cast %79 : vector<1x2x32x16xf32> to vector<1x2x32x16xf32>
    %81 = vector.broadcast %80 : vector<1x2x32x16xf32> to vector<2x2x32x16xf32>
    %82 = vector.shape_cast %81 : vector<2x2x32x16xf32> to vector<4x32x16xf32>
    "tpu.trace_start"() <{level = 10 : i32, message = "gsk,gkd->gsd"}> : () -> ()
    %cst_39 = arith.constant dense<0.000000e+00> : vector<4x8x16xf32>
    %83 = tpu.matmul %51, %82, %cst_39 {dimension_numbers = #tpu.dot_dimension_numbers<[2], [1], [1], [2], [0, 0, 0, 1, 1, 2], [0], [0]>} : vector<4x8x32xf32>, vector<4x32x16xf32>, vector<4x8x16xf32> -> vector<4x8x16xf32>
    "tpu.trace_stop"() : () -> ()
    %c0_40 = arith.constant 0 : index
    %c0_41 = arith.constant 0 : index
    %c0_42 = arith.constant 0 : index
    %84 = vector.load %arg13[%c0_40, %c0_41, %c0_42] : memref<2x1x16xf32, #tpu.memory_space<vmem>>, vector<2x1x16xf32>
    %85 = vector.shape_cast %84 : vector<2x1x16xf32> to vector<1x2x1x16xf32>
    %86 = vector.shape_cast %85 : vector<1x2x1x16xf32> to vector<1x2x1x16xf32>
    %87 = vector.broadcast %86 : vector<1x2x1x16xf32> to vector<2x2x1x16xf32>
    %88 = vector.shape_cast %87 : vector<2x2x1x16xf32> to vector<4x1x16xf32>
    %89 = vector.broadcast %88 : vector<4x1x16xf32> to vector<4x8x16xf32>
    %90 = arith.addf %83, %89 : vector<4x8x16xf32>
    "tpu.trace_start"() <{level = 10 : i32, message = "gqd,gkd->gqk"}> : () -> ()
    %cst_43 = arith.constant dense<0.000000e+00> : vector<4x8x8xf32>
    %91 = tpu.matmul %64, %77, %cst_43 {dimension_numbers = #tpu.dot_dimension_numbers<[2], [2], [1], [1], [0, 0, 0, 1, 1, 1], [0], [0]>} : vector<4x8x16xf32>, vector<4x8x16xf32>, vector<4x8x8xf32> -> vector<4x8x8xf32>
    "tpu.trace_stop"() : () -> ()
    %cst_44 = arith.constant dense<0xFF800000> : vector<4x8xf32>
    %92 = vector.multi_reduction <maximumf>, %91, %cst_44 [2] : vector<4x8x8xf32> to vector<4x8xf32>
    %93 = vector.shape_cast %92 : vector<4x8xf32> to vector<4x8x1xf32>
    %94 = vector.broadcast %93 : vector<4x8x1xf32> to vector<4x8x8xf32>
    %95 = arith.subf %91, %94 : vector<4x8x8xf32>
    %96 = math.exp %95 : vector<4x8x8xf32>
    %cst_45 = arith.constant dense<0.000000e+00> : vector<4x8xf32>
    %97 = vector.multi_reduction <add>, %96, %cst_45 [2] : vector<4x8x8xf32> to vector<4x8xf32>
    %98 = vector.shape_cast %97 : vector<4x8xf32> to vector<4x8x1xf32>
    %99 = tpu.reciprocal %98 {approx = true} : vector<4x8x1xf32> -> vector<4x8x1xf32>
    %100 = vector.broadcast %99 : vector<4x8x1xf32> to vector<4x8x8xf32>
    %101 = arith.mulf %96, %100 : vector<4x8x8xf32>
    "tpu.trace_start"() <{level = 10 : i32, message = "gqk,gkd->gqd"}> : () -> ()
    %cst_46 = arith.constant dense<0.000000e+00> : vector<4x8x16xf32>
    %102 = tpu.matmul %101, %90, %cst_46 {dimension_numbers = #tpu.dot_dimension_numbers<[2], [1], [1], [2], [0, 0, 0, 1, 1, 2], [0], [0]>} : vector<4x8x8xf32>, vector<4x8x16xf32>, vector<4x8x16xf32> -> vector<4x8x16xf32>
    "tpu.trace_stop"() : () -> ()
    %c0_47 = arith.constant 0 : index
    %c0_48 = arith.constant 0 : index
    %c0_49 = arith.constant 0 : index
    %103 = vector.load %arg14[%c0_47, %c0_48, %c0_49] : memref<2x16x32xf32, #tpu.memory_space<vmem>>, vector<2x16x32xf32>
    %104 = vector.shape_cast %103 : vector<2x16x32xf32> to vector<1x2x16x32xf32>
    %105 = vector.shape_cast %104 : vector<1x2x16x32xf32> to vector<1x2x16x32xf32>
    %106 = vector.broadcast %105 : vector<1x2x16x32xf32> to vector<2x2x16x32xf32>
    %107 = vector.shape_cast %106 : vector<2x2x16x32xf32> to vector<4x16x32xf32>
    "tpu.trace_start"() <{level = 10 : i32, message = "gsd,gdo->gso"}> : () -> ()
    %cst_50 = arith.constant dense<0.000000e+00> : vector<4x8x32xf32>
    %108 = tpu.matmul %102, %107, %cst_50 {dimension_numbers = #tpu.dot_dimension_numbers<[2], [1], [1], [2], [0, 0, 0, 1, 1, 2], [0], [0]>} : vector<4x8x16xf32>, vector<4x16x32xf32>, vector<4x8x32xf32> -> vector<4x8x32xf32>
    "tpu.trace_stop"() : () -> ()
    %109 = vector.shape_cast %108 : vector<4x8x32xf32> to vector<2x2x8x32xf32>
    %cst_51 = arith.constant dense<0.000000e+00> : vector<2x8x32xf32>
    %110 = vector.multi_reduction <add>, %109, %cst_51 [1] : vector<2x2x8x32xf32> to vector<2x8x32xf32>
    %111 = vector.shape_cast %110 : vector<2x8x32xf32> to vector<16x32xf32>
    %c0_52 = arith.constant 0 : index
    %c0_53 = arith.constant 0 : index
    %112 = vector.load %arg15[%c0_52, %c0_53] : memref<1x32xf32, #tpu.memory_space<vmem>>, vector<1x32xf32>
    %113 = vector.broadcast %112 : vector<1x32xf32> to vector<16x32xf32>
    %114 = arith.addf %111, %113 : vector<16x32xf32>
    %115 = arith.addf %47, %114 : vector<16x32xf32>
    %c0_54 = arith.constant 0 : index
    %c0_55 = arith.constant 0 : index
    %116 = vector.load %arg16[%c0_54, %c0_55] : memref<1x32xf32, #tpu.memory_space<vmem>>, vector<1x32xf32>
    %c0_56 = arith.constant 0 : index
    %c0_57 = arith.constant 0 : index
    %117 = vector.load %arg17[%c0_56, %c0_57] : memref<1x32xf32, #tpu.memory_space<vmem>>, vector<1x32xf32>
    %cst_58 = arith.constant dense<0.000000e+00> : vector<16xf32>
    %118 = vector.multi_reduction <add>, %115, %cst_58 [1] : vector<16x32xf32> to vector<16xf32>
    %119 = vector.shape_cast %118 : vector<16xf32> to vector<16x1xf32>
    %cst_59 = arith.constant 3.200000e+01 : f32
    %120 = vector.broadcast %cst_59 : f32 to vector<16x1xf32>
    %121 = arith.divf %119, %120 : vector<16x1xf32>
    %122 = vector.broadcast %121 : vector<16x1xf32> to vector<16x32xf32>
    %123 = arith.subf %115, %122 : vector<16x32xf32>
    %124 = arith.mulf %123, %123 : vector<16x32xf32>
    %cst_60 = arith.constant dense<0.000000e+00> : vector<16xf32>
    %125 = vector.multi_reduction <add>, %124, %cst_60 [1] : vector<16x32xf32> to vector<16xf32>
    %126 = vector.shape_cast %125 : vector<16xf32> to vector<16x1xf32>
    %cst_61 = arith.constant 3.200000e+01 : f32
    %127 = vector.broadcast %cst_61 : f32 to vector<16x1xf32>
    %128 = arith.divf %126, %127 : vector<16x1xf32>
    %cst_62 = arith.constant 9.99999996E-13 : f32
    %129 = vector.broadcast %cst_62 : f32 to vector<16x1xf32>
    %130 = arith.addf %128, %129 : vector<16x1xf32>
    %131 = math.rsqrt %130 : vector<16x1xf32>
    %132 = vector.broadcast %131 : vector<16x1xf32> to vector<16x32xf32>
    %133 = arith.mulf %123, %132 : vector<16x32xf32>
    %134 = vector.broadcast %116 : vector<1x32xf32> to vector<16x32xf32>
    %135 = arith.mulf %133, %134 : vector<16x32xf32>
    %136 = vector.broadcast %117 : vector<1x32xf32> to vector<16x32xf32>
    %137 = arith.addf %135, %136 : vector<16x32xf32>
    %c0_63 = arith.constant 0 : index
    %c0_64 = arith.constant 0 : index
    %138 = vector.load %arg18[%c0_63, %c0_64] : memref<32x64xf32, #tpu.memory_space<vmem>>, vector<32x64xf32>
    %cst_65 = arith.constant dense<0.000000e+00> : vector<16x64xf32>
    %139 = tpu.matmul %137, %138, %cst_65 {dimension_numbers = #tpu.dot_dimension_numbers<[1], [0], [0], [1], [0, 0, 1, 1], [], []>} : vector<16x32xf32>, vector<32x64xf32>, vector<16x64xf32> -> vector<16x64xf32>
    %c0_66 = arith.constant 0 : index
    %c0_67 = arith.constant 0 : index
    %140 = vector.load %arg19[%c0_66, %c0_67] : memref<1x64xf32, #tpu.memory_space<vmem>>, vector<1x64xf32>
    %141 = vector.broadcast %140 : vector<1x64xf32> to vector<16x64xf32>
    %142 = arith.addf %139, %141 : vector<16x64xf32>
    %cst_68 = arith.constant 5.000000e-01 : f32
    %143 = vector.broadcast %cst_68 : f32 to vector<16x64xf32>
    %144 = arith.mulf %143, %142 : vector<16x64xf32>
    %cst_69 = arith.constant 4.471500e-02 : f32
    %145 = vector.broadcast %cst_69 : f32 to vector<16x64xf32>
    %146 = arith.mulf %145, %142 : vector<16x64xf32>
    %147 = arith.mulf %146, %142 : vector<16x64xf32>
    %148 = arith.mulf %147, %142 : vector<16x64xf32>
    %149 = arith.addf %142, %148 : vector<16x64xf32>
    %cst_70 = arith.constant 0.797884583 : f32
    %150 = vector.broadcast %cst_70 : f32 to vector<16x64xf32>
    %151 = arith.mulf %150, %149 : vector<16x64xf32>
    %152 = math.tanh %151 : vector<16x64xf32>
    %cst_71 = arith.constant 1.000000e+00 : f32
    %153 = vector.broadcast %cst_71 : f32 to vector<16x64xf32>
    %154 = arith.addf %153, %152 : vector<16x64xf32>
    %155 = arith.mulf %144, %154 : vector<16x64xf32>
    %c0_72 = arith.constant 0 : index
    %c0_73 = arith.constant 0 : index
    %156 = vector.load %arg20[%c0_72, %c0_73] : memref<64x32xf32, #tpu.memory_space<vmem>>, vector<64x32xf32>
    %cst_74 = arith.constant dense<0.000000e+00> : vector<16x32xf32>
    %157 = tpu.matmul %155, %156, %cst_74 {dimension_numbers = #tpu.dot_dimension_numbers<[1], [0], [0], [1], [0, 0, 1, 1], [], []>} : vector<16x64xf32>, vector<64x32xf32>, vector<16x32xf32> -> vector<16x32xf32>
    %c0_75 = arith.constant 0 : index
    %c0_76 = arith.constant 0 : index
    %158 = vector.load %arg21[%c0_75, %c0_76] : memref<1x32xf32, #tpu.memory_space<vmem>>, vector<1x32xf32>
    %159 = vector.broadcast %158 : vector<1x32xf32> to vector<16x32xf32>
    %160 = arith.addf %157, %159 : vector<16x32xf32>
    %161 = arith.addf %137, %160 : vector<16x32xf32>
    %c0_77 = arith.constant 0 : index
    %c0_78 = arith.constant 0 : index
    %162 = vector.load %arg22[%c0_77, %c0_78] : memref<1x32xf32, #tpu.memory_space<vmem>>, vector<1x32xf32>
    %c0_79 = arith.constant 0 : index
    %c0_80 = arith.constant 0 : index
    %163 = vector.load %arg23[%c0_79, %c0_80] : memref<1x32xf32, #tpu.memory_space<vmem>>, vector<1x32xf32>
    %cst_81 = arith.constant dense<0.000000e+00> : vector<16xf32>
    %164 = vector.multi_reduction <add>, %161, %cst_81 [1] : vector<16x32xf32> to vector<16xf32>
    %165 = vector.shape_cast %164 : vector<16xf32> to vector<16x1xf32>
    %cst_82 = arith.constant 3.200000e+01 : f32
    %166 = vector.broadcast %cst_82 : f32 to vector<16x1xf32>
    %167 = arith.divf %165, %166 : vector<16x1xf32>
    %168 = vector.broadcast %167 : vector<16x1xf32> to vector<16x32xf32>
    %169 = arith.subf %161, %168 : vector<16x32xf32>
    %170 = arith.mulf %169, %169 : vector<16x32xf32>
    %cst_83 = arith.constant dense<0.000000e+00> : vector<16xf32>
    %171 = vector.multi_reduction <add>, %170, %cst_83 [1] : vector<16x32xf32> to vector<16xf32>
    %172 = vector.shape_cast %171 : vector<16xf32> to vector<16x1xf32>
    %cst_84 = arith.constant 3.200000e+01 : f32
    %173 = vector.broadcast %cst_84 : f32 to vector<16x1xf32>
    %174 = arith.divf %172, %173 : vector<16x1xf32>
    %cst_85 = arith.constant 9.99999996E-13 : f32
    %175 = vector.broadcast %cst_85 : f32 to vector<16x1xf32>
    %176 = arith.addf %174, %175 : vector<16x1xf32>
    %177 = math.rsqrt %176 : vector<16x1xf32>
    %178 = vector.broadcast %177 : vector<16x1xf32> to vector<16x32xf32>
    %179 = arith.mulf %169, %178 : vector<16x32xf32>
    %180 = vector.broadcast %162 : vector<1x32xf32> to vector<16x32xf32>
    %181 = arith.mulf %179, %180 : vector<16x32xf32>
    %182 = vector.broadcast %163 : vector<1x32xf32> to vector<16x32xf32>
    %183 = arith.addf %181, %182 : vector<16x32xf32>
    %184 = vector.shape_cast %183 : vector<16x32xf32> to vector<2x1x8x32xf32>
    %185 = vector.shape_cast %184 : vector<2x1x8x32xf32> to vector<2x1x8x32xf32>
    %186 = vector.broadcast %185 : vector<2x1x8x32xf32> to vector<2x2x8x32xf32>
    %187 = vector.shape_cast %186 : vector<2x2x8x32xf32> to vector<4x8x32xf32>
    %c0_86 = arith.constant 0 : index
    %c0_87 = arith.constant 0 : index
    %c0_88 = arith.constant 0 : index
    %188 = vector.load %arg24[%c0_86, %c0_87, %c0_88] : memref<2x32x16xf32, #tpu.memory_space<vmem>>, vector<2x32x16xf32>
    %189 = vector.shape_cast %188 : vector<2x32x16xf32> to vector<1x2x32x16xf32>
    %190 = vector.shape_cast %189 : vector<1x2x32x16xf32> to vector<1x2x32x16xf32>
    %191 = vector.broadcast %190 : vector<1x2x32x16xf32> to vector<2x2x32x16xf32>
    %192 = vector.shape_cast %191 : vector<2x2x32x16xf32> to vector<4x32x16xf32>
    "tpu.trace_start"() <{level = 10 : i32, message = "gsk,gkd->gsd"}> : () -> ()
    %cst_89 = arith.constant dense<0.000000e+00> : vector<4x8x16xf32>
    %193 = tpu.matmul %187, %192, %cst_89 {dimension_numbers = #tpu.dot_dimension_numbers<[2], [1], [1], [2], [0, 0, 0, 1, 1, 2], [0], [0]>} : vector<4x8x32xf32>, vector<4x32x16xf32>, vector<4x8x16xf32> -> vector<4x8x16xf32>
    "tpu.trace_stop"() : () -> ()
    %c0_90 = arith.constant 0 : index
    %c0_91 = arith.constant 0 : index
    %c0_92 = arith.constant 0 : index
    %194 = vector.load %arg27[%c0_90, %c0_91, %c0_92] : memref<2x1x16xf32, #tpu.memory_space<vmem>>, vector<2x1x16xf32>
    %195 = vector.shape_cast %194 : vector<2x1x16xf32> to vector<1x2x1x16xf32>
    %196 = vector.shape_cast %195 : vector<1x2x1x16xf32> to vector<1x2x1x16xf32>
    %197 = vector.broadcast %196 : vector<1x2x1x16xf32> to vector<2x2x1x16xf32>
    %198 = vector.shape_cast %197 : vector<2x2x1x16xf32> to vector<4x1x16xf32>
    %199 = vector.broadcast %198 : vector<4x1x16xf32> to vector<4x8x16xf32>
    %200 = arith.addf %193, %199 : vector<4x8x16xf32>
    %c0_93 = arith.constant 0 : index
    %c0_94 = arith.constant 0 : index
    %c0_95 = arith.constant 0 : index
    %201 = vector.load %arg25[%c0_93, %c0_94, %c0_95] : memref<2x32x16xf32, #tpu.memory_space<vmem>>, vector<2x32x16xf32>
    %202 = vector.shape_cast %201 : vector<2x32x16xf32> to vector<1x2x32x16xf32>
    %203 = vector.shape_cast %202 : vector<1x2x32x16xf32> to vector<1x2x32x16xf32>
    %204 = vector.broadcast %203 : vector<1x2x32x16xf32> to vector<2x2x32x16xf32>
    %205 = vector.shape_cast %204 : vector<2x2x32x16xf32> to vector<4x32x16xf32>
    "tpu.trace_start"() <{level = 10 : i32, message = "gsk,gkd->gsd"}> : () -> ()
    %cst_96 = arith.constant dense<0.000000e+00> : vector<4x8x16xf32>
    %206 = tpu.matmul %187, %205, %cst_96 {dimension_numbers = #tpu.dot_dimension_numbers<[2], [1], [1], [2], [0, 0, 0, 1, 1, 2], [0], [0]>} : vector<4x8x32xf32>, vector<4x32x16xf32>, vector<4x8x16xf32> -> vector<4x8x16xf32>
    "tpu.trace_stop"() : () -> ()
    %c0_97 = arith.constant 0 : index
    %c0_98 = arith.constant 0 : index
    %c0_99 = arith.constant 0 : index
    %207 = vector.load %arg28[%c0_97, %c0_98, %c0_99] : memref<2x1x16xf32, #tpu.memory_space<vmem>>, vector<2x1x16xf32>
    %208 = vector.shape_cast %207 : vector<2x1x16xf32> to vector<1x2x1x16xf32>
    %209 = vector.shape_cast %208 : vector<1x2x1x16xf32> to vector<1x2x1x16xf32>
    %210 = vector.broadcast %209 : vector<1x2x1x16xf32> to vector<2x2x1x16xf32>
    %211 = vector.shape_cast %210 : vector<2x2x1x16xf32> to vector<4x1x16xf32>
    %212 = vector.broadcast %211 : vector<4x1x16xf32> to vector<4x8x16xf32>
    %213 = arith.addf %206, %212 : vector<4x8x16xf32>
    %c0_100 = arith.constant 0 : index
    %c0_101 = arith.constant 0 : index
    %c0_102 = arith.constant 0 : index
    %214 = vector.load %arg26[%c0_100, %c0_101, %c0_102] : memref<2x32x16xf32, #tpu.memory_space<vmem>>, vector<2x32x16xf32>
    %215 = vector.shape_cast %214 : vector<2x32x16xf32> to vector<1x2x32x16xf32>
    %216 = vector.shape_cast %215 : vector<1x2x32x16xf32> to vector<1x2x32x16xf32>
    %217 = vector.broadcast %216 : vector<1x2x32x16xf32> to vector<2x2x32x16xf32>
    %218 = vector.shape_cast %217 : vector<2x2x32x16xf32> to vector<4x32x16xf32>
    "tpu.trace_start"() <{level = 10 : i32, message = "gsk,gkd->gsd"}> : () -> ()
    %cst_103 = arith.constant dense<0.000000e+00> : vector<4x8x16xf32>
    %219 = tpu.matmul %187, %218, %cst_103 {dimension_numbers = #tpu.dot_dimension_numbers<[2], [1], [1], [2], [0, 0, 0, 1, 1, 2], [0], [0]>} : vector<4x8x32xf32>, vector<4x32x16xf32>, vector<4x8x16xf32> -> vector<4x8x16xf32>
    "tpu.trace_stop"() : () -> ()
    %c0_104 = arith.constant 0 : index
    %c0_105 = arith.constant 0 : index
    %c0_106 = arith.constant 0 : index
    %220 = vector.load %arg29[%c0_104, %c0_105, %c0_106] : memref<2x1x16xf32, #tpu.memory_space<vmem>>, vector<2x1x16xf32>
    %221 = vector.shape_cast %220 : vector<2x1x16xf32> to vector<1x2x1x16xf32>
    %222 = vector.shape_cast %221 : vector<1x2x1x16xf32> to vector<1x2x1x16xf32>
    %223 = vector.broadcast %222 : vector<1x2x1x16xf32> to vector<2x2x1x16xf32>
    %224 = vector.shape_cast %223 : vector<2x2x1x16xf32> to vector<4x1x16xf32>
    %225 = vector.broadcast %224 : vector<4x1x16xf32> to vector<4x8x16xf32>
    %226 = arith.addf %219, %225 : vector<4x8x16xf32>
    "tpu.trace_start"() <{level = 10 : i32, message = "gqd,gkd->gqk"}> : () -> ()
    %cst_107 = arith.constant dense<0.000000e+00> : vector<4x8x8xf32>
    %227 = tpu.matmul %200, %213, %cst_107 {dimension_numbers = #tpu.dot_dimension_numbers<[2], [2], [1], [1], [0, 0, 0, 1, 1, 1], [0], [0]>} : vector<4x8x16xf32>, vector<4x8x16xf32>, vector<4x8x8xf32> -> vector<4x8x8xf32>
    "tpu.trace_stop"() : () -> ()
    %cst_108 = arith.constant dense<0xFF800000> : vector<4x8xf32>
    %228 = vector.multi_reduction <maximumf>, %227, %cst_108 [2] : vector<4x8x8xf32> to vector<4x8xf32>
    %229 = vector.shape_cast %228 : vector<4x8xf32> to vector<4x8x1xf32>
    %230 = vector.broadcast %229 : vector<4x8x1xf32> to vector<4x8x8xf32>
    %231 = arith.subf %227, %230 : vector<4x8x8xf32>
    %232 = math.exp %231 : vector<4x8x8xf32>
    %cst_109 = arith.constant dense<0.000000e+00> : vector<4x8xf32>
    %233 = vector.multi_reduction <add>, %232, %cst_109 [2] : vector<4x8x8xf32> to vector<4x8xf32>
    %234 = vector.shape_cast %233 : vector<4x8xf32> to vector<4x8x1xf32>
    %235 = tpu.reciprocal %234 {approx = true} : vector<4x8x1xf32> -> vector<4x8x1xf32>
    %236 = vector.broadcast %235 : vector<4x8x1xf32> to vector<4x8x8xf32>
    %237 = arith.mulf %232, %236 : vector<4x8x8xf32>
    "tpu.trace_start"() <{level = 10 : i32, message = "gqk,gkd->gqd"}> : () -> ()
    %cst_110 = arith.constant dense<0.000000e+00> : vector<4x8x16xf32>
    %238 = tpu.matmul %237, %226, %cst_110 {dimension_numbers = #tpu.dot_dimension_numbers<[2], [1], [1], [2], [0, 0, 0, 1, 1, 2], [0], [0]>} : vector<4x8x8xf32>, vector<4x8x16xf32>, vector<4x8x16xf32> -> vector<4x8x16xf32>
    "tpu.trace_stop"() : () -> ()
    %c0_111 = arith.constant 0 : index
    %c0_112 = arith.constant 0 : index
    %c0_113 = arith.constant 0 : index
    %239 = vector.load %arg30[%c0_111, %c0_112, %c0_113] : memref<2x16x32xf32, #tpu.memory_space<vmem>>, vector<2x16x32xf32>
    %240 = vector.shape_cast %239 : vector<2x16x32xf32> to vector<1x2x16x32xf32>
    %241 = vector.shape_cast %240 : vector<1x2x16x32xf32> to vector<1x2x16x32xf32>
    %242 = vector.broadcast %241 : vector<1x2x16x32xf32> to vector<2x2x16x32xf32>
    %243 = vector.shape_cast %242 : vector<2x2x16x32xf32> to vector<4x16x32xf32>
    "tpu.trace_start"() <{level = 10 : i32, message = "gsd,gdo->gso"}> : () -> ()
    %cst_114 = arith.constant dense<0.000000e+00> : vector<4x8x32xf32>
    %244 = tpu.matmul %238, %243, %cst_114 {dimension_numbers = #tpu.dot_dimension_numbers<[2], [1], [1], [2], [0, 0, 0, 1, 1, 2], [0], [0]>} : vector<4x8x16xf32>, vector<4x16x32xf32>, vector<4x8x32xf32> -> vector<4x8x32xf32>
    "tpu.trace_stop"() : () -> ()
    %245 = vector.shape_cast %244 : vector<4x8x32xf32> to vector<2x2x8x32xf32>
    %cst_115 = arith.constant dense<0.000000e+00> : vector<2x8x32xf32>
    %246 = vector.multi_reduction <add>, %245, %cst_115 [1] : vector<2x2x8x32xf32> to vector<2x8x32xf32>
    %247 = vector.shape_cast %246 : vector<2x8x32xf32> to vector<16x32xf32>
    %c0_116 = arith.constant 0 : index
    %c0_117 = arith.constant 0 : index
    %248 = vector.load %arg31[%c0_116, %c0_117] : memref<1x32xf32, #tpu.memory_space<vmem>>, vector<1x32xf32>
    %249 = vector.broadcast %248 : vector<1x32xf32> to vector<16x32xf32>
    %250 = arith.addf %247, %249 : vector<16x32xf32>
    %251 = arith.addf %183, %250 : vector<16x32xf32>
    %c0_118 = arith.constant 0 : index
    %c0_119 = arith.constant 0 : index
    %252 = vector.load %arg32[%c0_118, %c0_119] : memref<1x32xf32, #tpu.memory_space<vmem>>, vector<1x32xf32>
    %c0_120 = arith.constant 0 : index
    %c0_121 = arith.constant 0 : index
    %253 = vector.load %arg33[%c0_120, %c0_121] : memref<1x32xf32, #tpu.memory_space<vmem>>, vector<1x32xf32>
    %cst_122 = arith.constant dense<0.000000e+00> : vector<16xf32>
    %254 = vector.multi_reduction <add>, %251, %cst_122 [1] : vector<16x32xf32> to vector<16xf32>
    %255 = vector.shape_cast %254 : vector<16xf32> to vector<16x1xf32>
    %cst_123 = arith.constant 3.200000e+01 : f32
    %256 = vector.broadcast %cst_123 : f32 to vector<16x1xf32>
    %257 = arith.divf %255, %256 : vector<16x1xf32>
    %258 = vector.broadcast %257 : vector<16x1xf32> to vector<16x32xf32>
    %259 = arith.subf %251, %258 : vector<16x32xf32>
    %260 = arith.mulf %259, %259 : vector<16x32xf32>
    %cst_124 = arith.constant dense<0.000000e+00> : vector<16xf32>
    %261 = vector.multi_reduction <add>, %260, %cst_124 [1] : vector<16x32xf32> to vector<16xf32>
    %262 = vector.shape_cast %261 : vector<16xf32> to vector<16x1xf32>
    %cst_125 = arith.constant 3.200000e+01 : f32
    %263 = vector.broadcast %cst_125 : f32 to vector<16x1xf32>
    %264 = arith.divf %262, %263 : vector<16x1xf32>
    %cst_126 = arith.constant 9.99999996E-13 : f32
    %265 = vector.broadcast %cst_126 : f32 to vector<16x1xf32>
    %266 = arith.addf %264, %265 : vector<16x1xf32>
    %267 = math.rsqrt %266 : vector<16x1xf32>
    %268 = vector.broadcast %267 : vector<16x1xf32> to vector<16x32xf32>
    %269 = arith.mulf %259, %268 : vector<16x32xf32>
    %270 = vector.broadcast %252 : vector<1x32xf32> to vector<16x32xf32>
    %271 = arith.mulf %269, %270 : vector<16x32xf32>
    %272 = vector.broadcast %253 : vector<1x32xf32> to vector<16x32xf32>
    %273 = arith.addf %271, %272 : vector<16x32xf32>
    %c0_127 = arith.constant 0 : index
    %c0_128 = arith.constant 0 : index
    %274 = vector.load %arg34[%c0_127, %c0_128] : memref<32x64xf32, #tpu.memory_space<vmem>>, vector<32x64xf32>
    %cst_129 = arith.constant dense<0.000000e+00> : vector<16x64xf32>
    %275 = tpu.matmul %273, %274, %cst_129 {dimension_numbers = #tpu.dot_dimension_numbers<[1], [0], [0], [1], [0, 0, 1, 1], [], []>} : vector<16x32xf32>, vector<32x64xf32>, vector<16x64xf32> -> vector<16x64xf32>
    %c0_130 = arith.constant 0 : index
    %c0_131 = arith.constant 0 : index
    %276 = vector.load %arg35[%c0_130, %c0_131] : memref<1x64xf32, #tpu.memory_space<vmem>>, vector<1x64xf32>
    %277 = vector.broadcast %276 : vector<1x64xf32> to vector<16x64xf32>
    %278 = arith.addf %275, %277 : vector<16x64xf32>
    %cst_132 = arith.constant 5.000000e-01 : f32
    %279 = vector.broadcast %cst_132 : f32 to vector<16x64xf32>
    %280 = arith.mulf %279, %278 : vector<16x64xf32>
    %cst_133 = arith.constant 4.471500e-02 : f32
    %281 = vector.broadcast %cst_133 : f32 to vector<16x64xf32>
    %282 = arith.mulf %281, %278 : vector<16x64xf32>
    %283 = arith.mulf %282, %278 : vector<16x64xf32>
    %284 = arith.mulf %283, %278 : vector<16x64xf32>
    %285 = arith.addf %278, %284 : vector<16x64xf32>
    %cst_134 = arith.constant 0.797884583 : f32
    %286 = vector.broadcast %cst_134 : f32 to vector<16x64xf32>
    %287 = arith.mulf %286, %285 : vector<16x64xf32>
    %288 = math.tanh %287 : vector<16x64xf32>
    %cst_135 = arith.constant 1.000000e+00 : f32
    %289 = vector.broadcast %cst_135 : f32 to vector<16x64xf32>
    %290 = arith.addf %289, %288 : vector<16x64xf32>
    %291 = arith.mulf %280, %290 : vector<16x64xf32>
    %c0_136 = arith.constant 0 : index
    %c0_137 = arith.constant 0 : index
    %292 = vector.load %arg36[%c0_136, %c0_137] : memref<64x32xf32, #tpu.memory_space<vmem>>, vector<64x32xf32>
    %cst_138 = arith.constant dense<0.000000e+00> : vector<16x32xf32>
    %293 = tpu.matmul %291, %292, %cst_138 {dimension_numbers = #tpu.dot_dimension_numbers<[1], [0], [0], [1], [0, 0, 1, 1], [], []>} : vector<16x64xf32>, vector<64x32xf32>, vector<16x32xf32> -> vector<16x32xf32>
    %c0_139 = arith.constant 0 : index
    %c0_140 = arith.constant 0 : index
    %294 = vector.load %arg37[%c0_139, %c0_140] : memref<1x32xf32, #tpu.memory_space<vmem>>, vector<1x32xf32>
    %295 = vector.broadcast %294 : vector<1x32xf32> to vector<16x32xf32>
    %296 = arith.addf %293, %295 : vector<16x32xf32>
    %297 = arith.addf %273, %296 : vector<16x32xf32>
    %c0_141 = arith.constant 0 : index
    %c0_142 = arith.constant 0 : index
    %298 = vector.load %arg38[%c0_141, %c0_142] : memref<1x32xf32, #tpu.memory_space<vmem>>, vector<1x32xf32>
    %c0_143 = arith.constant 0 : index
    %c0_144 = arith.constant 0 : index
    %299 = vector.load %arg39[%c0_143, %c0_144] : memref<1x32xf32, #tpu.memory_space<vmem>>, vector<1x32xf32>
    %cst_145 = arith.constant dense<0.000000e+00> : vector<16xf32>
    %300 = vector.multi_reduction <add>, %297, %cst_145 [1] : vector<16x32xf32> to vector<16xf32>
    %301 = vector.shape_cast %300 : vector<16xf32> to vector<16x1xf32>
    %cst_146 = arith.constant 3.200000e+01 : f32
    %302 = vector.broadcast %cst_146 : f32 to vector<16x1xf32>
    %303 = arith.divf %301, %302 : vector<16x1xf32>
    %304 = vector.broadcast %303 : vector<16x1xf32> to vector<16x32xf32>
    %305 = arith.subf %297, %304 : vector<16x32xf32>
    %306 = arith.mulf %305, %305 : vector<16x32xf32>
    %cst_147 = arith.constant dense<0.000000e+00> : vector<16xf32>
    %307 = vector.multi_reduction <add>, %306, %cst_147 [1] : vector<16x32xf32> to vector<16xf32>
    %308 = vector.shape_cast %307 : vector<16xf32> to vector<16x1xf32>
    %cst_148 = arith.constant 3.200000e+01 : f32
    %309 = vector.broadcast %cst_148 : f32 to vector<16x1xf32>
    %310 = arith.divf %308, %309 : vector<16x1xf32>
    %cst_149 = arith.constant 9.99999996E-13 : f32
    %311 = vector.broadcast %cst_149 : f32 to vector<16x1xf32>
    %312 = arith.addf %310, %311 : vector<16x1xf32>
    %313 = math.rsqrt %312 : vector<16x1xf32>
    %314 = vector.broadcast %313 : vector<16x1xf32> to vector<16x32xf32>
    %315 = arith.mulf %305, %314 : vector<16x32xf32>
    %316 = vector.broadcast %298 : vector<1x32xf32> to vector<16x32xf32>
    %317 = arith.mulf %315, %316 : vector<16x32xf32>
    %318 = vector.broadcast %299 : vector<1x32xf32> to vector<16x32xf32>
    %319 = arith.addf %317, %318 : vector<16x32xf32>
    %320 = tpu.iota {dimensions = array<i32: 1>} : vector<2x16xi32>
    %321 = tpu.iota {dimensions = array<i32: 0>} : vector<2x16xi32>
    %c8_i32 = arith.constant 8 : i32
    %322 = vector.broadcast %c8_i32 : i32 to vector<2x16xi32>
    %323 = arith.muli %322, %321 : vector<2x16xi32>
    %324 = arith.cmpi eq, %320, %323 : vector<2x16xi32>
    %325 = arith.extui %324 : vector<2x16xi1> to vector<2x16xi32>
    %326 = arith.sitofp %325 : vector<2x16xi32> to vector<2x16xf32>
    %cst_150 = arith.constant dense<0.000000e+00> : vector<2x32xf32>
    %327 = tpu.matmul %326, %319, %cst_150 {dimension_numbers = #tpu.dot_dimension_numbers<[1], [0], [0], [1], [0, 0, 1, 1], [], []>} : vector<2x16xf32>, vector<16x32xf32>, vector<2x32xf32> -> vector<2x32xf32>
    %c0_151 = arith.constant 0 : index
    %c0_152 = arith.constant 0 : index
    %328 = vector.load %arg40[%c0_151, %c0_152] : memref<32x32xf32, #tpu.memory_space<vmem>>, vector<32x32xf32>
    %cst_153 = arith.constant dense<0.000000e+00> : vector<2x32xf32>
    %329 = tpu.matmul %327, %328, %cst_153 {dimension_numbers = #tpu.dot_dimension_numbers<[1], [0], [0], [1], [0, 0, 1, 1], [], []>} : vector<2x32xf32>, vector<32x32xf32>, vector<2x32xf32> -> vector<2x32xf32>
    %c0_154 = arith.constant 0 : index
    %c0_155 = arith.constant 0 : index
    %330 = vector.load %arg41[%c0_154, %c0_155] : memref<1x32xf32, #tpu.memory_space<vmem>>, vector<1x32xf32>
    %331 = vector.broadcast %330 : vector<1x32xf32> to vector<2x32xf32>
    %332 = arith.addf %329, %331 : vector<2x32xf32>
    %333 = math.tanh %332 : vector<2x32xf32>
    %c0_156 = arith.constant 0 : index
    %c0_157 = arith.constant 0 : index
    %334 = vector.load %arg42[%c0_156, %c0_157] : memref<32x3xf32, #tpu.memory_space<vmem>>, vector<32x3xf32>
    %cst_158 = arith.constant dense<0.000000e+00> : vector<2x3xf32>
    %335 = tpu.matmul %333, %334, %cst_158 {dimension_numbers = #tpu.dot_dimension_numbers<[1], [0], [0], [1], [0, 0, 1, 1], [], []>} : vector<2x32xf32>, vector<32x3xf32>, vector<2x3xf32> -> vector<2x3xf32>
    %c0_159 = arith.constant 0 : index
    %c0_160 = arith.constant 0 : index
    %336 = vector.load %arg43[%c0_159, %c0_160] : memref<1x3xf32, #tpu.memory_space<vmem>>, vector<1x3xf32>
    %337 = vector.broadcast %336 : vector<1x3xf32> to vector<2x3xf32>
    %338 = arith.addf %335, %337 : vector<2x3xf32>
    %c0_161 = arith.constant 0 : index
    %c0_162 = arith.constant 0 : index
    %339 = vector.load %arg44[%c0_161, %c0_162] : memref<2x3xf32, #tpu.memory_space<vmem>>, vector<2x3xf32>
    tpu.vector_store %arg44[%c0_161, %c0_162], %338 {strides = array<i32>} : memref<2x3xf32, #tpu.memory_space<vmem>>, vector<2x3xf32>,
    return
  }
}

</mosaic_0001>

<llo_original>
// kernel: tile.0
$region0: #{tile.0}
  %s0 = inlined_call_operand.vmem [shape: s32[2,8], index: 0, kind: input, shape index: {}]
  %s1 = inlined_call_operand.vmem [shape: s32[16,1], index: 1, kind: output, shape index: {}]
  $region1: #{tile.0} parent=0
    #allocation0 [shape = 'u8[4096]{0}', space=vmem, size = 0x1000, scoped, tag = 'scoped mem for input reshape']
    %s3 = sshllo.u32 0, 2
    %v4 = vld [vmem:[%s0] sm:%s3]
    %5 = vst [vmem:[#allocation0] sm:%s3] %v4
    %v6 = vld [vmem:[#allocation0] sm:$0x3]
    %vm7 = vcmask 7168
    %8 = vst.msk [vmem:[%s1] ss:$8 sm:$0x3] %vm7, %v6
    %v9 = vld [vmem:[#allocation0] sm:$0x3]
    %10 = vrot.lane.b32.xlu0 %v9, 127
    %v11 = vpop.permute.xlu0 %10
    %vm12 = vcmask 7168
    %s13 = scalar_lea.vmem %s1, 1
    %14 = vst.msk [vmem:[%s13] ss:$8 sm:$0x3] %vm12, %v11
    %v15 = vld [vmem:[#allocation0] sm:$0x3]
    %16 = vrot.lane.b32.xlu0 %v15, 126
    %v17 = vpop.permute.xlu0 %16
    %vm18 = vcmask 7168
    %s19 = scalar_lea.vmem %s1, 2
    %20 = vst.msk [vmem:[%s19] ss:$8 sm:$0x3] %vm18, %v17
    %v21 = vld [vmem:[#allocation0] sm:$0x3]
    %22 = vrot.lane.b32.xlu0 %v21, 125
    %v23 = vpop.permute.xlu0 %22
    %vm24 = vcmask 7168
    %s25 = scalar_lea.vmem %s1, 3
    %26 = vst.msk [vmem:[%s25] ss:$8 sm:$0x3] %vm24, %v23
    %v27 = vld [vmem:[#allocation0] sm:$0x3]
    %28 = vrot.lane.b32.xlu0 %v27, 124
    %v29 = vpop.permute.xlu0 %28
    %vm30 = vcmask 7168
    %s31 = scalar_lea.vmem %s1, 4
    %32 = vst.msk [vmem:[%s31] ss:$8 sm:$0x3] %vm30, %v29
    %v33 = vld [vmem:[#allocation0] sm:$0x3]
    %34 = vrot.lane.b32.xlu0 %v33, 123
    %v35 = vpop.permute.xlu0 %34
    %vm36 = vcmask 7168
    %s37 = scalar_lea.vmem %s1, 5
    %38 = vst.msk [vmem:[%s37] ss:$8 sm:$0x3] %vm36, %v35
    %v39 = vld [vmem:[#allocation0] sm:$0x3]
    %40 = vrot.lane.b32.xlu0 %v39, 122
    %v41 = vpop.permute.xlu0 %40
    %vm42 = vcmask 7168
    %s43 = scalar_lea.vmem %s1, 6
    %44 = vst.msk [vmem:[%s43] ss:$8 sm:$0x3] %vm42, %v41
    %v45 = vld [vmem:[#allocation0] sm:$0x3]
    %46 = vrot.lane.b32.xlu0 %v45, 121
    %v47 = vpop.permute.xlu0 %46
    %vm48 = vcmask 7168
    %s49 = scalar_lea.vmem %s1, 7
    %50 = vst.msk [vmem:[%s49] ss:$8 sm:$0x3] %vm48, %v47

// kernel: _lambda_.1
$region0: #{_lambda_.1}
  #allocation0 [shape = 'u32[]', space=smem, size = 0x4, offset = 0x4, fixed_abs, tag = 'smem constant byte address 0x4 - core index']
  #allocation1 [shape = 'u32[144,128]{1,0:T(1,128)}', space=vmem, size = 0x12000, scoped, tag = 'internal scratch']
  %s0 = inlined_call_operand.smem [shape: u32[45], index: -1, kind: input, shape index: {}]
  %s1 = sld [smem:[%s0]]
  %s2 = scalar_lea.smem %s0, 1
  %s3 = sld [smem:[%s2]]
  %s4 = scalar_lea.smem %s0, 2
  %s5 = sld [smem:[%s4]]
  %s6 = scalar_lea.smem %s0, 3
  %s7 = sld [smem:[%s6]]
  %s8 = scalar_lea.smem %s0, 4
  %s9 = sld [smem:[%s8]]
  %s10 = scalar_lea.smem %s0, 5
  %s11 = sld [smem:[%s10]]
  %s12 = scalar_lea.smem %s0, 6
  %s13 = sld [smem:[%s12]]
  %s14 = scalar_lea.smem %s0, 7
  %s15 = sld [smem:[%s14]]
  %s16 = scalar_lea.smem %s0, 8
  %s17 = sld [smem:[%s16]]
  %s18 = scalar_lea.smem %s0, 9
  %s19 = sld [smem:[%s18]]
  %s20 = scalar_lea.smem %s0, 10
  %s21 = sld [smem:[%s20]]
  %s22 = scalar_lea.smem %s0, 11
  %s23 = sld [smem:[%s22]]
  %s24 = scalar_lea.smem %s0, 12
  %s25 = sld [smem:[%s24]]
  %s26 = scalar_lea.smem %s0, 13
  %s27 = sld [smem:[%s26]]
  %s28 = scalar_lea.smem %s0, 14
  %s29 = sld [smem:[%s28]]
  %s30 = scalar_lea.smem %s0, 15
  %s31 = sld [smem:[%s30]]
  %s32 = scalar_lea.smem %s0, 16
  %s33 = sld [smem:[%s32]]
  %s34 = scalar_lea.smem %s0, 17
  %s35 = sld [smem:[%s34]]
  %s36 = scalar_lea.smem %s0, 18
  %s37 = sld [smem:[%s36]]
  %s38 = scalar_lea.smem %s0, 19
  %s39 = sld [smem:[%s38]]
  %s40 = scalar_lea.smem %s0, 20
  %s41 = sld [smem:[%s40]]
  %s42 = scalar_lea.smem %s0, 21
  %s43 = sld [smem:[%s42]]
  %s44 = scalar_lea.smem %s0, 22
  %s45 = sld [smem:[%s44]]
  %s46 = scalar_lea.smem %s0, 23
  %s47 = sld [smem:[%s46]]
  %s48 = scalar_lea.smem %s0, 24
  %s49 = sld [smem:[%s48]]
  %s50 = scalar_lea.smem %s0, 25
  %s51 = sld [smem:[%s50]]
  %s52 = scalar_lea.smem %s0, 26
  %s53 = sld [smem:[%s52]]
  %s54 = scalar_lea.smem %s0, 27
  %s55 = sld [smem:[%s54]]
  %s56 = scalar_lea.smem %s0, 28
  %s57 = sld [smem:[%s56]]
  %s58 = scalar_lea.smem %s0, 29
  %s59 = sld [smem:[%s58]]
  %s60 = scalar_lea.smem %s0, 30
  %s61 = sld [smem:[%s60]]
  %s62 = scalar_lea.smem %s0, 31
  %s63 = sld [smem:[%s62]]
  %s64 = scalar_lea.smem %s0, 32
  %s65 = sld [smem:[%s64]]
  %s66 = scalar_lea.smem %s0, 33
  %s67 = sld [smem:[%s66]]
  %s68 = scalar_lea.smem %s0, 34
  %s69 = sld [smem:[%s68]]
  %s70 = scalar_lea.smem %s0, 35
  %s71 = sld [smem:[%s70]]
  %s72 = scalar_lea.smem %s0, 36
  %s73 = sld [smem:[%s72]]
  %s74 = scalar_lea.smem %s0, 37
  %s75 = sld [smem:[%s74]]
  %s76 = scalar_lea.smem %s0, 38
  %s77 = sld [smem:[%s76]]
  %s78 = scalar_lea.smem %s0, 39
  %s79 = sld [smem:[%s78]]
  %s80 = scalar_lea.smem %s0, 40
  %s81 = sld [smem:[%s80]]
  %s82 = scalar_lea.smem %s0, 41
  %s83 = sld [smem:[%s82]]
  %s84 = scalar_lea.smem %s0, 42
  %s85 = sld [smem:[%s84]]
  %s86 = scalar_lea.smem %s0, 43
  %s87 = sld [smem:[%s86]]
  %s88 = scalar_lea.smem %s0, 44
  %s89 = sld [smem:[%s88]]
  %s90 = sld [smem:[#allocation0]]
  $region186: #{_lambda_.1} parent=0
    _
  %s92 = ssub.s32 1, %s90
  %s93 = scalar_select 0, %s92, %s90
  $region1: #{_lambda_.1} parent=0
    #allocation2 [shape = 'u8[1024]{0}', space=vmem, size = 0x400, scoped, tag = 'output window, operand 0, single buffered']
    #allocation3 [shape = 's32[1]{0}', space=sflag, size = 0x4, scoped, tag = 'scoped memory for _lambda_.1']
    %94 = vsyncpa [#allocation3], 0
    // Predicated region
    $region2: #{_lambda_.1} parent=1 // pred_check
      _
    $region3: #{_lambda_.1} parent=1 // pred_check_branch
      %96 = sbr.rel (0) target = $region5
    $region4: #{_lambda_.1} parent=1 // pred_region
      _
    $region5: #{_lambda_.1} parent=1 // pred_fallthru
      _
    // Predicated region
    $region6: #{_lambda_.1} parent=1 // pred_check
      _
    $region7: #{_lambda_.1} parent=1 // pred_check_branch
      %98 = sbr.rel (0) target = $region9
    $region8: #{_lambda_.1} parent=1 // pred_region
      _
    $region9: #{_lambda_.1} parent=1 // pred_fallthru
      _
    // Predicated region
    $region10: #{_lambda_.1} parent=1 // pred_check
      _
    $region11: #{_lambda_.1} parent=1 // pred_check_branch
      %100 = sbr.rel (0) target = $region13
    $region12: #{_lambda_.1} parent=1 // pred_region
      _
    $region13: #{_lambda_.1} parent=1 // pred_fallthru
      _
    // Predicated region
    $region14: #{_lambda_.1} parent=1 // pred_check
      _
    $region15: #{_lambda_.1} parent=1 // pred_check_branch
      %102 = sbr.rel (0) target = $region17
    $region16: #{_lambda_.1} parent=1 // pred_region
      _
    $region17: #{_lambda_.1} parent=1 // pred_fallthru
      _
    // Predicated region
    $region18: #{_lambda_.1} parent=1 // pred_check
      _
    $region19: #{_lambda_.1} parent=1 // pred_check_branch
      %104 = sbr.rel (0) target = $region21
    $region20: #{_lambda_.1} parent=1 // pred_region
      _
    $region21: #{_lambda_.1} parent=1 // pred_fallthru
      _
    // Predicated region
    $region22: #{_lambda_.1} parent=1 // pred_check
      _
    $region23: #{_lambda_.1} parent=1 // pred_check_branch
      %106 = sbr.rel (0) target = $region25
    $region24: #{_lambda_.1} parent=1 // pred_region
      _
    $region25: #{_lambda_.1} parent=1 // pred_fallthru
      _
    // Predicated region
    $region26: #{_lambda_.1} parent=1 // pred_check
      _
    $region27: #{_lambda_.1} parent=1 // pred_check_branch
      %108 = sbr.rel (0) target = $region29
    $region28: #{_lambda_.1} parent=1 // pred_region
      _
    $region29: #{_lambda_.1} parent=1 // pred_fallthru
      _
    // Predicated region
    $region30: #{_lambda_.1} parent=1 // pred_check
      _
    $region31: #{_lambda_.1} parent=1 // pred_check_branch
      %110 = sbr.rel (0) target = $region33
    $region32: #{_lambda_.1} parent=1 // pred_region
      _
    $region33: #{_lambda_.1} parent=1 // pred_fallthru
      _
    // Predicated region
    $region34: #{_lambda_.1} parent=1 // pred_check
      _
    $region35: #{_lambda_.1} parent=1 // pred_check_branch
      %112 = sbr.rel (0) target = $region37
    $region36: #{_lambda_.1} parent=1 // pred_region
      _
    $region37: #{_lambda_.1} parent=1 // pred_fallthru
      _
    // Predicated region
    $region38: #{_lambda_.1} parent=1 // pred_check
      _
    $region39: #{_lambda_.1} parent=1 // pred_check_branch
      %114 = sbr.rel (0) target = $region41
    $region40: #{_lambda_.1} parent=1 // pred_region
      _
    $region41: #{_lambda_.1} parent=1 // pred_fallthru
      _
    // Predicated region
    $region42: #{_lambda_.1} parent=1 // pred_check
      _
    $region43: #{_lambda_.1} parent=1 // pred_check_branch
      %116 = sbr.rel (0) target = $region45
    $region44: #{_lambda_.1} parent=1 // pred_region
      _
    $region45: #{_lambda_.1} parent=1 // pred_fallthru
      _
    // Predicated region
    $region46: #{_lambda_.1} parent=1 // pred_check
      _
    $region47: #{_lambda_.1} parent=1 // pred_check_branch
      %118 = sbr.rel (0) target = $region49
    $region48: #{_lambda_.1} parent=1 // pred_region
      _
    $region49: #{_lambda_.1} parent=1 // pred_fallthru
      _
    // Predicated region
    $region50: #{_lambda_.1} parent=1 // pred_check
      _
    $region51: #{_lambda_.1} parent=1 // pred_check_branch
      %120 = sbr.rel (0) target = $region53
    $region52: #{_lambda_.1} parent=1 // pred_region
      _
    $region53: #{_lambda_.1} parent=1 // pred_fallthru
      _
    // Predicated region
    $region54: #{_lambda_.1} parent=1 // pred_check
      _
    $region55: #{_lambda_.1} parent=1 // pred_check_branch
      %122 = sbr.rel (0) target = $region57
    $region56: #{_lambda_.1} parent=1 // pred_region
      _
    $region57: #{_lambda_.1} parent=1 // pred_fallthru
      _
    // Predicated region
    $region58: #{_lambda_.1} parent=1 // pred_check
      _
    $region59: #{_lambda_.1} parent=1 // pred_check_branch
      %124 = sbr.rel (0) target = $region61
    $region60: #{_lambda_.1} parent=1 // pred_region
      _
    $region61: #{_lambda_.1} parent=1 // pred_fallthru
      _
    // Predicated region
    $region62: #{_lambda_.1} parent=1 // pred_check
      _
    $region63: #{_lambda_.1} parent=1 // pred_check_branch
      %126 = sbr.rel (0) target = $region65
    $region64: #{_lambda_.1} parent=1 // pred_region
      _
    $region65: #{_lambda_.1} parent=1 // pred_fallthru
      _
    // Predicated region
    $region66: #{_lambda_.1} parent=1 // pred_check
      _
    $region67: #{_lambda_.1} parent=1 // pred_check_branch
      %128 = sbr.rel (0) target = $region69
    $region68: #{_lambda_.1} parent=1 // pred_region
      _
    $region69: #{_lambda_.1} parent=1 // pred_fallthru
      _
    // Predicated region
    $region70: #{_lambda_.1} parent=1 // pred_check
      _
    $region71: #{_lambda_.1} parent=1 // pred_check_branch
      %130 = sbr.rel (0) target = $region73
    $region72: #{_lambda_.1} parent=1 // pred_region
      _
    $region73: #{_lambda_.1} parent=1 // pred_fallthru
      _
    // Predicated region
    $region74: #{_lambda_.1} parent=1 // pred_check
      _
    $region75: #{_lambda_.1} parent=1 // pred_check_branch
      %132 = sbr.rel (0) target = $region77
    $region76: #{_lambda_.1} parent=1 // pred_region
      _
    $region77: #{_lambda_.1} parent=1 // pred_fallthru
      _
    // Predicated region
    $region78: #{_lambda_.1} parent=1 // pred_check
      _
    $region79: #{_lambda_.1} parent=1 // pred_check_branch
      %134 = sbr.rel (0) target = $region81
    $region80: #{_lambda_.1} parent=1 // pred_region
      _
    $region81: #{_lambda_.1} parent=1 // pred_fallthru
      _
    // Predicated region
    $region82: #{_lambda_.1} parent=1 // pred_check
      _
    $region83: #{_lambda_.1} parent=1 // pred_check_branch
      %136 = sbr.rel (0) target = $region85
    $region84: #{_lambda_.1} parent=1 // pred_region
      _
    $region85: #{_lambda_.1} parent=1 // pred_fallthru
      _
    // Predicated region
    $region86: #{_lambda_.1} parent=1 // pred_check
      _
    $region87: #{_lambda_.1} parent=1 // pred_check_branch
      %138 = sbr.rel (0) target = $region89
    $region88: #{_lambda_.1} parent=1 // pred_region
      _
    $region89: #{_lambda_.1} parent=1 // pred_fallthru
      _
    // Predicated region
    $region90: #{_lambda_.1} parent=1 // pred_check
      _
    $region91: #{_lambda_.1} parent=1 // pred_check_branch
      %140 = sbr.rel (0) target = $region93
    $region92: #{_lambda_.1} parent=1 // pred_region
      _
    $region93: #{_lambda_.1} parent=1 // pred_fallthru
      _
    // Predicated region
    $region94: #{_lambda_.1} parent=1 // pred_check
      _
    $region95: #{_lambda_.1} parent=1 // pred_check_branch
      %142 = sbr.rel (0) target = $region97
    $region96: #{_lambda_.1} parent=1 // pred_region
      _
    $region97: #{_lambda_.1} parent=1 // pred_fallthru
      _
    // Predicated region
    $region98: #{_lambda_.1} parent=1 // pred_check
      _
    $region99: #{_lambda_.1} parent=1 // pred_check_branch
      %144 = sbr.rel (0) target = $region101
    $region100: #{_lambda_.1} parent=1 // pred_region
      _
    $region101: #{_lambda_.1} parent=1 // pred_fallthru
      _
    // Predicated region
    $region102: #{_lambda_.1} parent=1 // pred_check
      _
    $region103: #{_lambda_.1} parent=1 // pred_check_branch
      %146 = sbr.rel (0) target = $region105
    $region104: #{_lambda_.1} parent=1 // pred_region
      _
    $region105: #{_lambda_.1} parent=1 // pred_fallthru
      _
    // Predicated region
    $region106: #{_lambda_.1} parent=1 // pred_check
      _
    $region107: #{_lambda_.1} parent=1 // pred_check_branch
      %148 = sbr.rel (0) target = $region109
    $region108: #{_lambda_.1} parent=1 // pred_region
      _
    $region109: #{_lambda_.1} parent=1 // pred_fallthru
      _
    // Predicated region
    $region110: #{_lambda_.1} parent=1 // pred_check
      _
    $region111: #{_lambda_.1} parent=1 // pred_check_branch
      %150 = sbr.rel (0) target = $region113
    $region112: #{_lambda_.1} parent=1 // pred_region
      _
    $region113: #{_lambda_.1} parent=1 // pred_fallthru
      _
    // Predicated region
    $region114: #{_lambda_.1} parent=1 // pred_check
      _
    $region115: #{_lambda_.1} parent=1 // pred_check_branch
      %152 = sbr.rel (0) target = $region117
    $region116: #{_lambda_.1} parent=1 // pred_region
      _
    $region117: #{_lambda_.1} parent=1 // pred_fallthru
      _
    // Predicated region
    $region118: #{_lambda_.1} parent=1 // pred_check
      _
    $region119: #{_lambda_.1} parent=1 // pred_check_branch
      %154 = sbr.rel (0) target = $region121
    $region120: #{_lambda_.1} parent=1 // pred_region
      _
    $region121: #{_lambda_.1} parent=1 // pred_fallthru
      _
    // Predicated region
    $region122: #{_lambda_.1} parent=1 // pred_check
      _
    $region123: #{_lambda_.1} parent=1 // pred_check_branch
      %156 = sbr.rel (0) target = $region125
    $region124: #{_lambda_.1} parent=1 // pred_region
      _
    $region125: #{_lambda_.1} parent=1 // pred_fallthru
      _
    // Predicated region
    $region126: #{_lambda_.1} parent=1 // pred_check
      _
    $region127: #{_lambda_.1} parent=1 // pred_check_branch
      %158 = sbr.rel (0) target = $region129
    $region128: #{_lambda_.1} parent=1 // pred_region
      _
    $region129: #{_lambda_.1} parent=1 // pred_fallthru
      _
    // Predicated region
    $region130: #{_lambda_.1} parent=1 // pred_check
      _
    $region131: #{_lambda_.1} parent=1 // pred_check_branch
      %160 = sbr.rel (0) target = $region133
    $region132: #{_lambda_.1} parent=1 // pred_region
      _
    $region133: #{_lambda_.1} parent=1 // pred_fallthru
      _
    // Predicated region
    $region134: #{_lambda_.1} parent=1 // pred_check
      _
    $region135: #{_lambda_.1} parent=1 // pred_check_branch
      %162 = sbr.rel (0) target = $region137
    $region136: #{_lambda_.1} parent=1 // pred_region
      _
    $region137: #{_lambda_.1} parent=1 // pred_fallthru
      _
    // Predicated region
    $region138: #{_lambda_.1} parent=1 // pred_check
      _
    $region139: #{_lambda_.1} parent=1 // pred_check_branch
      %164 = sbr.rel (0) target = $region141
    $region140: #{_lambda_.1} parent=1 // pred_region
      _
    $region141: #{_lambda_.1} parent=1 // pred_fallthru
      _
    // Predicated region
    $region142: #{_lambda_.1} parent=1 // pred_check
      _
    $region143: #{_lambda_.1} parent=1 // pred_check_branch
      %166 = sbr.rel (0) target = $region145
    $region144: #{_lambda_.1} parent=1 // pred_region
      _
    $region145: #{_lambda_.1} parent=1 // pred_fallthru
      _
    // Predicated region
    $region146: #{_lambda_.1} parent=1 // pred_check
      _
    $region147: #{_lambda_.1} parent=1 // pred_check_branch
      %168 = sbr.rel (0) target = $region149
    $region148: #{_lambda_.1} parent=1 // pred_region
      _
    $region149: #{_lambda_.1} parent=1 // pred_fallthru
      _
    // Predicated region
    $region150: #{_lambda_.1} parent=1 // pred_check
      _
    $region151: #{_lambda_.1} parent=1 // pred_check_branch
      %170 = sbr.rel (0) target = $region153
    $region152: #{_lambda_.1} parent=1 // pred_region
      _
    $region153: #{_lambda_.1} parent=1 // pred_fallthru
      _
    // Predicated region
    $region154: #{_lambda_.1} parent=1 // pred_check
      _
    $region155: #{_lambda_.1} parent=1 // pred_check_branch
      %172 = sbr.rel (0) target = $region157
    $region156: #{_lambda_.1} parent=1 // pred_region
      _
    $region157: #{_lambda_.1} parent=1 // pred_fallthru
      _
    // Predicated region
    $region158: #{_lambda_.1} parent=1 // pred_check
      _
    $region159: #{_lambda_.1} parent=1 // pred_check_branch
      %174 = sbr.rel (0) target = $region161
    $region160: #{_lambda_.1} parent=1 // pred_region
      _
    $region161: #{_lambda_.1} parent=1 // pred_fallthru
      _
    // Predicated region
    $region162: #{_lambda_.1} parent=1 // pred_check
      _
    $region163: #{_lambda_.1} parent=1 // pred_check_branch
      %176 = sbr.rel (0) target = $region165
    $region164: #{_lambda_.1} parent=1 // pred_region
      _
    $region165: #{_lambda_.1} parent=1 // pred_fallthru
      _
    // Predicated region
    $region166: #{_lambda_.1} parent=1 // pred_check
      _
    $region167: #{_lambda_.1} parent=1 // pred_check_branch
      %178 = sbr.rel (0) target = $region169
    $region168: #{_lambda_.1} parent=1 // pred_region
      _
    $region169: #{_lambda_.1} parent=1 // pred_fallthru
      _
    // Predicated region
    $region170: #{_lambda_.1} parent=1 // pred_check
      _
    $region171: #{_lambda_.1} parent=1 // pred_check_branch
      %180 = sbr.rel (0) target = $region173
    $region172: #{_lambda_.1} parent=1 // pred_region
      _
    $region173: #{_lambda_.1} parent=1 // pred_fallthru
      _
    // Predicated region
    $region174: #{_lambda_.1} parent=1 // pred_check
      _
    $region175: #{_lambda_.1} parent=1 // pred_check_branch
      %182 = sbr.rel (0) target = $region177
    $region176: #{_lambda_.1} parent=1 // pred_region
      _
    $region177: #{_lambda_.1} parent=1 // pred_fallthru
      _
    %v183 = vlaneseq
    %v184 = vand.u32 %v183, 127
    %v185 = vld [vmem:[%s1] sm:$0xff]
    %v186 = vld [vmem:[%s1 + $0x8] sm:$0xff]
    %187 = vset.pattern.permute.xlu0 0
    %188 = vperm.xlu0 %187, %v185
    %v189 = vpop.permute.xlu0 %188
    %190 = vset.pattern.permute.xlu0 0
    %191 = vperm.xlu0 %190, %v186
    %v192 = vpop.permute.xlu0 %191
    %vm193 = vcmp.eq.s32.totalorder %v184, %v189
    %vm194 = vcmp.eq.s32.totalorder %v184, %v192
    %v195 = vsel %vm193, 1, 0
    %v196 = vsel %vm194, 1, 0
    %v197 = vcvt.s32.f32 %v195
    %v198 = vcvt.s32.f32 %v196
    %v199 = vld [vmem:[%s7] sm:$0xff]
    %v200 = vld [vmem:[%s7 + $0x8] sm:$0xff]
    %v201 = vld [vmem:[%s7 + $0x10] sm:$0xff]
    %v202 = vld [vmem:[%s7 + $0x18] sm:$0x3f]
    %v203 = vld [vmem:[%s3] sm:$0xff]
    %v204 = vld [vmem:[%s3 + $0x8] sm:$0xff]
    %205 = vset.pattern.permute.xlu0 0
    %206 = vperm.xlu0 %205, %v203
    %v207 = vpop.permute.xlu0 %206
    %208 = vset.pattern.permute.xlu0 0
    %209 = vperm.xlu0 %208, %v204
    %v210 = vpop.permute.xlu0 %209
    %vm211 = vcmp.eq.s32.totalorder %v184, %v207
    %vm212 = vcmp.eq.s32.totalorder %v184, %v210
    %v213 = vsel %vm211, 1, 0
    %v214 = vsel %vm212, 1, 0
    %v215 = vcvt.s32.f32 %v213
    %v216 = vcvt.s32.f32 %v214
    %v217 = vld [vmem:[%s9] sm:$0xff]
    %v218 = vld [vmem:[%s9 + $0x8] sm:$0xff]
    %vm219 = vcmask 130048
    %v221 = vsel %vm219, %v215, 0
    %v224 = vsel %vm219, %v216, 0
    %226 = vmatprep.subr.mxu0 0.0
    %227 = vmatpush1.msra.mxu0 %v217
    %228 = vmatprep.subr.mxu0 0.0
    %229 = vmatpush1.msra.mxu0 %v218
    %230 = vmatprep.subr.mxu0 0.0
    %231 = vmatpush1.msra.mxu0 0.0
    %232 = vmatprep.subr.mxu0 0.0
    %233 = vmatpush1.msra.mxu0 0.0
    %234 = vmatprep.subr.mxu0 0.0
    %235 = vmatpush1.msra.mxu0 0.0
    %236 = vmatprep.subr.mxu0 0.0
    %237 = vmatpush1.msra.mxu0 0.0
    %238 = vmatprep.subr.mxu0 0.0
    %239 = vmatpush1.msra.mxu0 0.0
    %240 = vmatprep.subr.mxu0 0.0
    %241 = vmatpush1.msra.mxu0 0.0
    %242 = vmatprep.subr.mxu0 0.0
    %243 = vmatpush1.msra.mxu0 0.0
    %244 = vmatprep.subr.mxu0 0.0
    %245 = vmatpush1.msra.mxu0 0.0
    %246 = vmatprep.subr.mxu0 0.0
    %247 = vmatpush1.msra.mxu0 0.0
    %248 = vmatprep.subr.mxu0 0.0
    %249 = vmatpush1.msra.mxu0 0.0
    %250 = vmatprep.subr.mxu0 0.0
    %251 = vmatpush1.msra.mxu0 0.0
    %252 = vmatprep.subr.mxu0 0.0
    %253 = vmatpush1.msra.mxu0 0.0
    %254 = vmatprep.subr.mxu0 0.0
    %255 = vmatpush1.msra.mxu0 0.0
    %256 = vmatprep.subr.mxu0 0.0
    %257 = vmatpush1.msra.mxu0 0.0
    %258 = vmatprep.subr.mxu0 0.0
    %259 = vmatpush1.msra.mxu0 0.0
    %260 = vmatprep.subr.mxu0 0.0
    %261 = vmatpush1.msra.mxu0 0.0
    %262 = vmatprep.subr.mxu0 0.0
    %263 = vmatpush1.msra.mxu0 0.0
    %264 = vmatprep.subr.mxu0 0.0
    %265 = vmatpush1.msra.mxu0 0.0
    %266 = vmatprep.subr.mxu0 0.0
    %267 = vmatpush1.msra.mxu0 0.0
    %268 = vmatprep.subr.mxu0 0.0
    %269 = vmatpush1.msra.mxu0 0.0
    %270 = vmatprep.subr.mxu0 0.0
    %271 = vmatpush1.msra.mxu0 0.0
    %272 = vmatprep.subr.mxu0 0.0
    %273 = vmatpush1.msra.mxu0 0.0
    %274 = vmatprep.subr.mxu0 0.0
    %275 = vmatpush1.msra.mxu0 0.0
    %276 = vmatprep.subr.mxu0 0.0
    %277 = vmatpush1.msra.mxu0 0.0
    %278 = vmatprep.subr.mxu0 0.0
    %279 = vmatpush1.msra.mxu0 0.0
    %280 = vmatprep.subr.mxu0 0.0
    %281 = vmatpush1.msra.mxu0 0.0
    %282 = vmatprep.subr.mxu0 0.0
    %283 = vmatpush1.msra.mxu0 0.0
    %284 = vmatprep.subr.mxu0 0.0
    %285 = vmatpush1.msra.mxu0 0.0
    %286 = vmatprep.subr.mxu0 0.0
    %287 = vmatpush1.msra.mxu0 0.0
    %288 = vmatprep.subr.mxu0 0.0
    %289 = vmatpush1.msra.mxu0 0.0
    %290 = vmatprep.mubr.f32.mxu0 0.0
    %291 = vmatmul.mubr.f32.gmra.mrb[0].mxu0 %v221
    %v292 = vpop.f32.mrb[0].mxu0
    %v293 = vadd.f32 0.0, %v292
    %v294 = vpop.f32.mrb[0].mxu0
    %295 = vmatprep.mubr.f32.mxu0 0.0
    %296 = vmatmul.mubr.f32.gmra.mrb[0].mxu0 %v224
    %v297 = vpop.f32.mrb[0].mxu0
    %v298 = vadd.f32 0.0, %v297
    %v299 = vpop.f32.mrb[0].mxu0
    %300 = vdwg.mxu0
    %vm301 = vcmask 244736
    %v303 = vsel %vm301, %v197, 0
    %v306 = vsel %vm301, %v198, 0
    %vm308 = vcmask 1045504
    %v310 = vsel %vm308, %v202, 0
    %312 = vmatprep.subr.mxu0 0.0
    %313 = vmatpush1.msra.mxu0 %v199
    %314 = vmatprep.subr.mxu0 0.0
    %315 = vmatpush1.msra.mxu0 %v200
    %316 = vmatprep.subr.mxu0 0.0
    %317 = vmatpush1.msra.mxu0 %v201
    %318 = vmatprep.subr.mxu0 0.0
    %319 = vmatpush1.msra.mxu0 %v310
    %320 = vmatprep.subr.mxu0 0.0
    %321 = vmatpush1.msra.mxu0 0.0
    %322 = vmatprep.subr.mxu0 0.0
    %323 = vmatpush1.msra.mxu0 0.0
    %324 = vmatprep.subr.mxu0 0.0
    %325 = vmatpush1.msra.mxu0 0.0
    %326 = vmatprep.subr.mxu0 0.0
    %327 = vmatpush1.msra.mxu0 0.0
    %328 = vmatprep.subr.mxu0 0.0
    %329 = vmatpush1.msra.mxu0 0.0
    %330 = vmatprep.subr.mxu0 0.0
    %331 = vmatpush1.msra.mxu0 0.0
    %332 = vmatprep.subr.mxu0 0.0
    %333 = vmatpush1.msra.mxu0 0.0
    %334 = vmatprep.subr.mxu0 0.0
    %335 = vmatpush1.msra.mxu0 0.0
    %336 = vmatprep.subr.mxu0 0.0
    %337 = vmatpush1.msra.mxu0 0.0
    %338 = vmatprep.subr.mxu0 0.0
    %339 = vmatpush1.msra.mxu0 0.0
    %340 = vmatprep.subr.mxu0 0.0
    %341 = vmatpush1.msra.mxu0 0.0
    %342 = vmatprep.subr.mxu0 0.0
    %343 = vmatpush1.msra.mxu0 0.0
    %344 = vmatprep.subr.mxu0 0.0
    %345 = vmatpush1.msra.mxu0 0.0
    %346 = vmatprep.subr.mxu0 0.0
    %347 = vmatpush1.msra.mxu0 0.0
    %348 = vmatprep.subr.mxu0 0.0
    %349 = vmatpush1.msra.mxu0 0.0
    %350 = vmatprep.subr.mxu0 0.0
    %351 = vmatpush1.msra.mxu0 0.0
    %352 = vmatprep.subr.mxu0 0.0
    %353 = vmatpush1.msra.mxu0 0.0
    %354 = vmatprep.subr.mxu0 0.0
    %355 = vmatpush1.msra.mxu0 0.0
    %356 = vmatprep.subr.mxu0 0.0
    %357 = vmatpush1.msra.mxu0 0.0
    %358 = vmatprep.subr.mxu0 0.0
    %359 = vmatpush1.msra.mxu0 0.0
    %360 = vmatprep.subr.mxu0 0.0
    %361 = vmatpush1.msra.mxu0 0.0
    %362 = vmatprep.subr.mxu0 0.0
    %363 = vmatpush1.msra.mxu0 0.0
    %364 = vmatprep.subr.mxu0 0.0
    %365 = vmatpush1.msra.mxu0 0.0
    %366 = vmatprep.subr.mxu0 0.0
    %367 = vmatpush1.msra.mxu0 0.0
    %368 = vmatprep.subr.mxu0 0.0
    %369 = vmatpush1.msra.mxu0 0.0
    %370 = vmatprep.subr.mxu0 0.0
    %371 = vmatpush1.msra.mxu0 0.0
    %372 = vmatprep.subr.mxu0 0.0
    %373 = vmatpush1.msra.mxu0 0.0
    %374 = vmatprep.subr.mxu0 0.0
    %375 = vmatpush1.msra.mxu0 0.0
    %376 = vmatprep.mubr.f32.mxu0 0.0
    %377 = vmatmul.mubr.f32.gmra.mrb[0].mxu0 %v303
    %v378 = vpop.f32.mrb[0].mxu0
    %v379 = vadd.f32 %v293, %v378
    %v380 = vpop.f32.mrb[0].mxu0
    %381 = vmatprep.mubr.f32.mxu0 0.0
    %382 = vmatmul.mubr.f32.gmra.mrb[0].mxu0 %v306
    %v383 = vpop.f32.mrb[0].mxu0
    %v384 = vadd.f32 %v298, %v383
    %v385 = vpop.f32.mrb[0].mxu0
    %386 = vdwg.mxu0
    %v387 = vld [vmem:[%s5] sm:$0xff]
    %v388 = vld [vmem:[%s5 + $0x8] sm:$0xff]
    %389 = vset.pattern.permute.xlu0 0
    %390 = vperm.xlu0 %389, %v387
    %v391 = vpop.permute.xlu0 %390
    %392 = vset.pattern.permute.xlu0 0
    %393 = vperm.xlu0 %392, %v388
    %v394 = vpop.permute.xlu0 %393
    %vm395 = vcmp.eq.s32.totalorder %v184, %v391
    %vm396 = vcmp.eq.s32.totalorder %v184, %v394
    %v397 = vsel %vm395, 1, 0
    %v398 = vsel %vm396, 1, 0
    %v399 = vcvt.s32.f32 %v397
    %v400 = vcvt.s32.f32 %v398
    %v401 = vld [vmem:[%s11] sm:$0x3]
    %vm402 = vcmask 15360
    %v404 = vsel %vm402, %v399, 0
    %v407 = vsel %vm402, %v400, 0
    %vm409 = vcmask 1041408
    %v411 = vsel %vm409, %v401, 0
    %413 = vmatprep.subr.mxu0 0.0
    %414 = vmatpush1.msra.mxu0 %v411
    %415 = vmatprep.subr.mxu0 0.0
    %416 = vmatpush1.msra.mxu0 0.0
    %417 = vmatprep.subr.mxu0 0.0
    %418 = vmatpush1.msra.mxu0 0.0
    %419 = vmatprep.subr.mxu0 0.0
    %420 = vmatpush1.msra.mxu0 0.0
    %421 = vmatprep.subr.mxu0 0.0
    %422 = vmatpush1.msra.mxu0 0.0
    %423 = vmatprep.subr.mxu0 0.0
    %424 = vmatpush1.msra.mxu0 0.0
    %425 = vmatprep.subr.mxu0 0.0
    %426 = vmatpush1.msra.mxu0 0.0
    %427 = vmatprep.subr.mxu0 0.0
    %428 = vmatpush1.msra.mxu0 0.0
    %429 = vmatprep.subr.mxu0 0.0
    %430 = vmatpush1.msra.mxu0 0.0
    %431 = vmatprep.subr.mxu0 0.0
    %432 = vmatpush1.msra.mxu0 0.0
    %433 = vmatprep.subr.mxu0 0.0
    %434 = vmatpush1.msra.mxu0 0.0
    %435 = vmatprep.subr.mxu0 0.0
    %436 = vmatpush1.msra.mxu0 0.0
    %437 = vmatprep.subr.mxu0 0.0
    %438 = vmatpush1.msra.mxu0 0.0
    %439 = vmatprep.subr.mxu0 0.0
    %440 = vmatpush1.msra.mxu0 0.0
    %441 = vmatprep.subr.mxu0 0.0
    %442 = vmatpush1.msra.mxu0 0.0
    %443 = vmatprep.subr.mxu0 0.0
    %444 = vmatpush1.msra.mxu0 0.0
    %445 = vmatprep.subr.mxu0 0.0
    %446 = vmatpush1.msra.mxu0 0.0
    %447 = vmatprep.subr.mxu0 0.0
    %448 = vmatpush1.msra.mxu0 0.0
    %449 = vmatprep.subr.mxu0 0.0
    %450 = vmatpush1.msra.mxu0 0.0
    %451 = vmatprep.subr.mxu0 0.0
    %452 = vmatpush1.msra.mxu0 0.0
    %453 = vmatprep.subr.mxu0 0.0
    %454 = vmatpush1.msra.mxu0 0.0
    %455 = vmatprep.subr.mxu0 0.0
    %456 = vmatpush1.msra.mxu0 0.0
    %457 = vmatprep.subr.mxu0 0.0
    %458 = vmatpush1.msra.mxu0 0.0
    %459 = vmatprep.subr.mxu0 0.0
    %460 = vmatpush1.msra.mxu0 0.0
    %461 = vmatprep.subr.mxu0 0.0
    %462 = vmatpush1.msra.mxu0 0.0
    %463 = vmatprep.subr.mxu0 0.0
    %464 = vmatpush1.msra.mxu0 0.0
    %465 = vmatprep.subr.mxu0 0.0
    %466 = vmatpush1.msra.mxu0 0.0
    %467 = vmatprep.subr.mxu0 0.0
    %468 = vmatpush1.msra.mxu0 0.0
    %469 = vmatprep.subr.mxu0 0.0
    %470 = vmatpush1.msra.mxu0 0.0
    %471 = vmatprep.subr.mxu0 0.0
    %472 = vmatpush1.msra.mxu0 0.0
    %473 = vmatprep.subr.mxu0 0.0
    %474 = vmatpush1.msra.mxu0 0.0
    %475 = vmatprep.subr.mxu0 0.0
    %476 = vmatpush1.msra.mxu0 0.0
    %477 = vmatprep.mubr.f32.mxu0 0.0
    %478 = vmatmul.mubr.f32.gmra.mrb[0].mxu0 %v404
    %v479 = vpop.f32.mrb[0].mxu0
    %v480 = vadd.f32 0.0, %v479
    %v481 = vpop.f32.mrb[0].mxu0
    %482 = vmatprep.mubr.f32.mxu0 0.0
    %483 = vmatmul.mubr.f32.gmra.mrb[0].mxu0 %v407
    %v484 = vpop.f32.mrb[0].mxu0
    %v485 = vadd.f32 0.0, %v484
    %v486 = vpop.f32.mrb[0].mxu0
    %487 = vdwg.mxu0
    %v488 = vadd.f32 %v379, %v480
    %v489 = vadd.f32 %v384, %v485
    %v490 = vld [vmem:[%s13] sm:$0x1]
    %v491 = vld [vmem:[%s15] sm:$0x1]
    %vm492 = vcmask 261120
    %v493 = vsel %vm492, %v488, 0.0
    %494 = vadd.xlane.f32.xlu0 %v493
    %v495 = vpop.xlane.xlu0 %494
    %v496 = vsel %vm492, %v489, 0.0
    %497 = vadd.xlane.f32.xlu0 %v496
    %v498 = vpop.xlane.xlu0 %497
    %v499 = vrcp.pop 32.0
    %v500 = vmul.f32 %v495, %v499
    %v501 = vmul.f32 %v498, %v499
    %v502 = vsub.f32 %v488, %v500
    %v503 = vsub.f32 %v489, %v501
    %v504 = vmul.f32 %v502, %v502
    %v505 = vmul.f32 %v503, %v503
    %v506 = vsel %vm492, %v504, 0.0
    %507 = vadd.xlane.f32.xlu0 %v506
    %v508 = vpop.xlane.xlu0 %507
    %v509 = vsel %vm492, %v505, 0.0
    %510 = vadd.xlane.f32.xlu0 %v509
    %v511 = vpop.xlane.xlu0 %510
    %v512 = vmul.f32 %v508, %v499
    %v513 = vmul.f32 %v511, %v499
    %v514 = vadd.f32 %v512, 1e-12
    %v515 = vadd.f32 %v513, 1e-12
    %v516 = vrsqrt.pop %v514
    %v517 = vrsqrt.pop %v515
    %v518 = vmul.f32 %v502, %v516
    %v519 = vmul.f32 %v503, %v517
    %v521 = vlaneseq
    %v522 = vshrl.u32 %v521, 7
    %v523 = vsub.s32 0, %v522
    %v524 = vrot.slane %v490, %v523
    %v526 = vmul.f32 %v518, %v524
    %v527 = vmul.f32 %v519, %v524
    %v529 = vlaneseq
    %v530 = vshrl.u32 %v529, 7
    %v531 = vsub.s32 0, %v530
    %v532 = vrot.slane %v491, %v531
    %v534 = vadd.f32 %v526, %v532
    %v535 = vadd.f32 %v527, %v532
    %v536 = vld [vmem:[%s17] sm:$0xff]
    %v537 = vld [vmem:[%s17 + $0x8] sm:$0xff]
    %v538 = vld [vmem:[%s17 + $0x10] sm:$0xff]
    %v539 = vld [vmem:[%s17 + $0x18] sm:$0xff]
    %v540 = vld [vmem:[%s17 + $0x20] sm:$0xff]
    %v541 = vld [vmem:[%s17 + $0x28] sm:$0xff]
    %v542 = vld [vmem:[%s17 + $0x30] sm:$0xff]
    %v543 = vld [vmem:[%s17 + $0x38] sm:$0xff]
    %v544 = vld [vmem:[%s23] sm:$0x1]
    %v545 = vld [vmem:[%s23 + $0x1] sm:$0x1]
    %v548 = vlaneseq
    %v549 = vshrl.u32 %v548, 7
    %v550 = vsub.s32 0, %v549
    %v551 = vrot.slane %v544, %v550
    %v552 = vlaneseq
    %v553 = vshrl.u32 %v552, 7
    %v554 = vsub.s32 0, %v553
    %v555 = vrot.slane %v545, %v554
    %v559 = vsel %vm492, %v534, 0
    %561 = vmatprep.subr.mxu0 0.0
    %562 = vmatpush1.msra.mxu0 %v536
    %563 = vmatprep.subr.mxu0 0.0
    %564 = vmatpush1.msra.mxu0 %v537
    %565 = vmatprep.subr.mxu0 0.0
    %566 = vmatpush1.msra.mxu0 %v538
    %567 = vmatprep.subr.mxu0 0.0
    %568 = vmatpush1.msra.mxu0 %v539
    %569 = vmatprep.subr.mxu0 0.0
    %570 = vmatpush1.msra.mxu0 0.0
    %571 = vmatprep.subr.mxu0 0.0
    %572 = vmatpush1.msra.mxu0 0.0
    %573 = vmatprep.subr.mxu0 0.0
    %574 = vmatpush1.msra.mxu0 0.0
    %575 = vmatprep.subr.mxu0 0.0
    %576 = vmatpush1.msra.mxu0 0.0
    %577 = vmatprep.subr.mxu0 0.0
    %578 = vmatpush1.msra.mxu0 0.0
    %579 = vmatprep.subr.mxu0 0.0
    %580 = vmatpush1.msra.mxu0 0.0
    %581 = vmatprep.subr.mxu0 0.0
    %582 = vmatpush1.msra.mxu0 0.0
    %583 = vmatprep.subr.mxu0 0.0
    %584 = vmatpush1.msra.mxu0 0.0
    %585 = vmatprep.subr.mxu0 0.0
    %586 = vmatpush1.msra.mxu0 0.0
    %587 = vmatprep.subr.mxu0 0.0
    %588 = vmatpush1.msra.mxu0 0.0
    %589 = vmatprep.subr.mxu0 0.0
    %590 = vmatpush1.msra.mxu0 0.0
    %591 = vmatprep.subr.mxu0 0.0
    %592 = vmatpush1.msra.mxu0 0.0
    %593 = vmatprep.subr.mxu0 0.0
    %594 = vmatpush1.msra.mxu0 0.0
    %595 = vmatprep.subr.mxu0 0.0
    %596 = vmatpush1.msra.mxu0 0.0
    %597 = vmatprep.subr.mxu0 0.0
    %598 = vmatpush1.msra.mxu0 0.0
    %599 = vmatprep.subr.mxu0 0.0
    %600 = vmatpush1.msra.mxu0 0.0
    %601 = vmatprep.subr.mxu0 0.0
    %602 = vmatpush1.msra.mxu0 0.0
    %603 = vmatprep.subr.mxu0 0.0
    %604 = vmatpush1.msra.mxu0 0.0
    %605 = vmatprep.subr.mxu0 0.0
    %606 = vmatpush1.msra.mxu0 0.0
    %607 = vmatprep.subr.mxu0 0.0
    %608 = vmatpush1.msra.mxu0 0.0
    %609 = vmatprep.subr.mxu0 0.0
    %610 = vmatpush1.msra.mxu0 0.0
    %611 = vmatprep.subr.mxu0 0.0
    %612 = vmatpush1.msra.mxu0 0.0
    %613 = vmatprep.subr.mxu0 0.0
    %614 = vmatpush1.msra.mxu0 0.0
    %615 = vmatprep.subr.mxu0 0.0
    %616 = vmatpush1.msra.mxu0 0.0
    %617 = vmatprep.subr.mxu0 0.0
    %618 = vmatpush1.msra.mxu0 0.0
    %619 = vmatprep.subr.mxu0 0.0
    %620 = vmatpush1.msra.mxu0 0.0
    %621 = vmatprep.subr.mxu0 0.0
    %622 = vmatpush1.msra.mxu0 0.0
    %623 = vmatprep.subr.mxu0 0.0
    %624 = vmatpush1.msra.mxu0 0.0
    %625 = vmatprep.mubr.f32.mxu0 0.0
    %626 = vmatmul.mubr.f32.gmra.mrb[0].mxu0 %v559
    %v627 = vpop.f32.mrb[0].mxu0
    %v628 = vadd.f32 %v551, %v627
    %v629 = vpop.f32.mrb[0].mxu0
    %630 = vdwg.mxu0
    %631 = vmatprep.subr.mxu0 0.0
    %632 = vmatpush1.msra.mxu0 %v540
    %633 = vmatprep.subr.mxu0 0.0
    %634 = vmatpush1.msra.mxu0 %v541
    %635 = vmatprep.subr.mxu0 0.0
    %636 = vmatpush1.msra.mxu0 %v542
    %637 = vmatprep.subr.mxu0 0.0
    %638 = vmatpush1.msra.mxu0 %v543
    %639 = vmatprep.subr.mxu0 0.0
    %640 = vmatpush1.msra.mxu0 0.0
    %641 = vmatprep.subr.mxu0 0.0
    %642 = vmatpush1.msra.mxu0 0.0
    %643 = vmatprep.subr.mxu0 0.0
    %644 = vmatpush1.msra.mxu0 0.0
    %645 = vmatprep.subr.mxu0 0.0
    %646 = vmatpush1.msra.mxu0 0.0
    %647 = vmatprep.subr.mxu0 0.0
    %648 = vmatpush1.msra.mxu0 0.0
    %649 = vmatprep.subr.mxu0 0.0
    %650 = vmatpush1.msra.mxu0 0.0
    %651 = vmatprep.subr.mxu0 0.0
    %652 = vmatpush1.msra.mxu0 0.0
    %653 = vmatprep.subr.mxu0 0.0
    %654 = vmatpush1.msra.mxu0 0.0
    %655 = vmatprep.subr.mxu0 0.0
    %656 = vmatpush1.msra.mxu0 0.0
    %657 = vmatprep.subr.mxu0 0.0
    %658 = vmatpush1.msra.mxu0 0.0
    %659 = vmatprep.subr.mxu0 0.0
    %660 = vmatpush1.msra.mxu0 0.0
    %661 = vmatprep.subr.mxu0 0.0
    %662 = vmatpush1.msra.mxu0 0.0
    %663 = vmatprep.subr.mxu0 0.0
    %664 = vmatpush1.msra.mxu0 0.0
    %665 = vmatprep.subr.mxu0 0.0
    %666 = vmatpush1.msra.mxu0 0.0
    %667 = vmatprep.subr.mxu0 0.0
    %668 = vmatpush1.msra.mxu0 0.0
    %669 = vmatprep.subr.mxu0 0.0
    %670 = vmatpush1.msra.mxu0 0.0
    %671 = vmatprep.subr.mxu0 0.0
    %672 = vmatpush1.msra.mxu0 0.0
    %673 = vmatprep.subr.mxu0 0.0
    %674 = vmatpush1.msra.mxu0 0.0
    %675 = vmatprep.subr.mxu0 0.0
    %676 = vmatpush1.msra.mxu0 0.0
    %677 = vmatprep.subr.mxu0 0.0
    %678 = vmatpush1.msra.mxu0 0.0
    %679 = vmatprep.subr.mxu0 0.0
    %680 = vmatpush1.msra.mxu0 0.0
    %681 = vmatprep.subr.mxu0 0.0
    %682 = vmatpush1.msra.mxu0 0.0
    %683 = vmatprep.subr.mxu0 0.0
    %684 = vmatpush1.msra.mxu0 0.0
    %685 = vmatprep.subr.mxu0 0.0
    %686 = vmatpush1.msra.mxu0 0.0
    %687 = vmatprep.subr.mxu0 0.0
    %688 = vmatpush1.msra.mxu0 0.0
    %689 = vmatprep.subr.mxu0 0.0
    %690 = vmatpush1.msra.mxu0 0.0
    %691 = vmatprep.subr.mxu0 0.0
    %692 = vmatpush1.msra.mxu0 0.0
    %693 = vmatprep.subr.mxu0 0.0
    %694 = vmatpush1.msra.mxu0 0.0
    %695 = vmatprep.mubr.f32.mxu0 0.0
    %696 = vmatmul.mubr.f32.gmra.mrb[0].mxu0 %v559
    %v697 = vpop.f32.mrb[0].mxu0
    %v698 = vadd.f32 %v555, %v697
    %v699 = vpop.f32.mrb[0].mxu0
    %700 = vdwg.mxu0
    %v702 = vsel %vm492, %v535, 0
    %704 = vmatprep.subr.mxu0 0.0
    %705 = vmatpush1.msra.mxu0 %v536
    %706 = vmatprep.subr.mxu0 0.0
    %707 = vmatpush1.msra.mxu0 %v537
    %708 = vmatprep.subr.mxu0 0.0
    %709 = vmatpush1.msra.mxu0 %v538
    %710 = vmatprep.subr.mxu0 0.0
    %711 = vmatpush1.msra.mxu0 %v539
    %712 = vmatprep.subr.mxu0 0.0
    %713 = vmatpush1.msra.mxu0 0.0
    %714 = vmatprep.subr.mxu0 0.0
    %715 = vmatpush1.msra.mxu0 0.0
    %716 = vmatprep.subr.mxu0 0.0
    %717 = vmatpush1.msra.mxu0 0.0
    %718 = vmatprep.subr.mxu0 0.0
    %719 = vmatpush1.msra.mxu0 0.0
    %720 = vmatprep.subr.mxu0 0.0
    %721 = vmatpush1.msra.mxu0 0.0
    %722 = vmatprep.subr.mxu0 0.0
    %723 = vmatpush1.msra.mxu0 0.0
    %724 = vmatprep.subr.mxu0 0.0
    %725 = vmatpush1.msra.mxu0 0.0
    %726 = vmatprep.subr.mxu0 0.0
    %727 = vmatpush1.msra.mxu0 0.0
    %728 = vmatprep.subr.mxu0 0.0
    %729 = vmatpush1.msra.mxu0 0.0
    %730 = vmatprep.subr.mxu0 0.0
    %731 = vmatpush1.msra.mxu0 0.0
    %732 = vmatprep.subr.mxu0 0.0
    %733 = vmatpush1.msra.mxu0 0.0
    %734 = vmatprep.subr.mxu0 0.0
    %735 = vmatpush1.msra.mxu0 0.0
    %736 = vmatprep.subr.mxu0 0.0
    %737 = vmatpush1.msra.mxu0 0.0
    %738 = vmatprep.subr.mxu0 0.0
    %739 = vmatpush1.msra.mxu0 0.0
    %740 = vmatprep.subr.mxu0 0.0
    %741 = vmatpush1.msra.mxu0 0.0
    %742 = vmatprep.subr.mxu0 0.0
    %743 = vmatpush1.msra.mxu0 0.0
    %744 = vmatprep.subr.mxu0 0.0
    %745 = vmatpush1.msra.mxu0 0.0
    %746 = vmatprep.subr.mxu0 0.0
    %747 = vmatpush1.msra.mxu0 0.0
    %748 = vmatprep.subr.mxu0 0.0
    %749 = vmatpush1.msra.mxu0 0.0
    %750 = vmatprep.subr.mxu0 0.0
    %751 = vmatpush1.msra.mxu0 0.0
    %752 = vmatprep.subr.mxu0 0.0
    %753 = vmatpush1.msra.mxu0 0.0
    %754 = vmatprep.subr.mxu0 0.0
    %755 = vmatpush1.msra.mxu0 0.0
    %756 = vmatprep.subr.mxu0 0.0
    %757 = vmatpush1.msra.mxu0 0.0
    %758 = vmatprep.subr.mxu0 0.0
    %759 = vmatpush1.msra.mxu0 0.0
    %760 = vmatprep.subr.mxu0 0.0
    %761 = vmatpush1.msra.mxu0 0.0
    %762 = vmatprep.subr.mxu0 0.0
    %763 = vmatpush1.msra.mxu0 0.0
    %764 = vmatprep.subr.mxu0 0.0
    %765 = vmatpush1.msra.mxu0 0.0
    %766 = vmatprep.subr.mxu0 0.0
    %767 = vmatpush1.msra.mxu0 0.0
    %768 = vmatprep.mubr.f32.mxu0 0.0
    %769 = vmatmul.mubr.f32.gmra.mrb[0].mxu0 %v702
    %v770 = vpop.f32.mrb[0].mxu0
    %v771 = vadd.f32 %v551, %v770
    %v772 = vpop.f32.mrb[0].mxu0
    %773 = vdwg.mxu0
    %774 = vmatprep.subr.mxu0 0.0
    %775 = vmatpush1.msra.mxu0 %v540
    %776 = vmatprep.subr.mxu0 0.0
    %777 = vmatpush1.msra.mxu0 %v541
    %778 = vmatprep.subr.mxu0 0.0
    %779 = vmatpush1.msra.mxu0 %v542
    %780 = vmatprep.subr.mxu0 0.0
    %781 = vmatpush1.msra.mxu0 %v543
    %782 = vmatprep.subr.mxu0 0.0
    %783 = vmatpush1.msra.mxu0 0.0
    %784 = vmatprep.subr.mxu0 0.0
    %785 = vmatpush1.msra.mxu0 0.0
    %786 = vmatprep.subr.mxu0 0.0
    %787 = vmatpush1.msra.mxu0 0.0
    %788 = vmatprep.subr.mxu0 0.0
    %789 = vmatpush1.msra.mxu0 0.0
    %790 = vmatprep.subr.mxu0 0.0
    %791 = vmatpush1.msra.mxu0 0.0
    %792 = vmatprep.subr.mxu0 0.0
    %793 = vmatpush1.msra.mxu0 0.0
    %794 = vmatprep.subr.mxu0 0.0
    %795 = vmatpush1.msra.mxu0 0.0
    %796 = vmatprep.subr.mxu0 0.0
    %797 = vmatpush1.msra.mxu0 0.0
    %798 = vmatprep.subr.mxu0 0.0
    %799 = vmatpush1.msra.mxu0 0.0
    %800 = vmatprep.subr.mxu0 0.0
    %801 = vmatpush1.msra.mxu0 0.0
    %802 = vmatprep.subr.mxu0 0.0
    %803 = vmatpush1.msra.mxu0 0.0
    %804 = vmatprep.subr.mxu0 0.0
    %805 = vmatpush1.msra.mxu0 0.0
    %806 = vmatprep.subr.mxu0 0.0
    %807 = vmatpush1.msra.mxu0 0.0
    %808 = vmatprep.subr.mxu0 0.0
    %809 = vmatpush1.msra.mxu0 0.0
    %810 = vmatprep.subr.mxu0 0.0
    %811 = vmatpush1.msra.mxu0 0.0
    %812 = vmatprep.subr.mxu0 0.0
    %813 = vmatpush1.msra.mxu0 0.0
    %814 = vmatprep.subr.mxu0 0.0
    %815 = vmatpush1.msra.mxu0 0.0
    %816 = vmatprep.subr.mxu0 0.0
    %817 = vmatpush1.msra.mxu0 0.0
    %818 = vmatprep.subr.mxu0 0.0
    %819 = vmatpush1.msra.mxu0 0.0
    %820 = vmatprep.subr.mxu0 0.0
    %821 = vmatpush1.msra.mxu0 0.0
    %822 = vmatprep.subr.mxu0 0.0
    %823 = vmatpush1.msra.mxu0 0.0
    %824 = vmatprep.subr.mxu0 0.0
    %825 = vmatpush1.msra.mxu0 0.0
    %826 = vmatprep.subr.mxu0 0.0
    %827 = vmatpush1.msra.mxu0 0.0
    %828 = vmatprep.subr.mxu0 0.0
    %829 = vmatpush1.msra.mxu0 0.0
    %830 = vmatprep.subr.mxu0 0.0
    %831 = vmatpush1.msra.mxu0 0.0
    %832 = vmatprep.subr.mxu0 0.0
    %833 = vmatpush1.msra.mxu0 0.0
    %834 = vmatprep.subr.mxu0 0.0
    %835 = vmatpush1.msra.mxu0 0.0
    %836 = vmatprep.subr.mxu0 0.0
    %837 = vmatpush1.msra.mxu0 0.0
    %838 = vmatprep.mubr.f32.mxu0 0.0
    %839 = vmatmul.mubr.f32.gmra.mrb[0].mxu0 %v702
    %v840 = vpop.f32.mrb[0].mxu0
    %v841 = vadd.f32 %v555, %v840
    %v842 = vpop.f32.mrb[0].mxu0
    %843 = vdwg.mxu0
    %v844 = vld [vmem:[%s19] sm:$0xff]
    %v845 = vld [vmem:[%s19 + $0x8] sm:$0xff]
    %v846 = vld [vmem:[%s19 + $0x10] sm:$0xff]
    %v847 = vld [vmem:[%s19 + $0x18] sm:$0xff]
    %v848 = vld [vmem:[%s19 + $0x20] sm:$0xff]
    %v849 = vld [vmem:[%s19 + $0x28] sm:$0xff]
    %v850 = vld [vmem:[%s19 + $0x30] sm:$0xff]
    %v851 = vld [vmem:[%s19 + $0x38] sm:$0xff]
    %v852 = vld [vmem:[%s25] sm:$0x1]
    %v853 = vld [vmem:[%s25 + $0x1] sm:$0x1]
    %v856 = vlaneseq
    %v857 = vshrl.u32 %v856, 7
    %v858 = vsub.s32 0, %v857
    %v859 = vrot.slane %v852, %v858
    %v860 = vlaneseq
    %v861 = vshrl.u32 %v860, 7
    %v862 = vsub.s32 0, %v861
    %v863 = vrot.slane %v853, %v862
    %866 = vmatprep.subr.mxu0 0.0
    %867 = vmatpush1.msra.mxu0 %v844
    %868 = vmatprep.subr.mxu0 0.0
    %869 = vmatpush1.msra.mxu0 %v845
    %870 = vmatprep.subr.mxu0 0.0
    %871 = vmatpush1.msra.mxu0 %v846
    %872 = vmatprep.subr.mxu0 0.0
    %873 = vmatpush1.msra.mxu0 %v847
    %874 = vmatprep.subr.mxu0 0.0
    %875 = vmatpush1.msra.mxu0 0.0
    %876 = vmatprep.subr.mxu0 0.0
    %877 = vmatpush1.msra.mxu0 0.0
    %878 = vmatprep.subr.mxu0 0.0
    %879 = vmatpush1.msra.mxu0 0.0
    %880 = vmatprep.subr.mxu0 0.0
    %881 = vmatpush1.msra.mxu0 0.0
    %882 = vmatprep.subr.mxu0 0.0
    %883 = vmatpush1.msra.mxu0 0.0
    %884 = vmatprep.subr.mxu0 0.0
    %885 = vmatpush1.msra.mxu0 0.0
    %886 = vmatprep.subr.mxu0 0.0
    %887 = vmatpush1.msra.mxu0 0.0
    %888 = vmatprep.subr.mxu0 0.0
    %889 = vmatpush1.msra.mxu0 0.0
    %890 = vmatprep.subr.mxu0 0.0
    %891 = vmatpush1.msra.mxu0 0.0
    %892 = vmatprep.subr.mxu0 0.0
    %893 = vmatpush1.msra.mxu0 0.0
    %894 = vmatprep.subr.mxu0 0.0
    %895 = vmatpush1.msra.mxu0 0.0
    %896 = vmatprep.subr.mxu0 0.0
    %897 = vmatpush1.msra.mxu0 0.0
    %898 = vmatprep.subr.mxu0 0.0
    %899 = vmatpush1.msra.mxu0 0.0
    %900 = vmatprep.subr.mxu0 0.0
    %901 = vmatpush1.msra.mxu0 0.0
    %902 = vmatprep.subr.mxu0 0.0
    %903 = vmatpush1.msra.mxu0 0.0
    %904 = vmatprep.subr.mxu0 0.0
    %905 = vmatpush1.msra.mxu0 0.0
    %906 = vmatprep.subr.mxu0 0.0
    %907 = vmatpush1.msra.mxu0 0.0
    %908 = vmatprep.subr.mxu0 0.0
    %909 = vmatpush1.msra.mxu0 0.0
    %910 = vmatprep.subr.mxu0 0.0
    %911 = vmatpush1.msra.mxu0 0.0
    %912 = vmatprep.subr.mxu0 0.0
    %913 = vmatpush1.msra.mxu0 0.0
    %914 = vmatprep.subr.mxu0 0.0
    %915 = vmatpush1.msra.mxu0 0.0
    %916 = vmatprep.subr.mxu0 0.0
    %917 = vmatpush1.msra.mxu0 0.0
    %918 = vmatprep.subr.mxu0 0.0
    %919 = vmatpush1.msra.mxu0 0.0
    %920 = vmatprep.subr.mxu0 0.0
    %921 = vmatpush1.msra.mxu0 0.0
    %922 = vmatprep.subr.mxu0 0.0
    %923 = vmatpush1.msra.mxu0 0.0
    %924 = vmatprep.subr.mxu0 0.0
    %925 = vmatpush1.msra.mxu0 0.0
    %926 = vmatprep.subr.mxu0 0.0
    %927 = vmatpush1.msra.mxu0 0.0
    %928 = vmatprep.subr.mxu0 0.0
    %929 = vmatpush1.msra.mxu0 0.0
    %930 = vmatprep.mubr.f32.mxu0 0.0
    %931 = vmatmul.mubr.f32.gmra.mrb[0].mxu0 %v559
    %v932 = vpop.f32.mrb[0].mxu0
    %v933 = vadd.f32 %v859, %v932
    %v934 = vpop.f32.mrb[0].mxu0
    %935 = vdwg.mxu0
    %936 = vmatprep.subr.mxu0 0.0
    %937 = vmatpush1.msra.mxu0 %v848
    %938 = vmatprep.subr.mxu0 0.0
    %939 = vmatpush1.msra.mxu0 %v849
    %940 = vmatprep.subr.mxu0 0.0
    %941 = vmatpush1.msra.mxu0 %v850
    %942 = vmatprep.subr.mxu0 0.0
    %943 = vmatpush1.msra.mxu0 %v851
    %944 = vmatprep.subr.mxu0 0.0
    %945 = vmatpush1.msra.mxu0 0.0
    %946 = vmatprep.subr.mxu0 0.0
    %947 = vmatpush1.msra.mxu0 0.0
    %948 = vmatprep.subr.mxu0 0.0
    %949 = vmatpush1.msra.mxu0 0.0
    %950 = vmatprep.subr.mxu0 0.0
    %951 = vmatpush1.msra.mxu0 0.0
    %952 = vmatprep.subr.mxu0 0.0
    %953 = vmatpush1.msra.mxu0 0.0
    %954 = vmatprep.subr.mxu0 0.0
    %955 = vmatpush1.msra.mxu0 0.0
    %956 = vmatprep.subr.mxu0 0.0
    %957 = vmatpush1.msra.mxu0 0.0
    %958 = vmatprep.subr.mxu0 0.0
    %959 = vmatpush1.msra.mxu0 0.0
    %960 = vmatprep.subr.mxu0 0.0
    %961 = vmatpush1.msra.mxu0 0.0
    %962 = vmatprep.subr.mxu0 0.0
    %963 = vmatpush1.msra.mxu0 0.0
    %964 = vmatprep.subr.mxu0 0.0
    %965 = vmatpush1.msra.mxu0 0.0
    %966 = vmatprep.subr.mxu0 0.0
    %967 = vmatpush1.msra.mxu0 0.0
    %968 = vmatprep.subr.mxu0 0.0
    %969 = vmatpush1.msra.mxu0 0.0
    %970 = vmatprep.subr.mxu0 0.0
    %971 = vmatpush1.msra.mxu0 0.0
    %972 = vmatprep.subr.mxu0 0.0
    %973 = vmatpush1.msra.mxu0 0.0
    %974 = vmatprep.subr.mxu0 0.0
    %975 = vmatpush1.msra.mxu0 0.0
    %976 = vmatprep.subr.mxu0 0.0
    %977 = vmatpush1.msra.mxu0 0.0
    %978 = vmatprep.subr.mxu0 0.0
    %979 = vmatpush1.msra.mxu0 0.0
    %980 = vmatprep.subr.mxu0 0.0
    %981 = vmatpush1.msra.mxu0 0.0
    %982 = vmatprep.subr.mxu0 0.0
    %983 = vmatpush1.msra.mxu0 0.0
    %984 = vmatprep.subr.mxu0 0.0
    %985 = vmatpush1.msra.mxu0 0.0
    %986 = vmatprep.subr.mxu0 0.0
    %987 = vmatpush1.msra.mxu0 0.0
    %988 = vmatprep.subr.mxu0 0.0
    %989 = vmatpush1.msra.mxu0 0.0
    %990 = vmatprep.subr.mxu0 0.0
    %991 = vmatpush1.msra.mxu0 0.0
    %992 = vmatprep.subr.mxu0 0.0
    %993 = vmatpush1.msra.mxu0 0.0
    %994 = vmatprep.subr.mxu0 0.0
    %995 = vmatpush1.msra.mxu0 0.0
    %996 = vmatprep.subr.mxu0 0.0
    %997 = vmatpush1.msra.mxu0 0.0
    %998 = vmatprep.subr.mxu0 0.0
    %999 = vmatpush1.msra.mxu0 0.0
    %1000 = vmatprep.mubr.f32.mxu0 0.0
    %1001 = vmatmul.mubr.f32.gmra.mrb[0].mxu0 %v559
    %v1002 = vpop.f32.mrb[0].mxu0
    %v1003 = vadd.f32 %v863, %v1002
    %v1004 = vpop.f32.mrb[0].mxu0
    %1005 = vdwg.mxu0
    %1006 = vmatprep.subr.mxu0 0.0
    %1007 = vmatpush1.msra.mxu0 %v844
    %1008 = vmatprep.subr.mxu0 0.0
    %1009 = vmatpush1.msra.mxu0 %v845
    %1010 = vmatprep.subr.mxu0 0.0
    %1011 = vmatpush1.msra.mxu0 %v846
    %1012 = vmatprep.subr.mxu0 0.0
    %1013 = vmatpush1.msra.mxu0 %v847
    %1014 = vmatprep.subr.mxu0 0.0
    %1015 = vmatpush1.msra.mxu0 0.0
    %1016 = vmatprep.subr.mxu0 0.0
    %1017 = vmatpush1.msra.mxu0 0.0
    %1018 = vmatprep.subr.mxu0 0.0
    %1019 = vmatpush1.msra.mxu0 0.0
    %1020 = vmatprep.subr.mxu0 0.0
    %1021 = vmatpush1.msra.mxu0 0.0
    %1022 = vmatprep.subr.mxu0 0.0
    %1023 = vmatpush1.msra.mxu0 0.0
    %1024 = vmatprep.subr.mxu0 0.0
    %1025 = vmatpush1.msra.mxu0 0.0
    %1026 = vmatprep.subr.mxu0 0.0
    %1027 = vmatpush1.msra.mxu0 0.0
    %1028 = vmatprep.subr.mxu0 0.0
    %1029 = vmatpush1.msra.mxu0 0.0
    %1030 = vmatprep.subr.mxu0 0.0
    %1031 = vmatpush1.msra.mxu0 0.0
    %1032 = vmatprep.subr.mxu0 0.0
    %1033 = vmatpush1.msra.mxu0 0.0
    %1034 = vmatprep.subr.mxu0 0.0
    %1035 = vmatpush1.msra.mxu0 0.0
    %1036 = vmatprep.subr.mxu0 0.0
    %1037 = vmatpush1.msra.mxu0 0.0
    %1038 = vmatprep.subr.mxu0 0.0
    %1039 = vmatpush1.msra.mxu0 0.0
    %1040 = vmatprep.subr.mxu0 0.0
    %1041 = vmatpush1.msra.mxu0 0.0
    %1042 = vmatprep.subr.mxu0 0.0
    %1043 = vmatpush1.msra.mxu0 0.0
    %1044 = vmatprep.subr.mxu0 0.0
    %1045 = vmatpush1.msra.mxu0 0.0
    %1046 = vmatprep.subr.mxu0 0.0
    %1047 = vmatpush1.msra.mxu0 0.0
    %1048 = vmatprep.subr.mxu0 0.0
    %1049 = vmatpush1.msra.mxu0 0.0
    %1050 = vmatprep.subr.mxu0 0.0
    %1051 = vmatpush1.msra.mxu0 0.0
    %1052 = vmatprep.subr.mxu0 0.0
    %1053 = vmatpush1.msra.mxu0 0.0
    %1054 = vmatprep.subr.mxu0 0.0
    %1055 = vmatpush1.msra.mxu0 0.0
    %1056 = vmatprep.subr.mxu0 0.0
    %1057 = vmatpush1.msra.mxu0 0.0
    %1058 = vmatprep.subr.mxu0 0.0
    %1059 = vmatpush1.msra.mxu0 0.0
    %1060 = vmatprep.subr.mxu0 0.0
    %1061 = vmatpush1.msra.mxu0 0.0
    %1062 = vmatprep.subr.mxu0 0.0
    %1063 = vmatpush1.msra.mxu0 0.0
    %1064 = vmatprep.subr.mxu0 0.0
    %1065 = vmatpush1.msra.mxu0 0.0
    %1066 = vmatprep.subr.mxu0 0.0
    %1067 = vmatpush1.msra.mxu0 0.0
    %1068 = vmatprep.subr.mxu0 0.0
    %1069 = vmatpush1.msra.mxu0 0.0
    %1070 = vmatprep.mubr.f32.mxu0 0.0
    %1071 = vmatmul.mubr.f32.gmra.mrb[0].mxu0 %v702
    %v1072 = vpop.f32.mrb[0].mxu0
    %v1073 = vadd.f32 %v859, %v1072
    %v1074 = vpop.f32.mrb[0].mxu0
    %1075 = vdwg.mxu0
    %1076 = vmatprep.subr.mxu0 0.0
    %1077 = vmatpush1.msra.mxu0 %v848
    %1078 = vmatprep.subr.mxu0 0.0
    %1079 = vmatpush1.msra.mxu0 %v849
    %1080 = vmatprep.subr.mxu0 0.0
    %1081 = vmatpush1.msra.mxu0 %v850
    %1082 = vmatprep.subr.mxu0 0.0
    %1083 = vmatpush1.msra.mxu0 %v851
    %1084 = vmatprep.subr.mxu0 0.0
    %1085 = vmatpush1.msra.mxu0 0.0
    %1086 = vmatprep.subr.mxu0 0.0
    %1087 = vmatpush1.msra.mxu0 0.0
    %1088 = vmatprep.subr.mxu0 0.0
    %1089 = vmatpush1.msra.mxu0 0.0
    %1090 = vmatprep.subr.mxu0 0.0
    %1091 = vmatpush1.msra.mxu0 0.0
    %1092 = vmatprep.subr.mxu0 0.0
    %1093 = vmatpush1.msra.mxu0 0.0
    %1094 = vmatprep.subr.mxu0 0.0
    %1095 = vmatpush1.msra.mxu0 0.0
    %1096 = vmatprep.subr.mxu0 0.0
    %1097 = vmatpush1.msra.mxu0 0.0
    %1098 = vmatprep.subr.mxu0 0.0
    %1099 = vmatpush1.msra.mxu0 0.0
    %1100 = vmatprep.subr.mxu0 0.0
    %1101 = vmatpush1.msra.mxu0 0.0
    %1102 = vmatprep.subr.mxu0 0.0
    %1103 = vmatpush1.msra.mxu0 0.0
    %1104 = vmatprep.subr.mxu0 0.0
    %1105 = vmatpush1.msra.mxu0 0.0
    %1106 = vmatprep.subr.mxu0 0.0
    %1107 = vmatpush1.msra.mxu0 0.0
    %1108 = vmatprep.subr.mxu0 0.0
    %1109 = vmatpush1.msra.mxu0 0.0
    %1110 = vmatprep.subr.mxu0 0.0
    %1111 = vmatpush1.msra.mxu0 0.0
    %1112 = vmatprep.subr.mxu0 0.0
    %1113 = vmatpush1.msra.mxu0 0.0
    %1114 = vmatprep.subr.mxu0 0.0
    %1115 = vmatpush1.msra.mxu0 0.0
    %1116 = vmatprep.subr.mxu0 0.0
    %1117 = vmatpush1.msra.mxu0 0.0
    %1118 = vmatprep.subr.mxu0 0.0
    %1119 = vmatpush1.msra.mxu0 0.0
    %1120 = vmatprep.subr.mxu0 0.0
    %1121 = vmatpush1.msra.mxu0 0.0
    %1122 = vmatprep.subr.mxu0 0.0
    %1123 = vmatpush1.msra.mxu0 0.0
    %1124 = vmatprep.subr.mxu0 0.0
    %1125 = vmatpush1.msra.mxu0 0.0
    %1126 = vmatprep.subr.mxu0 0.0
    %1127 = vmatpush1.msra.mxu0 0.0
    %1128 = vmatprep.subr.mxu0 0.0
    %1129 = vmatpush1.msra.mxu0 0.0
    %1130 = vmatprep.subr.mxu0 0.0
    %1131 = vmatpush1.msra.mxu0 0.0
    %1132 = vmatprep.subr.mxu0 0.0
    %1133 = vmatpush1.msra.mxu0 0.0
    %1134 = vmatprep.subr.mxu0 0.0
    %1135 = vmatpush1.msra.mxu0 0.0
    %1136 = vmatprep.subr.mxu0 0.0
    %1137 = vmatpush1.msra.mxu0 0.0
    %1138 = vmatprep.subr.mxu0 0.0
    %1139 = vmatpush1.msra.mxu0 0.0
    %1140 = vmatprep.mubr.f32.mxu0 0.0
    %1141 = vmatmul.mubr.f32.gmra.mrb[0].mxu0 %v702
    %v1142 = vpop.f32.mrb[0].mxu0
    %v1143 = vadd.f32 %v863, %v1142
    %v1144 = vpop.f32.mrb[0].mxu0
    %1145 = vdwg.mxu0
    %v1146 = vld [vmem:[%s21] sm:$0xff]
    %v1147 = vld [vmem:[%s21 + $0x8] sm:$0xff]
    %v1148 = vld [vmem:[%s21 + $0x10] sm:$0xff]
    %v1149 = vld [vmem:[%s21 + $0x18] sm:$0xff]
    %v1150 = vld [vmem:[%s21 + $0x20] sm:$0xff]
    %v1151 = vld [vmem:[%s21 + $0x28] sm:$0xff]
    %v1152 = vld [vmem:[%s21 + $0x30] sm:$0xff]
    %v1153 = vld [vmem:[%s21 + $0x38] sm:$0xff]
    %v1154 = vld [vmem:[%s27] sm:$0x1]
    %v1155 = vld [vmem:[%s27 + $0x1] sm:$0x1]
    %v1158 = vlaneseq
    %v1159 = vshrl.u32 %v1158, 7
    %v1160 = vsub.s32 0, %v1159
    %v1161 = vrot.slane %v1154, %v1160
    %v1162 = vlaneseq
    %v1163 = vshrl.u32 %v1162, 7
    %v1164 = vsub.s32 0, %v1163
    %v1165 = vrot.slane %v1155, %v1164
    %1168 = vmatprep.subr.mxu0 0.0
    %1169 = vmatpush1.msra.mxu0 %v1146
    %1170 = vmatprep.subr.mxu0 0.0
    %1171 = vmatpush1.msra.mxu0 %v1147
    %1172 = vmatprep.subr.mxu0 0.0
    %1173 = vmatpush1.msra.mxu0 %v1148
    %1174 = vmatprep.subr.mxu0 0.0
    %1175 = vmatpush1.msra.mxu0 %v1149
    %1176 = vmatprep.subr.mxu0 0.0
    %1177 = vmatpush1.msra.mxu0 0.0
    %1178 = vmatprep.subr.mxu0 0.0
    %1179 = vmatpush1.msra.mxu0 0.0
    %1180 = vmatprep.subr.mxu0 0.0
    %1181 = vmatpush1.msra.mxu0 0.0
    %1182 = vmatprep.subr.mxu0 0.0
    %1183 = vmatpush1.msra.mxu0 0.0
    %1184 = vmatprep.subr.mxu0 0.0
    %1185 = vmatpush1.msra.mxu0 0.0
    %1186 = vmatprep.subr.mxu0 0.0
    %1187 = vmatpush1.msra.mxu0 0.0
    %1188 = vmatprep.subr.mxu0 0.0
    %1189 = vmatpush1.msra.mxu0 0.0
    %1190 = vmatprep.subr.mxu0 0.0
    %1191 = vmatpush1.msra.mxu0 0.0
    %1192 = vmatprep.subr.mxu0 0.0
    %1193 = vmatpush1.msra.mxu0 0.0
    %1194 = vmatprep.subr.mxu0 0.0
    %1195 = vmatpush1.msra.mxu0 0.0
    %1196 = vmatprep.subr.mxu0 0.0
    %1197 = vmatpush1.msra.mxu0 0.0
    %1198 = vmatprep.subr.mxu0 0.0
    %1199 = vmatpush1.msra.mxu0 0.0
    %1200 = vmatprep.subr.mxu0 0.0
    %1201 = vmatpush1.msra.mxu0 0.0
    %1202 = vmatprep.subr.mxu0 0.0
    %1203 = vmatpush1.msra.mxu0 0.0
    %1204 = vmatprep.subr.mxu0 0.0
    %1205 = vmatpush1.msra.mxu0 0.0
    %1206 = vmatprep.subr.mxu0 0.0
    %1207 = vmatpush1.msra.mxu0 0.0
    %1208 = vmatprep.subr.mxu0 0.0
    %1209 = vmatpush1.msra.mxu0 0.0
    %1210 = vmatprep.subr.mxu0 0.0
    %1211 = vmatpush1.msra.mxu0 0.0
    %1212 = vmatprep.subr.mxu0 0.0
    %1213 = vmatpush1.msra.mxu0 0.0
    %1214 = vmatprep.subr.mxu0 0.0
    %1215 = vmatpush1.msra.mxu0 0.0
    %1216 = vmatprep.subr.mxu0 0.0
    %1217 = vmatpush1.msra.mxu0 0.0
    %1218 = vmatprep.subr.mxu0 0.0
    %1219 = vmatpush1.msra.mxu0 0.0
    %1220 = vmatprep.subr.mxu0 0.0
    %1221 = vmatpush1.msra.mxu0 0.0
    %1222 = vmatprep.subr.mxu0 0.0
    %1223 = vmatpush1.msra.mxu0 0.0
    %1224 = vmatprep.subr.mxu0 0.0
    %1225 = vmatpush1.msra.mxu0 0.0
    %1226 = vmatprep.subr.mxu0 0.0
    %1227 = vmatpush1.msra.mxu0 0.0
    %1228 = vmatprep.subr.mxu0 0.0
    %1229 = vmatpush1.msra.mxu0 0.0
    %1230 = vmatprep.subr.mxu0 0.0
    %1231 = vmatpush1.msra.mxu0 0.0
    %1232 = vmatprep.mubr.f32.mxu0 0.0
    %1233 = vmatmul.mubr.f32.gmra.mrb[0].mxu0 %v559
    %v1234 = vpop.f32.mrb[0].mxu0
    %v1235 = vadd.f32 %v1161, %v1234
    %v1236 = vpop.f32.mrb[0].mxu0
    %1237 = vdwg.mxu0
    %1238 = vmatprep.subr.mxu0 0.0
    %1239 = vmatpush1.msra.mxu0 %v1150
    %1240 = vmatprep.subr.mxu0 0.0
    %1241 = vmatpush1.msra.mxu0 %v1151
    %1242 = vmatprep.subr.mxu0 0.0
    %1243 = vmatpush1.msra.mxu0 %v1152
    %1244 = vmatprep.subr.mxu0 0.0
    %1245 = vmatpush1.msra.mxu0 %v1153
    %1246 = vmatprep.subr.mxu0 0.0
    %1247 = vmatpush1.msra.mxu0 0.0
    %1248 = vmatprep.subr.mxu0 0.0
    %1249 = vmatpush1.msra.mxu0 0.0
    %1250 = vmatprep.subr.mxu0 0.0
    %1251 = vmatpush1.msra.mxu0 0.0
    %1252 = vmatprep.subr.mxu0 0.0
    %1253 = vmatpush1.msra.mxu0 0.0
    %1254 = vmatprep.subr.mxu0 0.0
    %1255 = vmatpush1.msra.mxu0 0.0
    %1256 = vmatprep.subr.mxu0 0.0
    %1257 = vmatpush1.msra.mxu0 0.0
    %1258 = vmatprep.subr.mxu0 0.0
    %1259 = vmatpush1.msra.mxu0 0.0
    %1260 = vmatprep.subr.mxu0 0.0
    %1261 = vmatpush1.msra.mxu0 0.0
    %1262 = vmatprep.subr.mxu0 0.0
    %1263 = vmatpush1.msra.mxu0 0.0
    %1264 = vmatprep.subr.mxu0 0.0
    %1265 = vmatpush1.msra.mxu0 0.0
    %1266 = vmatprep.subr.mxu0 0.0
    %1267 = vmatpush1.msra.mxu0 0.0
    %1268 = vmatprep.subr.mxu0 0.0
    %1269 = vmatpush1.msra.mxu0 0.0
    %1270 = vmatprep.subr.mxu0 0.0
    %1271 = vmatpush1.msra.mxu0 0.0
    %1272 = vmatprep.subr.mxu0 0.0
    %1273 = vmatpush1.msra.mxu0 0.0
    %1274 = vmatprep.subr.mxu0 0.0
    %1275 = vmatpush1.msra.mxu0 0.0
    %1276 = vmatprep.subr.mxu0 0.0
    %1277 = vmatpush1.msra.mxu0 0.0
    %1278 = vmatprep.subr.mxu0 0.0
    %1279 = vmatpush1.msra.mxu0 0.0
    %1280 = vmatprep.subr.mxu0 0.0
    %1281 = vmatpush1.msra.mxu0 0.0
    %1282 = vmatprep.subr.mxu0 0.0
    %1283 = vmatpush1.msra.mxu0 0.0
    %1284 = vmatprep.subr.mxu0 0.0
    %1285 = vmatpush1.msra.mxu0 0.0
    %1286 = vmatprep.subr.mxu0 0.0
    %1287 = vmatpush1.msra.mxu0 0.0
    %1288 = vmatprep.subr.mxu0 0.0
    %1289 = vmatpush1.msra.mxu0 0.0
    %1290 = vmatprep.subr.mxu0 0.0
    %1291 = vmatpush1.msra.mxu0 0.0
    %1292 = vmatprep.subr.mxu0 0.0
    %1293 = vmatpush1.msra.mxu0 0.0
    %1294 = vmatprep.subr.mxu0 0.0
    %1295 = vmatpush1.msra.mxu0 0.0
    %1296 = vmatprep.subr.mxu0 0.0
    %1297 = vmatpush1.msra.mxu0 0.0
    %1298 = vmatprep.subr.mxu0 0.0
    %1299 = vmatpush1.msra.mxu0 0.0
    %1300 = vmatprep.subr.mxu0 0.0
    %1301 = vmatpush1.msra.mxu0 0.0
    %1302 = vmatprep.mubr.f32.mxu0 0.0
    %1303 = vmatmul.mubr.f32.gmra.mrb[0].mxu0 %v559
    %v1304 = vpop.f32.mrb[0].mxu0
    %v1305 = vadd.f32 %v1165, %v1304
    %v1306 = vpop.f32.mrb[0].mxu0
    %1307 = vdwg.mxu0
    %1308 = vmatprep.subr.mxu0 0.0
    %1309 = vmatpush1.msra.mxu0 %v1146
    %1310 = vmatprep.subr.mxu0 0.0
    %1311 = vmatpush1.msra.mxu0 %v1147
    %1312 = vmatprep.subr.mxu0 0.0
    %1313 = vmatpush1.msra.mxu0 %v1148
    %1314 = vmatprep.subr.mxu0 0.0
    %1315 = vmatpush1.msra.mxu0 %v1149
    %1316 = vmatprep.subr.mxu0 0.0
    %1317 = vmatpush1.msra.mxu0 0.0
    %1318 = vmatprep.subr.mxu0 0.0
    %1319 = vmatpush1.msra.mxu0 0.0
    %1320 = vmatprep.subr.mxu0 0.0
    %1321 = vmatpush1.msra.mxu0 0.0
    %1322 = vmatprep.subr.mxu0 0.0
    %1323 = vmatpush1.msra.mxu0 0.0
    %1324 = vmatprep.subr.mxu0 0.0
    %1325 = vmatpush1.msra.mxu0 0.0
    %1326 = vmatprep.subr.mxu0 0.0
    %1327 = vmatpush1.msra.mxu0 0.0
    %1328 = vmatprep.subr.mxu0 0.0
    %1329 = vmatpush1.msra.mxu0 0.0
    %1330 = vmatprep.subr.mxu0 0.0
    %1331 = vmatpush1.msra.mxu0 0.0
    %1332 = vmatprep.subr.mxu0 0.0
    %1333 = vmatpush1.msra.mxu0 0.0
    %1334 = vmatprep.subr.mxu0 0.0
    %1335 = vmatpush1.msra.mxu0 0.0
    %1336 = vmatprep.subr.mxu0 0.0
    %1337 = vmatpush1.msra.mxu0 0.0
    %1338 = vmatprep.subr.mxu0 0.0
    %1339 = vmatpush1.msra.mxu0 0.0
    %1340 = vmatprep.subr.mxu0 0.0
    %1341 = vmatpush1.msra.mxu0 0.0
    %1342 = vmatprep.subr.mxu0 0.0
    %1343 = vmatpush1.msra.mxu0 0.0
    %1344 = vmatprep.subr.mxu0 0.0
    %1345 = vmatpush1.msra.mxu0 0.0
    %1346 = vmatprep.subr.mxu0 0.0
    %1347 = vmatpush1.msra.mxu0 0.0
    %1348 = vmatprep.subr.mxu0 0.0
    %1349 = vmatpush1.msra.mxu0 0.0
    %1350 = vmatprep.subr.mxu0 0.0
    %1351 = vmatpush1.msra.mxu0 0.0
    %1352 = vmatprep.subr.mxu0 0.0
    %1353 = vmatpush1.msra.mxu0 0.0
    %1354 = vmatprep.subr.mxu0 0.0
    %1355 = vmatpush1.msra.mxu0 0.0
    %1356 = vmatprep.subr.mxu0 0.0
    %1357 = vmatpush1.msra.mxu0 0.0
    %1358 = vmatprep.subr.mxu0 0.0
    %1359 = vmatpush1.msra.mxu0 0.0
    %1360 = vmatprep.subr.mxu0 0.0
    %1361 = vmatpush1.msra.mxu0 0.0
    %1362 = vmatprep.subr.mxu0 0.0
    %1363 = vmatpush1.msra.mxu0 0.0
    %1364 = vmatprep.subr.mxu0 0.0
    %1365 = vmatpush1.msra.mxu0 0.0
    %1366 = vmatprep.subr.mxu0 0.0
    %1367 = vmatpush1.msra.mxu0 0.0
    %1368 = vmatprep.subr.mxu0 0.0
    %1369 = vmatpush1.msra.mxu0 0.0
    %1370 = vmatprep.subr.mxu0 0.0
    %1371 = vmatpush1.msra.mxu0 0.0
    %1372 = vmatprep.mubr.f32.mxu0 0.0
    %1373 = vmatmul.mubr.f32.gmra.mrb[0].mxu0 %v702
    %v1374 = vpop.f32.mrb[0].mxu0
    %v1375 = vadd.f32 %v1161, %v1374
    %v1376 = vpop.f32.mrb[0].mxu0
    %1377 = vdwg.mxu0
    %1378 = vmatprep.subr.mxu0 0.0
    %1379 = vmatpush1.msra.mxu0 %v1150
    %1380 = vmatprep.subr.mxu0 0.0
    %1381 = vmatpush1.msra.mxu0 %v1151
    %1382 = vmatprep.subr.mxu0 0.0
    %1383 = vmatpush1.msra.mxu0 %v1152
    %1384 = vmatprep.subr.mxu0 0.0
    %1385 = vmatpush1.msra.mxu0 %v1153
    %1386 = vmatprep.subr.mxu0 0.0
    %1387 = vmatpush1.msra.mxu0 0.0
    %1388 = vmatprep.subr.mxu0 0.0
    %1389 = vmatpush1.msra.mxu0 0.0
    %1390 = vmatprep.subr.mxu0 0.0
    %1391 = vmatpush1.msra.mxu0 0.0
    %1392 = vmatprep.subr.mxu0 0.0
    %1393 = vmatpush1.msra.mxu0 0.0
    %1394 = vmatprep.subr.mxu0 0.0
    %1395 = vmatpush1.msra.mxu0 0.0
    %1396 = vmatprep.subr.mxu0 0.0
    %1397 = vmatpush1.msra.mxu0 0.0
    %1398 = vmatprep.subr.mxu0 0.0
    %1399 = vmatpush1.msra.mxu0 0.0
    %1400 = vmatprep.subr.mxu0 0.0
    %1401 = vmatpush1.msra.mxu0 0.0
    %1402 = vmatprep.subr.mxu0 0.0
    %1403 = vmatpush1.msra.mxu0 0.0
    %1404 = vmatprep.subr.mxu0 0.0
    %1405 = vmatpush1.msra.mxu0 0.0
    %1406 = vmatprep.subr.mxu0 0.0
    %1407 = vmatpush1.msra.mxu0 0.0
    %1408 = vmatprep.subr.mxu0 0.0
    %1409 = vmatpush1.msra.mxu0 0.0
    %1410 = vmatprep.subr.mxu0 0.0
    %1411 = vmatpush1.msra.mxu0 0.0
    %1412 = vmatprep.subr.mxu0 0.0
    %1413 = vmatpush1.msra.mxu0 0.0
    %1414 = vmatprep.subr.mxu0 0.0
    %1415 = vmatpush1.msra.mxu0 0.0
    %1416 = vmatprep.subr.mxu0 0.0
    %1417 = vmatpush1.msra.mxu0 0.0
    %1418 = vmatprep.subr.mxu0 0.0
    %1419 = vmatpush1.msra.mxu0 0.0
    %1420 = vmatprep.subr.mxu0 0.0
    %1421 = vmatpush1.msra.mxu0 0.0
    %1422 = vmatprep.subr.mxu0 0.0
    %1423 = vmatpush1.msra.mxu0 0.0
    %1424 = vmatprep.subr.mxu0 0.0
    %1425 = vmatpush1.msra.mxu0 0.0
    %1426 = vmatprep.subr.mxu0 0.0
    %1427 = vmatpush1.msra.mxu0 0.0
    %1428 = vmatprep.subr.mxu0 0.0
    %1429 = vmatpush1.msra.mxu0 0.0
    %1430 = vmatprep.subr.mxu0 0.0
    %1431 = vmatpush1.msra.mxu0 0.0
    %1432 = vmatprep.subr.mxu0 0.0
    %1433 = vmatpush1.msra.mxu0 0.0
    %1434 = vmatprep.subr.mxu0 0.0
    %1435 = vmatpush1.msra.mxu0 0.0
    %1436 = vmatprep.subr.mxu0 0.0
    %1437 = vmatpush1.msra.mxu0 0.0
    %1438 = vmatprep.subr.mxu0 0.0
    %1439 = vmatpush1.msra.mxu0 0.0
    %1440 = vmatprep.subr.mxu0 0.0
    %1441 = vmatpush1.msra.mxu0 0.0
    %1442 = vmatprep.mubr.f32.mxu0 0.0
    %1443 = vmatmul.mubr.f32.gmra.mrb[0].mxu0 %v702
    %v1444 = vpop.f32.mrb[0].mxu0
    %v1445 = vadd.f32 %v1165, %v1444
    %v1446 = vpop.f32.mrb[0].mxu0
    %1447 = vdwg.mxu0
    %v1449 = vsel %vm219, %v628, 0
    %v1452 = vsel %vm219, %v933, 0
    %1454 = vmatprep.subr.mxu0 0.0
    %1455 = vmatpush1.xpose.msra.mxu0 %v1452
    %1456 = vmatprep.subr.mxu0 0.0
    %1457 = vmatpush1.xpose.msra.mxu0 0.0
    %1458 = vmatprep.subr.mxu0 0.0
    %1459 = vmatpush1.xpose.msra.mxu0 0.0
    %1460 = vmatprep.subr.mxu0 0.0
    %1461 = vmatpush1.xpose.msra.mxu0 0.0
    %1462 = vmatprep.subr.mxu0 0.0
    %1463 = vmatpush1.xpose.msra.mxu0 0.0
    %1464 = vmatprep.subr.mxu0 0.0
    %1465 = vmatpush1.xpose.msra.mxu0 0.0
    %1466 = vmatprep.subr.mxu0 0.0
    %1467 = vmatpush1.xpose.msra.mxu0 0.0
    %1468 = vmatprep.subr.mxu0 0.0
    %1469 = vmatpush1.xpose.msra.mxu0 0.0
    %1470 = vmatprep.subr.mxu0 0.0
    %1471 = vmatpush1.xpose.msra.mxu0 0.0
    %1472 = vmatprep.subr.mxu0 0.0
    %1473 = vmatpush1.xpose.msra.mxu0 0.0
    %1474 = vmatprep.subr.mxu0 0.0
    %1475 = vmatpush1.xpose.msra.mxu0 0.0
    %1476 = vmatprep.subr.mxu0 0.0
    %1477 = vmatpush1.xpose.msra.mxu0 0.0
    %1478 = vmatprep.subr.mxu0 0.0
    %1479 = vmatpush1.xpose.msra.mxu0 0.0
    %1480 = vmatprep.subr.mxu0 0.0
    %1481 = vmatpush1.xpose.msra.mxu0 0.0
    %1482 = vmatprep.subr.mxu0 0.0
    %1483 = vmatpush1.xpose.msra.mxu0 0.0
    %1484 = vmatprep.subr.mxu0 0.0
    %1485 = vmatpush1.xpose.msra.mxu0 0.0
    %1486 = vmatprep.subr.mxu0 0.0
    %1487 = vmatpush1.xpose.msra.mxu0 0.0
    %1488 = vmatprep.subr.mxu0 0.0
    %1489 = vmatpush1.xpose.msra.mxu0 0.0
    %1490 = vmatprep.subr.mxu0 0.0
    %1491 = vmatpush1.xpose.msra.mxu0 0.0
    %1492 = vmatprep.subr.mxu0 0.0
    %1493 = vmatpush1.xpose.msra.mxu0 0.0
    %1494 = vmatprep.subr.mxu0 0.0
    %1495 = vmatpush1.xpose.msra.mxu0 0.0
    %1496 = vmatprep.subr.mxu0 0.0
    %1497 = vmatpush1.xpose.msra.mxu0 0.0
    %1498 = vmatprep.subr.mxu0 0.0
    %1499 = vmatpush1.xpose.msra.mxu0 0.0
    %1500 = vmatprep.subr.mxu0 0.0
    %1501 = vmatpush1.xpose.msra.mxu0 0.0
    %1502 = vmatprep.subr.mxu0 0.0
    %1503 = vmatpush1.xpose.msra.mxu0 0.0
    %1504 = vmatprep.subr.mxu0 0.0
    %1505 = vmatpush1.xpose.msra.mxu0 0.0
    %1506 = vmatprep.subr.mxu0 0.0
    %1507 = vmatpush1.xpose.msra.mxu0 0.0
    %1508 = vmatprep.subr.mxu0 0.0
    %1509 = vmatpush1.xpose.msra.mxu0 0.0
    %1510 = vmatprep.subr.mxu0 0.0
    %1511 = vmatpush1.xpose.msra.mxu0 0.0
    %1512 = vmatprep.subr.mxu0 0.0
    %1513 = vmatpush1.xpose.msra.mxu0 0.0
    %1514 = vmatprep.subr.mxu0 0.0
    %1515 = vmatpush1.xpose.msra.mxu0 0.0
    %1516 = vmatprep.subr.mxu0 0.0
    %1517 = vmatpush1.xpose.msra.mxu0 0.0
    %1518 = vmatprep.mubr.f32.mxu0 0.0
    %1519 = vmatmul.mubr.f32.gmra.mrb[0].mxu0 %v1449
    %v1520 = vpop.f32.mrb[0].mxu0
    %v1521 = vadd.f32 0.0, %v1520
    %v1522 = vpop.f32.mrb[0].mxu0
    %1523 = vdwg.mxu0
    %v1525 = vsel %vm219, %v698, 0
    %v1528 = vsel %vm219, %v1003, 0
    %1530 = vmatprep.subr.mxu0 0.0
    %1531 = vmatpush1.xpose.msra.mxu0 %v1528
    %1532 = vmatprep.subr.mxu0 0.0
    %1533 = vmatpush1.xpose.msra.mxu0 0.0
    %1534 = vmatprep.subr.mxu0 0.0
    %1535 = vmatpush1.xpose.msra.mxu0 0.0
    %1536 = vmatprep.subr.mxu0 0.0
    %1537 = vmatpush1.xpose.msra.mxu0 0.0
    %1538 = vmatprep.subr.mxu0 0.0
    %1539 = vmatpush1.xpose.msra.mxu0 0.0
    %1540 = vmatprep.subr.mxu0 0.0
    %1541 = vmatpush1.xpose.msra.mxu0 0.0
    %1542 = vmatprep.subr.mxu0 0.0
    %1543 = vmatpush1.xpose.msra.mxu0 0.0
    %1544 = vmatprep.subr.mxu0 0.0
    %1545 = vmatpush1.xpose.msra.mxu0 0.0
    %1546 = vmatprep.subr.mxu0 0.0
    %1547 = vmatpush1.xpose.msra.mxu0 0.0
    %1548 = vmatprep.subr.mxu0 0.0
    %1549 = vmatpush1.xpose.msra.mxu0 0.0
    %1550 = vmatprep.subr.mxu0 0.0
    %1551 = vmatpush1.xpose.msra.mxu0 0.0
    %1552 = vmatprep.subr.mxu0 0.0
    %1553 = vmatpush1.xpose.msra.mxu0 0.0
    %1554 = vmatprep.subr.mxu0 0.0
    %1555 = vmatpush1.xpose.msra.mxu0 0.0
    %1556 = vmatprep.subr.mxu0 0.0
    %1557 = vmatpush1.xpose.msra.mxu0 0.0
    %1558 = vmatprep.subr.mxu0 0.0
    %1559 = vmatpush1.xpose.msra.mxu0 0.0
    %1560 = vmatprep.subr.mxu0 0.0
    %1561 = vmatpush1.xpose.msra.mxu0 0.0
    %1562 = vmatprep.subr.mxu0 0.0
    %1563 = vmatpush1.xpose.msra.mxu0 0.0
    %1564 = vmatprep.subr.mxu0 0.0
    %1565 = vmatpush1.xpose.msra.mxu0 0.0
    %1566 = vmatprep.subr.mxu0 0.0
    %1567 = vmatpush1.xpose.msra.mxu0 0.0
    %1568 = vmatprep.subr.mxu0 0.0
    %1569 = vmatpush1.xpose.msra.mxu0 0.0
    %1570 = vmatprep.subr.mxu0 0.0
    %1571 = vmatpush1.xpose.msra.mxu0 0.0
    %1572 = vmatprep.subr.mxu0 0.0
    %1573 = vmatpush1.xpose.msra.mxu0 0.0
    %1574 = vmatprep.subr.mxu0 0.0
    %1575 = vmatpush1.xpose.msra.mxu0 0.0
    %1576 = vmatprep.subr.mxu0 0.0
    %1577 = vmatpush1.xpose.msra.mxu0 0.0
    %1578 = vmatprep.subr.mxu0 0.0
    %1579 = vmatpush1.xpose.msra.mxu0 0.0
    %1580 = vmatprep.subr.mxu0 0.0
    %1581 = vmatpush1.xpose.msra.mxu0 0.0
    %1582 = vmatprep.subr.mxu0 0.0
    %1583 = vmatpush1.xpose.msra.mxu0 0.0
    %1584 = vmatprep.subr.mxu0 0.0
    %1585 = vmatpush1.xpose.msra.mxu0 0.0
    %1586 = vmatprep.subr.mxu0 0.0
    %1587 = vmatpush1.xpose.msra.mxu0 0.0
    %1588 = vmatprep.subr.mxu0 0.0
    %1589 = vmatpush1.xpose.msra.mxu0 0.0
    %1590 = vmatprep.subr.mxu0 0.0
    %1591 = vmatpush1.xpose.msra.mxu0 0.0
    %1592 = vmatprep.subr.mxu0 0.0
    %1593 = vmatpush1.xpose.msra.mxu0 0.0
    %1594 = vmatprep.mubr.f32.mxu0 0.0
    %1595 = vmatmul.mubr.f32.gmra.mrb[0].mxu0 %v1525
    %v1596 = vpop.f32.mrb[0].mxu0
    %v1597 = vadd.f32 0.0, %v1596
    %v1598 = vpop.f32.mrb[0].mxu0
    %1599 = vdwg.mxu0
    %v1601 = vsel %vm219, %v771, 0
    %v1604 = vsel %vm219, %v1073, 0
    %1606 = vmatprep.subr.mxu0 0.0
    %1607 = vmatpush1.xpose.msra.mxu0 %v1604
    %1608 = vmatprep.subr.mxu0 0.0
    %1609 = vmatpush1.xpose.msra.mxu0 0.0
    %1610 = vmatprep.subr.mxu0 0.0
    %1611 = vmatpush1.xpose.msra.mxu0 0.0
    %1612 = vmatprep.subr.mxu0 0.0
    %1613 = vmatpush1.xpose.msra.mxu0 0.0
    %1614 = vmatprep.subr.mxu0 0.0
    %1615 = vmatpush1.xpose.msra.mxu0 0.0
    %1616 = vmatprep.subr.mxu0 0.0
    %1617 = vmatpush1.xpose.msra.mxu0 0.0
    %1618 = vmatprep.subr.mxu0 0.0
    %1619 = vmatpush1.xpose.msra.mxu0 0.0
    %1620 = vmatprep.subr.mxu0 0.0
    %1621 = vmatpush1.xpose.msra.mxu0 0.0
    %1622 = vmatprep.subr.mxu0 0.0
    %1623 = vmatpush1.xpose.msra.mxu0 0.0
    %1624 = vmatprep.subr.mxu0 0.0
    %1625 = vmatpush1.xpose.msra.mxu0 0.0
    %1626 = vmatprep.subr.mxu0 0.0
    %1627 = vmatpush1.xpose.msra.mxu0 0.0
    %1628 = vmatprep.subr.mxu0 0.0
    %1629 = vmatpush1.xpose.msra.mxu0 0.0
    %1630 = vmatprep.subr.mxu0 0.0
    %1631 = vmatpush1.xpose.msra.mxu0 0.0
    %1632 = vmatprep.subr.mxu0 0.0
    %1633 = vmatpush1.xpose.msra.mxu0 0.0
    %1634 = vmatprep.subr.mxu0 0.0
    %1635 = vmatpush1.xpose.msra.mxu0 0.0
    %1636 = vmatprep.subr.mxu0 0.0
    %1637 = vmatpush1.xpose.msra.mxu0 0.0
    %1638 = vmatprep.subr.mxu0 0.0
    %1639 = vmatpush1.xpose.msra.mxu0 0.0
    %1640 = vmatprep.subr.mxu0 0.0
    %1641 = vmatpush1.xpose.msra.mxu0 0.0
    %1642 = vmatprep.subr.mxu0 0.0
    %1643 = vmatpush1.xpose.msra.mxu0 0.0
    %1644 = vmatprep.subr.mxu0 0.0
    %1645 = vmatpush1.xpose.msra.mxu0 0.0
    %1646 = vmatprep.subr.mxu0 0.0
    %1647 = vmatpush1.xpose.msra.mxu0 0.0
    %1648 = vmatprep.subr.mxu0 0.0
    %1649 = vmatpush1.xpose.msra.mxu0 0.0
    %1650 = vmatprep.subr.mxu0 0.0
    %1651 = vmatpush1.xpose.msra.mxu0 0.0
    %1652 = vmatprep.subr.mxu0 0.0
    %1653 = vmatpush1.xpose.msra.mxu0 0.0
    %1654 = vmatprep.subr.mxu0 0.0
    %1655 = vmatpush1.xpose.msra.mxu0 0.0
    %1656 = vmatprep.subr.mxu0 0.0
    %1657 = vmatpush1.xpose.msra.mxu0 0.0
    %1658 = vmatprep.subr.mxu0 0.0
    %1659 = vmatpush1.xpose.msra.mxu0 0.0
    %1660 = vmatprep.subr.mxu0 0.0
    %1661 = vmatpush1.xpose.msra.mxu0 0.0
    %1662 = vmatprep.subr.mxu0 0.0
    %1663 = vmatpush1.xpose.msra.mxu0 0.0
    %1664 = vmatprep.subr.mxu0 0.0
    %1665 = vmatpush1.xpose.msra.mxu0 0.0
    %1666 = vmatprep.subr.mxu0 0.0
    %1667 = vmatpush1.xpose.msra.mxu0 0.0
    %1668 = vmatprep.subr.mxu0 0.0
    %1669 = vmatpush1.xpose.msra.mxu0 0.0
    %1670 = vmatprep.mubr.f32.mxu0 0.0
    %1671 = vmatmul.mubr.f32.gmra.mrb[0].mxu0 %v1601
    %v1672 = vpop.f32.mrb[0].mxu0
    %v1673 = vadd.f32 0.0, %v1672
    %v1674 = vpop.f32.mrb[0].mxu0
    %1675 = vdwg.mxu0
    %v1677 = vsel %vm219, %v841, 0
    %v1680 = vsel %vm219, %v1143, 0
    %1682 = vmatprep.subr.mxu0 0.0
    %1683 = vmatpush1.xpose.msra.mxu0 %v1680
    %1684 = vmatprep.subr.mxu0 0.0
    %1685 = vmatpush1.xpose.msra.mxu0 0.0
    %1686 = vmatprep.subr.mxu0 0.0
    %1687 = vmatpush1.xpose.msra.mxu0 0.0
    %1688 = vmatprep.subr.mxu0 0.0
    %1689 = vmatpush1.xpose.msra.mxu0 0.0
    %1690 = vmatprep.subr.mxu0 0.0
    %1691 = vmatpush1.xpose.msra.mxu0 0.0
    %1692 = vmatprep.subr.mxu0 0.0
    %1693 = vmatpush1.xpose.msra.mxu0 0.0
    %1694 = vmatprep.subr.mxu0 0.0
    %1695 = vmatpush1.xpose.msra.mxu0 0.0
    %1696 = vmatprep.subr.mxu0 0.0
    %1697 = vmatpush1.xpose.msra.mxu0 0.0
    %1698 = vmatprep.subr.mxu0 0.0
    %1699 = vmatpush1.xpose.msra.mxu0 0.0
    %1700 = vmatprep.subr.mxu0 0.0
    %1701 = vmatpush1.xpose.msra.mxu0 0.0
    %1702 = vmatprep.subr.mxu0 0.0
    %1703 = vmatpush1.xpose.msra.mxu0 0.0
    %1704 = vmatprep.subr.mxu0 0.0
    %1705 = vmatpush1.xpose.msra.mxu0 0.0
    %1706 = vmatprep.subr.mxu0 0.0
    %1707 = vmatpush1.xpose.msra.mxu0 0.0
    %1708 = vmatprep.subr.mxu0 0.0
    %1709 = vmatpush1.xpose.msra.mxu0 0.0
    %1710 = vmatprep.subr.mxu0 0.0
    %1711 = vmatpush1.xpose.msra.mxu0 0.0
    %1712 = vmatprep.subr.mxu0 0.0
    %1713 = vmatpush1.xpose.msra.mxu0 0.0
    %1714 = vmatprep.subr.mxu0 0.0
    %1715 = vmatpush1.xpose.msra.mxu0 0.0
    %1716 = vmatprep.subr.mxu0 0.0
    %1717 = vmatpush1.xpose.msra.mxu0 0.0
    %1718 = vmatprep.subr.mxu0 0.0
    %1719 = vmatpush1.xpose.msra.mxu0 0.0
    %1720 = vmatprep.subr.mxu0 0.0
    %1721 = vmatpush1.xpose.msra.mxu0 0.0
    %1722 = vmatprep.subr.mxu0 0.0
    %1723 = vmatpush1.xpose.msra.mxu0 0.0
    %1724 = vmatprep.subr.mxu0 0.0
    %1725 = vmatpush1.xpose.msra.mxu0 0.0
    %1726 = vmatprep.subr.mxu0 0.0
    %1727 = vmatpush1.xpose.msra.mxu0 0.0
    %1728 = vmatprep.subr.mxu0 0.0
    %1729 = vmatpush1.xpose.msra.mxu0 0.0
    %1730 = vmatprep.subr.mxu0 0.0
    %1731 = vmatpush1.xpose.msra.mxu0 0.0
    %1732 = vmatprep.subr.mxu0 0.0
    %1733 = vmatpush1.xpose.msra.mxu0 0.0
    %1734 = vmatprep.subr.mxu0 0.0
    %1735 = vmatpush1.xpose.msra.mxu0 0.0
    %1736 = vmatprep.subr.mxu0 0.0
    %1737 = vmatpush1.xpose.msra.mxu0 0.0
    %1738 = vmatprep.subr.mxu0 0.0
    %1739 = vmatpush1.xpose.msra.mxu0 0.0
    %1740 = vmatprep.subr.mxu0 0.0
    %1741 = vmatpush1.xpose.msra.mxu0 0.0
    %1742 = vmatprep.subr.mxu0 0.0
    %1743 = vmatpush1.xpose.msra.mxu0 0.0
    %1744 = vmatprep.subr.mxu0 0.0
    %1745 = vmatpush1.xpose.msra.mxu0 0.0
    %1746 = vmatprep.mubr.f32.mxu0 0.0
    %1747 = vmatmul.mubr.f32.gmra.mrb[0].mxu0 %v1677
    %v1748 = vpop.f32.mrb[0].mxu0
    %v1749 = vadd.f32 0.0, %v1748
    %v1750 = vpop.f32.mrb[0].mxu0
    %1751 = vdwg.mxu0
    %vm1752 = vcmask 64512
    %v1753 = vsel %vm1752, %v1521, -inf
    %1754 = vmax.xlane.f32.xlu0 %v1753
    %v1755 = vpop.xlane.xlu0 %1754
    %v1756 = vsel %vm1752, %v1597, -inf
    %1757 = vmax.xlane.f32.xlu0 %v1756
    %v1758 = vpop.xlane.xlu0 %1757
    %v1759 = vsel %vm1752, %v1673, -inf
    %1760 = vmax.xlane.f32.xlu0 %v1759
    %v1761 = vpop.xlane.xlu0 %1760
    %v1762 = vsel %vm1752, %v1749, -inf
    %1763 = vmax.xlane.f32.xlu0 %v1762
    %v1764 = vpop.xlane.xlu0 %1763
    %v1765 = vsub.f32 %v1521, %v1755
    %v1766 = vsub.f32 %v1597, %v1758
    %v1767 = vsub.f32 %v1673, %v1761
    %v1768 = vsub.f32 %v1749, %v1764
    %v1769 = vmul.f32 %v1765, 1.442695
    %v1770 = vpow.pop %v1769
    %v1771 = vmul.f32 %v1766, 1.442695
    %v1772 = vpow.pop %v1771
    %v1773 = vmul.f32 %v1767, 1.442695
    %v1774 = vpow.pop %v1773
    %v1775 = vmul.f32 %v1768, 1.442695
    %v1776 = vpow.pop %v1775
    %v1777 = vsel %vm1752, %v1770, 0.0
    %1778 = vadd.xlane.f32.xlu0 %v1777
    %v1779 = vpop.xlane.xlu0 %1778
    %v1780 = vsel %vm1752, %v1772, 0.0
    %1781 = vadd.xlane.f32.xlu0 %v1780
    %v1782 = vpop.xlane.xlu0 %1781
    %v1783 = vsel %vm1752, %v1774, 0.0
    %1784 = vadd.xlane.f32.xlu0 %v1783
    %v1785 = vpop.xlane.xlu0 %1784
    %v1786 = vsel %vm1752, %v1776, 0.0
    %1787 = vadd.xlane.f32.xlu0 %v1786
    %v1788 = vpop.xlane.xlu0 %1787
    %v1789 = vrcp.pop %v1779
    %v1790 = vrcp.pop %v1782
    %v1791 = vrcp.pop %v1785
    %v1792 = vrcp.pop %v1788
    %v1793 = vmul.f32 %v1770, %v1789
    %v1794 = vmul.f32 %v1772, %v1790
    %v1795 = vmul.f32 %v1774, %v1791
    %v1796 = vmul.f32 %v1776, %v1792
    %v1798 = vsel %vm1752, %v1793, 0
    %1800 = vmatprep.subr.mxu0 0.0
    %1801 = vmatpush1.msra.mxu0 %v1235
    %1802 = vmatprep.subr.mxu0 0.0
    %1803 = vmatpush1.msra.mxu0 0.0
    %1804 = vmatprep.subr.mxu0 0.0
    %1805 = vmatpush1.msra.mxu0 0.0
    %1806 = vmatprep.subr.mxu0 0.0
    %1807 = vmatpush1.msra.mxu0 0.0
    %1808 = vmatprep.subr.mxu0 0.0
    %1809 = vmatpush1.msra.mxu0 0.0
    %1810 = vmatprep.subr.mxu0 0.0
    %1811 = vmatpush1.msra.mxu0 0.0
    %1812 = vmatprep.subr.mxu0 0.0
    %1813 = vmatpush1.msra.mxu0 0.0
    %1814 = vmatprep.subr.mxu0 0.0
    %1815 = vmatpush1.msra.mxu0 0.0
    %1816 = vmatprep.subr.mxu0 0.0
    %1817 = vmatpush1.msra.mxu0 0.0
    %1818 = vmatprep.subr.mxu0 0.0
    %1819 = vmatpush1.msra.mxu0 0.0
    %1820 = vmatprep.subr.mxu0 0.0
    %1821 = vmatpush1.msra.mxu0 0.0
    %1822 = vmatprep.subr.mxu0 0.0
    %1823 = vmatpush1.msra.mxu0 0.0
    %1824 = vmatprep.subr.mxu0 0.0
    %1825 = vmatpush1.msra.mxu0 0.0
    %1826 = vmatprep.subr.mxu0 0.0
    %1827 = vmatpush1.msra.mxu0 0.0
    %1828 = vmatprep.subr.mxu0 0.0
    %1829 = vmatpush1.msra.mxu0 0.0
    %1830 = vmatprep.subr.mxu0 0.0
    %1831 = vmatpush1.msra.mxu0 0.0
    %1832 = vmatprep.subr.mxu0 0.0
    %1833 = vmatpush1.msra.mxu0 0.0
    %1834 = vmatprep.subr.mxu0 0.0
    %1835 = vmatpush1.msra.mxu0 0.0
    %1836 = vmatprep.subr.mxu0 0.0
    %1837 = vmatpush1.msra.mxu0 0.0
    %1838 = vmatprep.subr.mxu0 0.0
    %1839 = vmatpush1.msra.mxu0 0.0
    %1840 = vmatprep.subr.mxu0 0.0
    %1841 = vmatpush1.msra.mxu0 0.0
    %1842 = vmatprep.subr.mxu0 0.0
    %1843 = vmatpush1.msra.mxu0 0.0
    %1844 = vmatprep.subr.mxu0 0.0
    %1845 = vmatpush1.msra.mxu0 0.0
    %1846 = vmatprep.subr.mxu0 0.0
    %1847 = vmatpush1.msra.mxu0 0.0
    %1848 = vmatprep.subr.mxu0 0.0
    %1849 = vmatpush1.msra.mxu0 0.0
    %1850 = vmatprep.subr.mxu0 0.0
    %1851 = vmatpush1.msra.mxu0 0.0
    %1852 = vmatprep.subr.mxu0 0.0
    %1853 = vmatpush1.msra.mxu0 0.0
    %1854 = vmatprep.subr.mxu0 0.0
    %1855 = vmatpush1.msra.mxu0 0.0
    %1856 = vmatprep.subr.mxu0 0.0
    %1857 = vmatpush1.msra.mxu0 0.0
    %1858 = vmatprep.subr.mxu0 0.0
    %1859 = vmatpush1.msra.mxu0 0.0
    %1860 = vmatprep.subr.mxu0 0.0
    %1861 = vmatpush1.msra.mxu0 0.0
    %1862 = vmatprep.subr.mxu0 0.0
    %1863 = vmatpush1.msra.mxu0 0.0
    %1864 = vmatprep.mubr.f32.mxu0 0.0
    %1865 = vmatmul.mubr.f32.gmra.mrb[0].mxu0 %v1798
    %v1866 = vpop.f32.mrb[0].mxu0
    %v1867 = vadd.f32 0.0, %v1866
    %v1868 = vpop.f32.mrb[0].mxu0
    %1869 = vdwg.mxu0
    %v1871 = vsel %vm1752, %v1794, 0
    %1873 = vmatprep.subr.mxu0 0.0
    %1874 = vmatpush1.msra.mxu0 %v1305
    %1875 = vmatprep.subr.mxu0 0.0
    %1876 = vmatpush1.msra.mxu0 0.0
    %1877 = vmatprep.subr.mxu0 0.0
    %1878 = vmatpush1.msra.mxu0 0.0
    %1879 = vmatprep.subr.mxu0 0.0
    %1880 = vmatpush1.msra.mxu0 0.0
    %1881 = vmatprep.subr.mxu0 0.0
    %1882 = vmatpush1.msra.mxu0 0.0
    %1883 = vmatprep.subr.mxu0 0.0
    %1884 = vmatpush1.msra.mxu0 0.0
    %1885 = vmatprep.subr.mxu0 0.0
    %1886 = vmatpush1.msra.mxu0 0.0
    %1887 = vmatprep.subr.mxu0 0.0
    %1888 = vmatpush1.msra.mxu0 0.0
    %1889 = vmatprep.subr.mxu0 0.0
    %1890 = vmatpush1.msra.mxu0 0.0
    %1891 = vmatprep.subr.mxu0 0.0
    %1892 = vmatpush1.msra.mxu0 0.0
    %1893 = vmatprep.subr.mxu0 0.0
    %1894 = vmatpush1.msra.mxu0 0.0
    %1895 = vmatprep.subr.mxu0 0.0
    %1896 = vmatpush1.msra.mxu0 0.0
    %1897 = vmatprep.subr.mxu0 0.0
    %1898 = vmatpush1.msra.mxu0 0.0
    %1899 = vmatprep.subr.mxu0 0.0
    %1900 = vmatpush1.msra.mxu0 0.0
    %1901 = vmatprep.subr.mxu0 0.0
    %1902 = vmatpush1.msra.mxu0 0.0
    %1903 = vmatprep.subr.mxu0 0.0
    %1904 = vmatpush1.msra.mxu0 0.0
    %1905 = vmatprep.subr.mxu0 0.0
    %1906 = vmatpush1.msra.mxu0 0.0
    %1907 = vmatprep.subr.mxu0 0.0
    %1908 = vmatpush1.msra.mxu0 0.0
    %1909 = vmatprep.subr.mxu0 0.0
    %1910 = vmatpush1.msra.mxu0 0.0
    %1911 = vmatprep.subr.mxu0 0.0
    %1912 = vmatpush1.msra.mxu0 0.0
    %1913 = vmatprep.subr.mxu0 0.0
    %1914 = vmatpush1.msra.mxu0 0.0
    %1915 = vmatprep.subr.mxu0 0.0
    %1916 = vmatpush1.msra.mxu0 0.0
    %1917 = vmatprep.subr.mxu0 0.0
    %1918 = vmatpush1.msra.mxu0 0.0
    %1919 = vmatprep.subr.mxu0 0.0
    %1920 = vmatpush1.msra.mxu0 0.0
    %1921 = vmatprep.subr.mxu0 0.0
    %1922 = vmatpush1.msra.mxu0 0.0
    %1923 = vmatprep.subr.mxu0 0.0
    %1924 = vmatpush1.msra.mxu0 0.0
    %1925 = vmatprep.subr.mxu0 0.0
    %1926 = vmatpush1.msra.mxu0 0.0
    %1927 = vmatprep.subr.mxu0 0.0
    %1928 = vmatpush1.msra.mxu0 0.0
    %1929 = vmatprep.subr.mxu0 0.0
    %1930 = vmatpush1.msra.mxu0 0.0
    %1931 = vmatprep.subr.mxu0 0.0
    %1932 = vmatpush1.msra.mxu0 0.0
    %1933 = vmatprep.subr.mxu0 0.0
    %1934 = vmatpush1.msra.mxu0 0.0
    %1935 = vmatprep.subr.mxu0 0.0
    %1936 = vmatpush1.msra.mxu0 0.0
    %1937 = vmatprep.mubr.f32.mxu0 0.0
    %1938 = vmatmul.mubr.f32.gmra.mrb[0].mxu0 %v1871
    %v1939 = vpop.f32.mrb[0].mxu0
    %v1940 = vadd.f32 0.0, %v1939
    %v1941 = vpop.f32.mrb[0].mxu0
    %1942 = vdwg.mxu0
    %v1944 = vsel %vm1752, %v1795, 0
    %1946 = vmatprep.subr.mxu0 0.0
    %1947 = vmatpush1.msra.mxu0 %v1375
    %1948 = vmatprep.subr.mxu0 0.0
    %1949 = vmatpush1.msra.mxu0 0.0
    %1950 = vmatprep.subr.mxu0 0.0
    %1951 = vmatpush1.msra.mxu0 0.0
    %1952 = vmatprep.subr.mxu0 0.0
    %1953 = vmatpush1.msra.mxu0 0.0
    %1954 = vmatprep.subr.mxu0 0.0
    %1955 = vmatpush1.msra.mxu0 0.0
    %1956 = vmatprep.subr.mxu0 0.0
    %1957 = vmatpush1.msra.mxu0 0.0
    %1958 = vmatprep.subr.mxu0 0.0
    %1959 = vmatpush1.msra.mxu0 0.0
    %1960 = vmatprep.subr.mxu0 0.0
    %1961 = vmatpush1.msra.mxu0 0.0
    %1962 = vmatprep.subr.mxu0 0.0
    %1963 = vmatpush1.msra.mxu0 0.0
    %1964 = vmatprep.subr.mxu0 0.0
    %1965 = vmatpush1.msra.mxu0 0.0
    %1966 = vmatprep.subr.mxu0 0.0
    %1967 = vmatpush1.msra.mxu0 0.0
    %1968 = vmatprep.subr.mxu0 0.0
    %1969 = vmatpush1.msra.mxu0 0.0
    %1970 = vmatprep.subr.mxu0 0.0
    %1971 = vmatpush1.msra.mxu0 0.0
    %1972 = vmatprep.subr.mxu0 0.0
    %1973 = vmatpush1.msra.mxu0 0.0
    %1974 = vmatprep.subr.mxu0 0.0
    %1975 = vmatpush1.msra.mxu0 0.0
    %1976 = vmatprep.subr.mxu0 0.0
    %1977 = vmatpush1.msra.mxu0 0.0
    %1978 = vmatprep.subr.mxu0 0.0
    %1979 = vmatpush1.msra.mxu0 0.0
    %1980 = vmatprep.subr.mxu0 0.0
    %1981 = vmatpush1.msra.mxu0 0.0
    %1982 = vmatprep.subr.mxu0 0.0
    %1983 = vmatpush1.msra.mxu0 0.0
    %1984 = vmatprep.subr.mxu0 0.0
    %1985 = vmatpush1.msra.mxu0 0.0
    %1986 = vmatprep.subr.mxu0 0.0
    %1987 = vmatpush1.msra.mxu0 0.0
    %1988 = vmatprep.subr.mxu0 0.0
    %1989 = vmatpush1.msra.mxu0 0.0
    %1990 = vmatprep.subr.mxu0 0.0
    %1991 = vmatpush1.msra.mxu0 0.0
    %1992 = vmatprep.subr.mxu0 0.0
    %1993 = vmatpush1.msra.mxu0 0.0
    %1994 = vmatprep.subr.mxu0 0.0
    %1995 = vmatpush1.msra.mxu0 0.0
    %1996 = vmatprep.subr.mxu0 0.0
    %1997 = vmatpush1.msra.mxu0 0.0
    %1998 = vmatprep.subr.mxu0 0.0
    %1999 = vmatpush1.msra.mxu0 0.0
    %2000 = vmatprep.subr.mxu0 0.0
    %2001 = vmatpush1.msra.mxu0 0.0
    %2002 = vmatprep.subr.mxu0 0.0
    %2003 = vmatpush1.msra.mxu0 0.0
    %2004 = vmatprep.subr.mxu0 0.0
    %2005 = vmatpush1.msra.mxu0 0.0
    %2006 = vmatprep.subr.mxu0 0.0
    %2007 = vmatpush1.msra.mxu0 0.0
    %2008 = vmatprep.subr.mxu0 0.0
    %2009 = vmatpush1.msra.mxu0 0.0
    %2010 = vmatprep.mubr.f32.mxu0 0.0
    %2011 = vmatmul.mubr.f32.gmra.mrb[0].mxu0 %v1944
    %v2012 = vpop.f32.mrb[0].mxu0
    %v2013 = vadd.f32 0.0, %v2012
    %v2014 = vpop.f32.mrb[0].mxu0
    %2015 = vdwg.mxu0
    %v2017 = vsel %vm1752, %v1796, 0
    %2019 = vmatprep.subr.mxu0 0.0
    %2020 = vmatpush1.msra.mxu0 %v1445
    %2021 = vmatprep.subr.mxu0 0.0
    %2022 = vmatpush1.msra.mxu0 0.0
    %2023 = vmatprep.subr.mxu0 0.0
    %2024 = vmatpush1.msra.mxu0 0.0
    %2025 = vmatprep.subr.mxu0 0.0
    %2026 = vmatpush1.msra.mxu0 0.0
    %2027 = vmatprep.subr.mxu0 0.0
    %2028 = vmatpush1.msra.mxu0 0.0
    %2029 = vmatprep.subr.mxu0 0.0
    %2030 = vmatpush1.msra.mxu0 0.0
    %2031 = vmatprep.subr.mxu0 0.0
    %2032 = vmatpush1.msra.mxu0 0.0
    %2033 = vmatprep.subr.mxu0 0.0
    %2034 = vmatpush1.msra.mxu0 0.0
    %2035 = vmatprep.subr.mxu0 0.0
    %2036 = vmatpush1.msra.mxu0 0.0
    %2037 = vmatprep.subr.mxu0 0.0
    %2038 = vmatpush1.msra.mxu0 0.0
    %2039 = vmatprep.subr.mxu0 0.0
    %2040 = vmatpush1.msra.mxu0 0.0
    %2041 = vmatprep.subr.mxu0 0.0
    %2042 = vmatpush1.msra.mxu0 0.0
    %2043 = vmatprep.subr.mxu0 0.0
    %2044 = vmatpush1.msra.mxu0 0.0
    %2045 = vmatprep.subr.mxu0 0.0
    %2046 = vmatpush1.msra.mxu0 0.0
    %2047 = vmatprep.subr.mxu0 0.0
    %2048 = vmatpush1.msra.mxu0 0.0
    %2049 = vmatprep.subr.mxu0 0.0
    %2050 = vmatpush1.msra.mxu0 0.0
    %2051 = vmatprep.subr.mxu0 0.0
    %2052 = vmatpush1.msra.mxu0 0.0
    %2053 = vmatprep.subr.mxu0 0.0
    %2054 = vmatpush1.msra.mxu0 0.0
    %2055 = vmatprep.subr.mxu0 0.0
    %2056 = vmatpush1.msra.mxu0 0.0
    %2057 = vmatprep.subr.mxu0 0.0
    %2058 = vmatpush1.msra.mxu0 0.0
    %2059 = vmatprep.subr.mxu0 0.0
    %2060 = vmatpush1.msra.mxu0 0.0
    %2061 = vmatprep.subr.mxu0 0.0
    %2062 = vmatpush1.msra.mxu0 0.0
    %2063 = vmatprep.subr.mxu0 0.0
    %2064 = vmatpush1.msra.mxu0 0.0
    %2065 = vmatprep.subr.mxu0 0.0
    %2066 = vmatpush1.msra.mxu0 0.0
    %2067 = vmatprep.subr.mxu0 0.0
    %2068 = vmatpush1.msra.mxu0 0.0
    %2069 = vmatprep.subr.mxu0 0.0
    %2070 = vmatpush1.msra.mxu0 0.0
    %2071 = vmatprep.subr.mxu0 0.0
    %2072 = vmatpush1.msra.mxu0 0.0
    %2073 = vmatprep.subr.mxu0 0.0
    %2074 = vmatpush1.msra.mxu0 0.0
    %2075 = vmatprep.subr.mxu0 0.0
    %2076 = vmatpush1.msra.mxu0 0.0
    %2077 = vmatprep.subr.mxu0 0.0
    %2078 = vmatpush1.msra.mxu0 0.0
    %2079 = vmatprep.subr.mxu0 0.0
    %2080 = vmatpush1.msra.mxu0 0.0
    %2081 = vmatprep.subr.mxu0 0.0
    %2082 = vmatpush1.msra.mxu0 0.0
    %2083 = vmatprep.mubr.f32.mxu0 0.0
    %2084 = vmatmul.mubr.f32.gmra.mrb[0].mxu0 %v2017
    %v2085 = vpop.f32.mrb[0].mxu0
    %v2086 = vadd.f32 0.0, %v2085
    %v2087 = vpop.f32.mrb[0].mxu0
    %2088 = vdwg.mxu0
    %v2089 = vld [vmem:[%s29] sm:$0xff]
    %v2090 = vld [vmem:[%s29 + $0x8] sm:$0xff]
    %v2091 = vld [vmem:[%s29 + $0x10] sm:$0xff]
    %v2092 = vld [vmem:[%s29 + $0x18] sm:$0xff]
    %v2094 = vsel %vm219, %v1867, 0
    %2096 = vmatprep.subr.mxu0 0.0
    %2097 = vmatpush1.msra.mxu0 %v2089
    %2098 = vmatprep.subr.mxu0 0.0
    %2099 = vmatpush1.msra.mxu0 %v2090
    %2100 = vmatprep.subr.mxu0 0.0
    %2101 = vmatpush1.msra.mxu0 0.0
    %2102 = vmatprep.subr.mxu0 0.0
    %2103 = vmatpush1.msra.mxu0 0.0
    %2104 = vmatprep.subr.mxu0 0.0
    %2105 = vmatpush1.msra.mxu0 0.0
    %2106 = vmatprep.subr.mxu0 0.0
    %2107 = vmatpush1.msra.mxu0 0.0
    %2108 = vmatprep.subr.mxu0 0.0
    %2109 = vmatpush1.msra.mxu0 0.0
    %2110 = vmatprep.subr.mxu0 0.0
    %2111 = vmatpush1.msra.mxu0 0.0
    %2112 = vmatprep.subr.mxu0 0.0
    %2113 = vmatpush1.msra.mxu0 0.0
    %2114 = vmatprep.subr.mxu0 0.0
    %2115 = vmatpush1.msra.mxu0 0.0
    %2116 = vmatprep.subr.mxu0 0.0
    %2117 = vmatpush1.msra.mxu0 0.0
    %2118 = vmatprep.subr.mxu0 0.0
    %2119 = vmatpush1.msra.mxu0 0.0
    %2120 = vmatprep.subr.mxu0 0.0
    %2121 = vmatpush1.msra.mxu0 0.0
    %2122 = vmatprep.subr.mxu0 0.0
    %2123 = vmatpush1.msra.mxu0 0.0
    %2124 = vmatprep.subr.mxu0 0.0
    %2125 = vmatpush1.msra.mxu0 0.0
    %2126 = vmatprep.subr.mxu0 0.0
    %2127 = vmatpush1.msra.mxu0 0.0
    %2128 = vmatprep.subr.mxu0 0.0
    %2129 = vmatpush1.msra.mxu0 0.0
    %2130 = vmatprep.subr.mxu0 0.0
    %2131 = vmatpush1.msra.mxu0 0.0
    %2132 = vmatprep.subr.mxu0 0.0
    %2133 = vmatpush1.msra.mxu0 0.0
    %2134 = vmatprep.subr.mxu0 0.0
    %2135 = vmatpush1.msra.mxu0 0.0
    %2136 = vmatprep.subr.mxu0 0.0
    %2137 = vmatpush1.msra.mxu0 0.0
    %2138 = vmatprep.subr.mxu0 0.0
    %2139 = vmatpush1.msra.mxu0 0.0
    %2140 = vmatprep.subr.mxu0 0.0
    %2141 = vmatpush1.msra.mxu0 0.0
    %2142 = vmatprep.subr.mxu0 0.0
    %2143 = vmatpush1.msra.mxu0 0.0
    %2144 = vmatprep.subr.mxu0 0.0
    %2145 = vmatpush1.msra.mxu0 0.0
    %2146 = vmatprep.subr.mxu0 0.0
    %2147 = vmatpush1.msra.mxu0 0.0
    %2148 = vmatprep.subr.mxu0 0.0
    %2149 = vmatpush1.msra.mxu0 0.0
    %2150 = vmatprep.subr.mxu0 0.0
    %2151 = vmatpush1.msra.mxu0 0.0
    %2152 = vmatprep.subr.mxu0 0.0
    %2153 = vmatpush1.msra.mxu0 0.0
    %2154 = vmatprep.subr.mxu0 0.0
    %2155 = vmatpush1.msra.mxu0 0.0
    %2156 = vmatprep.subr.mxu0 0.0
    %2157 = vmatpush1.msra.mxu0 0.0
    %2158 = vmatprep.subr.mxu0 0.0
    %2159 = vmatpush1.msra.mxu0 0.0
    %2160 = vmatprep.mubr.f32.mxu0 0.0
    %2161 = vmatmul.mubr.f32.gmra.mrb[0].mxu0 %v2094
    %v2162 = vpop.f32.mrb[0].mxu0
    %v2163 = vadd.f32 0.0, %v2162
    %v2164 = vpop.f32.mrb[0].mxu0
    %2165 = vdwg.mxu0
    %v2167 = vsel %vm219, %v1940, 0
    %2169 = vmatprep.subr.mxu0 0.0
    %2170 = vmatpush1.msra.mxu0 %v2091
    %2171 = vmatprep.subr.mxu0 0.0
    %2172 = vmatpush1.msra.mxu0 %v2092
    %2173 = vmatprep.subr.mxu0 0.0
    %2174 = vmatpush1.msra.mxu0 0.0
    %2175 = vmatprep.subr.mxu0 0.0
    %2176 = vmatpush1.msra.mxu0 0.0
    %2177 = vmatprep.subr.mxu0 0.0
    %2178 = vmatpush1.msra.mxu0 0.0
    %2179 = vmatprep.subr.mxu0 0.0
    %2180 = vmatpush1.msra.mxu0 0.0
    %2181 = vmatprep.subr.mxu0 0.0
    %2182 = vmatpush1.msra.mxu0 0.0
    %2183 = vmatprep.subr.mxu0 0.0
    %2184 = vmatpush1.msra.mxu0 0.0
    %2185 = vmatprep.subr.mxu0 0.0
    %2186 = vmatpush1.msra.mxu0 0.0
    %2187 = vmatprep.subr.mxu0 0.0
    %2188 = vmatpush1.msra.mxu0 0.0
    %2189 = vmatprep.subr.mxu0 0.0
    %2190 = vmatpush1.msra.mxu0 0.0
    %2191 = vmatprep.subr.mxu0 0.0
    %2192 = vmatpush1.msra.mxu0 0.0
    %2193 = vmatprep.subr.mxu0 0.0
    %2194 = vmatpush1.msra.mxu0 0.0
    %2195 = vmatprep.subr.mxu0 0.0
    %2196 = vmatpush1.msra.mxu0 0.0
    %2197 = vmatprep.subr.mxu0 0.0
    %2198 = vmatpush1.msra.mxu0 0.0
    %2199 = vmatprep.subr.mxu0 0.0
    %2200 = vmatpush1.msra.mxu0 0.0
    %2201 = vmatprep.subr.mxu0 0.0
    %2202 = vmatpush1.msra.mxu0 0.0
    %2203 = vmatprep.subr.mxu0 0.0
    %2204 = vmatpush1.msra.mxu0 0.0
    %2205 = vmatprep.subr.mxu0 0.0
    %2206 = vmatpush1.msra.mxu0 0.0
    %2207 = vmatprep.subr.mxu0 0.0
    %2208 = vmatpush1.msra.mxu0 0.0
    %2209 = vmatprep.subr.mxu0 0.0
    %2210 = vmatpush1.msra.mxu0 0.0
    %2211 = vmatprep.subr.mxu0 0.0
    %2212 = vmatpush1.msra.mxu0 0.0
    %2213 = vmatprep.subr.mxu0 0.0
    %2214 = vmatpush1.msra.mxu0 0.0
    %2215 = vmatprep.subr.mxu0 0.0
    %2216 = vmatpush1.msra.mxu0 0.0
    %2217 = vmatprep.subr.mxu0 0.0
    %2218 = vmatpush1.msra.mxu0 0.0
    %2219 = vmatprep.subr.mxu0 0.0
    %2220 = vmatpush1.msra.mxu0 0.0
    %2221 = vmatprep.subr.mxu0 0.0
    %2222 = vmatpush1.msra.mxu0 0.0
    %2223 = vmatprep.subr.mxu0 0.0
    %2224 = vmatpush1.msra.mxu0 0.0
    %2225 = vmatprep.subr.mxu0 0.0
    %2226 = vmatpush1.msra.mxu0 0.0
    %2227 = vmatprep.subr.mxu0 0.0
    %2228 = vmatpush1.msra.mxu0 0.0
    %2229 = vmatprep.subr.mxu0 0.0
    %2230 = vmatpush1.msra.mxu0 0.0
    %2231 = vmatprep.subr.mxu0 0.0
    %2232 = vmatpush1.msra.mxu0 0.0
    %2233 = vmatprep.mubr.f32.mxu0 0.0
    %2234 = vmatmul.mubr.f32.gmra.mrb[0].mxu0 %v2167
    %v2235 = vpop.f32.mrb[0].mxu0
    %v2236 = vadd.f32 0.0, %v2235
    %v2237 = vpop.f32.mrb[0].mxu0
    %2238 = vdwg.mxu0
    %v2240 = vsel %vm219, %v2013, 0
    %2242 = vmatprep.subr.mxu0 0.0
    %2243 = vmatpush1.msra.mxu0 %v2089
    %2244 = vmatprep.subr.mxu0 0.0
    %2245 = vmatpush1.msra.mxu0 %v2090
    %2246 = vmatprep.subr.mxu0 0.0
    %2247 = vmatpush1.msra.mxu0 0.0
    %2248 = vmatprep.subr.mxu0 0.0
    %2249 = vmatpush1.msra.mxu0 0.0
    %2250 = vmatprep.subr.mxu0 0.0
    %2251 = vmatpush1.msra.mxu0 0.0
    %2252 = vmatprep.subr.mxu0 0.0
    %2253 = vmatpush1.msra.mxu0 0.0
    %2254 = vmatprep.subr.mxu0 0.0
    %2255 = vmatpush1.msra.mxu0 0.0
    %2256 = vmatprep.subr.mxu0 0.0
    %2257 = vmatpush1.msra.mxu0 0.0
    %2258 = vmatprep.subr.mxu0 0.0
    %2259 = vmatpush1.msra.mxu0 0.0
    %2260 = vmatprep.subr.mxu0 0.0
    %2261 = vmatpush1.msra.mxu0 0.0
    %2262 = vmatprep.subr.mxu0 0.0
    %2263 = vmatpush1.msra.mxu0 0.0
    %2264 = vmatprep.subr.mxu0 0.0
    %2265 = vmatpush1.msra.mxu0 0.0
    %2266 = vmatprep.subr.mxu0 0.0
    %2267 = vmatpush1.msra.mxu0 0.0
    %2268 = vmatprep.subr.mxu0 0.0
    %2269 = vmatpush1.msra.mxu0 0.0
    %2270 = vmatprep.subr.mxu0 0.0
    %2271 = vmatpush1.msra.mxu0 0.0
    %2272 = vmatprep.subr.mxu0 0.0
    %2273 = vmatpush1.msra.mxu0 0.0
    %2274 = vmatprep.subr.mxu0 0.0
    %2275 = vmatpush1.msra.mxu0 0.0
    %2276 = vmatprep.subr.mxu0 0.0
    %2277 = vmatpush1.msra.mxu0 0.0
    %2278 = vmatprep.subr.mxu0 0.0
    %2279 = vmatpush1.msra.mxu0 0.0
    %2280 = vmatprep.subr.mxu0 0.0
    %2281 = vmatpush1.msra.mxu0 0.0
    %2282 = vmatprep.subr.mxu0 0.0
    %2283 = vmatpush1.msra.mxu0 0.0
    %2284 = vmatprep.subr.mxu0 0.0
    %2285 = vmatpush1.msra.mxu0 0.0
    %2286 = vmatprep.subr.mxu0 0.0
    %2287 = vmatpush1.msra.mxu0 0.0
    %2288 = vmatprep.subr.mxu0 0.0
    %2289 = vmatpush1.msra.mxu0 0.0
    %2290 = vmatprep.subr.mxu0 0.0
    %2291 = vmatpush1.msra.mxu0 0.0
    %2292 = vmatprep.subr.mxu0 0.0
    %2293 = vmatpush1.msra.mxu0 0.0
    %2294 = vmatprep.subr.mxu0 0.0
    %2295 = vmatpush1.msra.mxu0 0.0
    %2296 = vmatprep.subr.mxu0 0.0
    %2297 = vmatpush1.msra.mxu0 0.0
    %2298 = vmatprep.subr.mxu0 0.0
    %2299 = vmatpush1.msra.mxu0 0.0
    %2300 = vmatprep.subr.mxu0 0.0
    %2301 = vmatpush1.msra.mxu0 0.0
    %2302 = vmatprep.subr.mxu0 0.0
    %2303 = vmatpush1.msra.mxu0 0.0
    %2304 = vmatprep.subr.mxu0 0.0
    %2305 = vmatpush1.msra.mxu0 0.0
    %2306 = vmatprep.mubr.f32.mxu0 0.0
    %2307 = vmatmul.mubr.f32.gmra.mrb[0].mxu0 %v2240
    %v2308 = vpop.f32.mrb[0].mxu0
    %v2309 = vadd.f32 0.0, %v2308
    %v2310 = vpop.f32.mrb[0].mxu0
    %2311 = vdwg.mxu0
    %v2313 = vsel %vm219, %v2086, 0
    %2315 = vmatprep.subr.mxu0 0.0
    %2316 = vmatpush1.msra.mxu0 %v2091
    %2317 = vmatprep.subr.mxu0 0.0
    %2318 = vmatpush1.msra.mxu0 %v2092
    %2319 = vmatprep.subr.mxu0 0.0
    %2320 = vmatpush1.msra.mxu0 0.0
    %2321 = vmatprep.subr.mxu0 0.0
    %2322 = vmatpush1.msra.mxu0 0.0
    %2323 = vmatprep.subr.mxu0 0.0
    %2324 = vmatpush1.msra.mxu0 0.0
    %2325 = vmatprep.subr.mxu0 0.0
    %2326 = vmatpush1.msra.mxu0 0.0
    %2327 = vmatprep.subr.mxu0 0.0
    %2328 = vmatpush1.msra.mxu0 0.0
    %2329 = vmatprep.subr.mxu0 0.0
    %2330 = vmatpush1.msra.mxu0 0.0
    %2331 = vmatprep.subr.mxu0 0.0
    %2332 = vmatpush1.msra.mxu0 0.0
    %2333 = vmatprep.subr.mxu0 0.0
    %2334 = vmatpush1.msra.mxu0 0.0
    %2335 = vmatprep.subr.mxu0 0.0
    %2336 = vmatpush1.msra.mxu0 0.0
    %2337 = vmatprep.subr.mxu0 0.0
    %2338 = vmatpush1.msra.mxu0 0.0
    %2339 = vmatprep.subr.mxu0 0.0
    %2340 = vmatpush1.msra.mxu0 0.0
    %2341 = vmatprep.subr.mxu0 0.0
    %2342 = vmatpush1.msra.mxu0 0.0
    %2343 = vmatprep.subr.mxu0 0.0
    %2344 = vmatpush1.msra.mxu0 0.0
    %2345 = vmatprep.subr.mxu0 0.0
    %2346 = vmatpush1.msra.mxu0 0.0
    %2347 = vmatprep.subr.mxu0 0.0
    %2348 = vmatpush1.msra.mxu0 0.0
    %2349 = vmatprep.subr.mxu0 0.0
    %2350 = vmatpush1.msra.mxu0 0.0
    %2351 = vmatprep.subr.mxu0 0.0
    %2352 = vmatpush1.msra.mxu0 0.0
    %2353 = vmatprep.subr.mxu0 0.0
    %2354 = vmatpush1.msra.mxu0 0.0
    %2355 = vmatprep.subr.mxu0 0.0
    %2356 = vmatpush1.msra.mxu0 0.0
    %2357 = vmatprep.subr.mxu0 0.0
    %2358 = vmatpush1.msra.mxu0 0.0
    %2359 = vmatprep.subr.mxu0 0.0
    %2360 = vmatpush1.msra.mxu0 0.0
    %2361 = vmatprep.subr.mxu0 0.0
    %2362 = vmatpush1.msra.mxu0 0.0
    %2363 = vmatprep.subr.mxu0 0.0
    %2364 = vmatpush1.msra.mxu0 0.0
    %2365 = vmatprep.subr.mxu0 0.0
    %2366 = vmatpush1.msra.mxu0 0.0
    %2367 = vmatprep.subr.mxu0 0.0
    %2368 = vmatpush1.msra.mxu0 0.0
    %2369 = vmatprep.subr.mxu0 0.0
    %2370 = vmatpush1.msra.mxu0 0.0
    %2371 = vmatprep.subr.mxu0 0.0
    %2372 = vmatpush1.msra.mxu0 0.0
    %2373 = vmatprep.subr.mxu0 0.0
    %2374 = vmatpush1.msra.mxu0 0.0
    %2375 = vmatprep.subr.mxu0 0.0
    %2376 = vmatpush1.msra.mxu0 0.0
    %2377 = vmatprep.subr.mxu0 0.0
    %2378 = vmatpush1.msra.mxu0 0.0
    %2379 = vmatprep.mubr.f32.mxu0 0.0
    %2380 = vmatmul.mubr.f32.gmra.mrb[0].mxu0 %v2313
    %v2381 = vpop.f32.mrb[0].mxu0
    %v2382 = vadd.f32 0.0, %v2381
    %v2383 = vpop.f32.mrb[0].mxu0
    %2384 = vdwg.mxu0
    %v2385 = vsel %vm492, %v2163, 0.0
    %v2386 = vsel %vm492, %v2236, 0.0
    %v2387 = vadd.f32 %v2385, %v2386
    %v2388 = vsel %vm492, %v2309, 0.0
    %v2389 = vsel %vm492, %v2382, 0.0
    %v2390 = vadd.f32 %v2388, %v2389
    %v2391 = vld [vmem:[%s31] sm:$0x1]
    %v2393 = vlaneseq
    %v2394 = vshrl.u32 %v2393, 7
    %v2395 = vsub.s32 0, %v2394
    %v2396 = vrot.slane %v2391, %v2395
    %v2398 = vadd.f32 %v2387, %v2396
    %v2399 = vadd.f32 %v2390, %v2396
    %v2400 = vadd.f32 %v534, %v2398
    %v2401 = vadd.f32 %v535, %v2399
    %v2402 = vld [vmem:[%s33] sm:$0x1]
    %v2403 = vld [vmem:[%s35] sm:$0x1]
    %v2404 = vsel %vm492, %v2400, 0.0
    %2405 = vadd.xlane.f32.xlu0 %v2404
    %v2406 = vpop.xlane.xlu0 %2405
    %v2407 = vsel %vm492, %v2401, 0.0
    %2408 = vadd.xlane.f32.xlu0 %v2407
    %v2409 = vpop.xlane.xlu0 %2408
    %v2410 = vmul.f32 %v2406, %v499
    %v2411 = vmul.f32 %v2409, %v499
    %v2412 = vsub.f32 %v2400, %v2410
    %v2413 = vsub.f32 %v2401, %v2411
    %v2414 = vmul.f32 %v2412, %v2412
    %v2415 = vmul.f32 %v2413, %v2413
    %v2416 = vsel %vm492, %v2414, 0.0
    %2417 = vadd.xlane.f32.xlu0 %v2416
    %v2418 = vpop.xlane.xlu0 %2417
    %v2419 = vsel %vm492, %v2415, 0.0
    %2420 = vadd.xlane.f32.xlu0 %v2419
    %v2421 = vpop.xlane.xlu0 %2420
    %v2422 = vmul.f32 %v2418, %v499
    %v2423 = vmul.f32 %v2421, %v499
    %v2424 = vadd.f32 %v2422, 1e-12
    %v2425 = vadd.f32 %v2423, 1e-12
    %v2426 = vrsqrt.pop %v2424
    %v2427 = vrsqrt.pop %v2425
    %v2428 = vmul.f32 %v2412, %v2426
    %v2429 = vmul.f32 %v2413, %v2427
    %v2431 = vlaneseq
    %v2432 = vshrl.u32 %v2431, 7
    %v2433 = vsub.s32 0, %v2432
    %v2434 = vrot.slane %v2402, %v2433
    %v2436 = vmul.f32 %v2428, %v2434
    %v2437 = vmul.f32 %v2429, %v2434
    %v2439 = vlaneseq
    %v2440 = vshrl.u32 %v2439, 7
    %v2441 = vsub.s32 0, %v2440
    %v2442 = vrot.slane %v2403, %v2441
    %v2444 = vadd.f32 %v2436, %v2442
    %v2445 = vadd.f32 %v2437, %v2442
    %v2446 = vld [vmem:[%s37] sm:$0xff]
    %v2447 = vld [vmem:[%s37 + $0x8] sm:$0xff]
    %v2448 = vld [vmem:[%s37 + $0x10] sm:$0xff]
    %v2449 = vld [vmem:[%s37 + $0x18] sm:$0xff]
    %v2450 = vld [vmem:[%s39] sm:$0x1]
    %v2452 = vlaneseq
    %v2453 = vshrl.u32 %v2452, 7
    %v2454 = vsub.s32 0, %v2453
    %v2455 = vrot.slane %v2450, %v2454
    %v2458 = vsel %vm492, %v2444, 0
    %v2461 = vsel %vm492, %v2445, 0
    %2463 = vmatprep.subr.mxu0 0.0
    %2464 = vmatpush1.msra.mxu0 %v2446
    %2465 = vmatprep.subr.mxu0 0.0
    %2466 = vmatpush1.msra.mxu0 %v2447
    %2467 = vmatprep.subr.mxu0 0.0
    %2468 = vmatpush1.msra.mxu0 %v2448
    %2469 = vmatprep.subr.mxu0 0.0
    %2470 = vmatpush1.msra.mxu0 %v2449
    %2471 = vmatprep.subr.mxu0 0.0
    %2472 = vmatpush1.msra.mxu0 0.0
    %2473 = vmatprep.subr.mxu0 0.0
    %2474 = vmatpush1.msra.mxu0 0.0
    %2475 = vmatprep.subr.mxu0 0.0
    %2476 = vmatpush1.msra.mxu0 0.0
    %2477 = vmatprep.subr.mxu0 0.0
    %2478 = vmatpush1.msra.mxu0 0.0
    %2479 = vmatprep.subr.mxu0 0.0
    %2480 = vmatpush1.msra.mxu0 0.0
    %2481 = vmatprep.subr.mxu0 0.0
    %2482 = vmatpush1.msra.mxu0 0.0
    %2483 = vmatprep.subr.mxu0 0.0
    %2484 = vmatpush1.msra.mxu0 0.0
    %2485 = vmatprep.subr.mxu0 0.0
    %2486 = vmatpush1.msra.mxu0 0.0
    %2487 = vmatprep.subr.mxu0 0.0
    %2488 = vmatpush1.msra.mxu0 0.0
    %2489 = vmatprep.subr.mxu0 0.0
    %2490 = vmatpush1.msra.mxu0 0.0
    %2491 = vmatprep.subr.mxu0 0.0
    %2492 = vmatpush1.msra.mxu0 0.0
    %2493 = vmatprep.subr.mxu0 0.0
    %2494 = vmatpush1.msra.mxu0 0.0
    %2495 = vmatprep.subr.mxu0 0.0
    %2496 = vmatpush1.msra.mxu0 0.0
    %2497 = vmatprep.subr.mxu0 0.0
    %2498 = vmatpush1.msra.mxu0 0.0
    %2499 = vmatprep.subr.mxu0 0.0
    %2500 = vmatpush1.msra.mxu0 0.0
    %2501 = vmatprep.subr.mxu0 0.0
    %2502 = vmatpush1.msra.mxu0 0.0
    %2503 = vmatprep.subr.mxu0 0.0
    %2504 = vmatpush1.msra.mxu0 0.0
    %2505 = vmatprep.subr.mxu0 0.0
    %2506 = vmatpush1.msra.mxu0 0.0
    %2507 = vmatprep.subr.mxu0 0.0
    %2508 = vmatpush1.msra.mxu0 0.0
    %2509 = vmatprep.subr.mxu0 0.0
    %2510 = vmatpush1.msra.mxu0 0.0
    %2511 = vmatprep.subr.mxu0 0.0
    %2512 = vmatpush1.msra.mxu0 0.0
    %2513 = vmatprep.subr.mxu0 0.0
    %2514 = vmatpush1.msra.mxu0 0.0
    %2515 = vmatprep.subr.mxu0 0.0
    %2516 = vmatpush1.msra.mxu0 0.0
    %2517 = vmatprep.subr.mxu0 0.0
    %2518 = vmatpush1.msra.mxu0 0.0
    %2519 = vmatprep.subr.mxu0 0.0
    %2520 = vmatpush1.msra.mxu0 0.0
    %2521 = vmatprep.subr.mxu0 0.0
    %2522 = vmatpush1.msra.mxu0 0.0
    %2523 = vmatprep.subr.mxu0 0.0
    %2524 = vmatpush1.msra.mxu0 0.0
    %2525 = vmatprep.subr.mxu0 0.0
    %2526 = vmatpush1.msra.mxu0 0.0
    %2527 = vmatprep.mubr.f32.mxu0 0.0
    %2528 = vmatmul.mubr.f32.gmra.mrb[0].mxu0 %v2458
    %v2529 = vpop.f32.mrb[0].mxu0
    %v2530 = vadd.f32 %v2455, %v2529
    %v2531 = vpop.f32.mrb[0].mxu0
    %2532 = vmatprep.mubr.f32.mxu0 0.0
    %2533 = vmatmul.mubr.f32.gmra.mrb[0].mxu0 %v2461
    %v2534 = vpop.f32.mrb[0].mxu0
    %v2535 = vadd.f32 %v2455, %v2534
    %v2536 = vpop.f32.mrb[0].mxu0
    %2537 = vdwg.mxu0
    %v2538 = vmul.f32 %v2530, 0.5
    %v2539 = vmul.f32 %v2535, 0.5
    %v2540 = vmul.f32 %v2530, 0.044715
    %v2541 = vmul.f32 %v2535, 0.044715
    %v2542 = vmul.f32 %v2540, %v2530
    %v2543 = vmul.f32 %v2541, %v2535
    %v2544 = vmul.f32 %v2542, %v2530
    %v2545 = vmul.f32 %v2543, %v2535
    %v2546 = vadd.f32 %v2530, %v2544
    %v2547 = vadd.f32 %v2535, %v2545
    %v2548 = vmul.f32 %v2546, 0.7978846
    %v2549 = vmul.f32 %v2547, 0.7978846
    %v2550 = vtanh.pop %v2548
    %v2551 = vtanh.pop %v2549
    %v2552 = vadd.f32 %v2550, 1.0
    %v2553 = vadd.f32 %v2551, 1.0
    %v2554 = vmul.f32 %v2538, %v2552
    %v2555 = vmul.f32 %v2539, %v2553
    %v2556 = vld [vmem:[%s41] sm:$0xff]
    %v2557 = vld [vmem:[%s41 + $0x8] sm:$0xff]
    %v2558 = vld [vmem:[%s41 + $0x10] sm:$0xff]
    %v2559 = vld [vmem:[%s41 + $0x18] sm:$0xff]
    %v2560 = vld [vmem:[%s41 + $0x20] sm:$0xff]
    %v2561 = vld [vmem:[%s41 + $0x28] sm:$0xff]
    %v2562 = vld [vmem:[%s41 + $0x30] sm:$0xff]
    %v2563 = vld [vmem:[%s41 + $0x38] sm:$0xff]
    %v2564 = vld [vmem:[%s43] sm:$0x1]
    %v2566 = vlaneseq
    %v2567 = vshrl.u32 %v2566, 7
    %v2568 = vsub.s32 0, %v2567
    %v2569 = vrot.slane %v2564, %v2568
    %vm2571 = vcmask 523264
    %v2573 = vsel %vm2571, %v2554, 0
    %v2576 = vsel %vm2571, %v2555, 0
    %2578 = vmatprep.subr.mxu0 0.0
    %2579 = vmatpush1.msra.mxu0 %v2556
    %2580 = vmatprep.subr.mxu0 0.0
    %2581 = vmatpush1.msra.mxu0 %v2557
    %2582 = vmatprep.subr.mxu0 0.0
    %2583 = vmatpush1.msra.mxu0 %v2558
    %2584 = vmatprep.subr.mxu0 0.0
    %2585 = vmatpush1.msra.mxu0 %v2559
    %2586 = vmatprep.subr.mxu0 0.0
    %2587 = vmatpush1.msra.mxu0 %v2560
    %2588 = vmatprep.subr.mxu0 0.0
    %2589 = vmatpush1.msra.mxu0 %v2561
    %2590 = vmatprep.subr.mxu0 0.0
    %2591 = vmatpush1.msra.mxu0 %v2562
    %2592 = vmatprep.subr.mxu0 0.0
    %2593 = vmatpush1.msra.mxu0 %v2563
    %2594 = vmatprep.subr.mxu0 0.0
    %2595 = vmatpush1.msra.mxu0 0.0
    %2596 = vmatprep.subr.mxu0 0.0
    %2597 = vmatpush1.msra.mxu0 0.0
    %2598 = vmatprep.subr.mxu0 0.0
    %2599 = vmatpush1.msra.mxu0 0.0
    %2600 = vmatprep.subr.mxu0 0.0
    %2601 = vmatpush1.msra.mxu0 0.0
    %2602 = vmatprep.subr.mxu0 0.0
    %2603 = vmatpush1.msra.mxu0 0.0
    %2604 = vmatprep.subr.mxu0 0.0
    %2605 = vmatpush1.msra.mxu0 0.0
    %2606 = vmatprep.subr.mxu0 0.0
    %2607 = vmatpush1.msra.mxu0 0.0
    %2608 = vmatprep.subr.mxu0 0.0
    %2609 = vmatpush1.msra.mxu0 0.0
    %2610 = vmatprep.subr.mxu0 0.0
    %2611 = vmatpush1.msra.mxu0 0.0
    %2612 = vmatprep.subr.mxu0 0.0
    %2613 = vmatpush1.msra.mxu0 0.0
    %2614 = vmatprep.subr.mxu0 0.0
    %2615 = vmatpush1.msra.mxu0 0.0
    %2616 = vmatprep.subr.mxu0 0.0
    %2617 = vmatpush1.msra.mxu0 0.0
    %2618 = vmatprep.subr.mxu0 0.0
    %2619 = vmatpush1.msra.mxu0 0.0
    %2620 = vmatprep.subr.mxu0 0.0
    %2621 = vmatpush1.msra.mxu0 0.0
    %2622 = vmatprep.subr.mxu0 0.0
    %2623 = vmatpush1.msra.mxu0 0.0
    %2624 = vmatprep.subr.mxu0 0.0
    %2625 = vmatpush1.msra.mxu0 0.0
    %2626 = vmatprep.subr.mxu0 0.0
    %2627 = vmatpush1.msra.mxu0 0.0
    %2628 = vmatprep.subr.mxu0 0.0
    %2629 = vmatpush1.msra.mxu0 0.0
    %2630 = vmatprep.subr.mxu0 0.0
    %2631 = vmatpush1.msra.mxu0 0.0
    %2632 = vmatprep.subr.mxu0 0.0
    %2633 = vmatpush1.msra.mxu0 0.0
    %2634 = vmatprep.subr.mxu0 0.0
    %2635 = vmatpush1.msra.mxu0 0.0
    %2636 = vmatprep.subr.mxu0 0.0
    %2637 = vmatpush1.msra.mxu0 0.0
    %2638 = vmatprep.subr.mxu0 0.0
    %2639 = vmatpush1.msra.mxu0 0.0
    %2640 = vmatprep.subr.mxu0 0.0
    %2641 = vmatpush1.msra.mxu0 0.0
    %2642 = vmatprep.mubr.f32.mxu0 0.0
    %2643 = vmatmul.mubr.f32.gmra.mrb[0].mxu0 %v2573
    %v2644 = vpop.f32.mrb[0].mxu0
    %v2645 = vadd.f32 %v2569, %v2644
    %v2646 = vpop.f32.mrb[0].mxu0
    %2647 = vmatprep.mubr.f32.mxu0 0.0
    %2648 = vmatmul.mubr.f32.gmra.mrb[0].mxu0 %v2576
    %v2649 = vpop.f32.mrb[0].mxu0
    %v2650 = vadd.f32 %v2569, %v2649
    %v2651 = vpop.f32.mrb[0].mxu0
    %2652 = vdwg.mxu0
    %v2653 = vadd.f32 %v2444, %v2645
    %v2654 = vadd.f32 %v2445, %v2650
    %v2655 = vld [vmem:[%s45] sm:$0x1]
    %v2656 = vld [vmem:[%s47] sm:$0x1]
    %v2657 = vsel %vm492, %v2653, 0.0
    %2658 = vadd.xlane.f32.xlu0 %v2657
    %v2659 = vpop.xlane.xlu0 %2658
    %v2660 = vsel %vm492, %v2654, 0.0
    %2661 = vadd.xlane.f32.xlu0 %v2660
    %v2662 = vpop.xlane.xlu0 %2661
    %v2663 = vmul.f32 %v2659, %v499
    %v2664 = vmul.f32 %v2662, %v499
    %v2665 = vsub.f32 %v2653, %v2663
    %v2666 = vsub.f32 %v2654, %v2664
    %v2667 = vmul.f32 %v2665, %v2665
    %v2668 = vmul.f32 %v2666, %v2666
    %v2669 = vsel %vm492, %v2667, 0.0
    %2670 = vadd.xlane.f32.xlu0 %v2669
    %v2671 = vpop.xlane.xlu0 %2670
    %v2672 = vsel %vm492, %v2668, 0.0
    %2673 = vadd.xlane.f32.xlu0 %v2672
    %v2674 = vpop.xlane.xlu0 %2673
    %v2675 = vmul.f32 %v2671, %v499
    %v2676 = vmul.f32 %v2674, %v499
    %v2677 = vadd.f32 %v2675, 1e-12
    %v2678 = vadd.f32 %v2676, 1e-12
    %v2679 = vrsqrt.pop %v2677
    %v2680 = vrsqrt.pop %v2678
    %v2681 = vmul.f32 %v2665, %v2679
    %v2682 = vmul.f32 %v2666, %v2680
    %v2684 = vlaneseq
    %v2685 = vshrl.u32 %v2684, 7
    %v2686 = vsub.s32 0, %v2685
    %v2687 = vrot.slane %v2655, %v2686
    %v2689 = vmul.f32 %v2681, %v2687
    %v2690 = vmul.f32 %v2682, %v2687
    %v2692 = vlaneseq
    %v2693 = vshrl.u32 %v2692, 7
    %v2694 = vsub.s32 0, %v2693
    %v2695 = vrot.slane %v2656, %v2694
    %v2697 = vadd.f32 %v2689, %v2695
    %v2698 = vadd.f32 %v2690, %v2695
    %v2699 = vld [vmem:[%s49] sm:$0xff]
    %v2700 = vld [vmem:[%s49 + $0x8] sm:$0xff]
    %v2701 = vld [vmem:[%s49 + $0x10] sm:$0xff]
    %v2702 = vld [vmem:[%s49 + $0x18] sm:$0xff]
    %v2703 = vld [vmem:[%s49 + $0x20] sm:$0xff]
    %v2704 = vld [vmem:[%s49 + $0x28] sm:$0xff]
    %v2705 = vld [vmem:[%s49 + $0x30] sm:$0xff]
    %v2706 = vld [vmem:[%s49 + $0x38] sm:$0xff]
    %v2707 = vld [vmem:[%s55] sm:$0x1]
    %v2708 = vld [vmem:[%s55 + $0x1] sm:$0x1]
    %v2711 = vlaneseq
    %v2712 = vshrl.u32 %v2711, 7
    %v2713 = vsub.s32 0, %v2712
    %v2714 = vrot.slane %v2707, %v2713
    %v2715 = vlaneseq
    %v2716 = vshrl.u32 %v2715, 7
    %v2717 = vsub.s32 0, %v2716
    %v2718 = vrot.slane %v2708, %v2717
    %v2722 = vsel %vm492, %v2697, 0
    %2724 = vmatprep.subr.mxu0 0.0
    %2725 = vmatpush1.msra.mxu0 %v2699
    %2726 = vmatprep.subr.mxu0 0.0
    %2727 = vmatpush1.msra.mxu0 %v2700
    %2728 = vmatprep.subr.mxu0 0.0
    %2729 = vmatpush1.msra.mxu0 %v2701
    %2730 = vmatprep.subr.mxu0 0.0
    %2731 = vmatpush1.msra.mxu0 %v2702
    %2732 = vmatprep.subr.mxu0 0.0
    %2733 = vmatpush1.msra.mxu0 0.0
    %2734 = vmatprep.subr.mxu0 0.0
    %2735 = vmatpush1.msra.mxu0 0.0
    %2736 = vmatprep.subr.mxu0 0.0
    %2737 = vmatpush1.msra.mxu0 0.0
    %2738 = vmatprep.subr.mxu0 0.0
    %2739 = vmatpush1.msra.mxu0 0.0
    %2740 = vmatprep.subr.mxu0 0.0
    %2741 = vmatpush1.msra.mxu0 0.0
    %2742 = vmatprep.subr.mxu0 0.0
    %2743 = vmatpush1.msra.mxu0 0.0
    %2744 = vmatprep.subr.mxu0 0.0
    %2745 = vmatpush1.msra.mxu0 0.0
    %2746 = vmatprep.subr.mxu0 0.0
    %2747 = vmatpush1.msra.mxu0 0.0
    %2748 = vmatprep.subr.mxu0 0.0
    %2749 = vmatpush1.msra.mxu0 0.0
    %2750 = vmatprep.subr.mxu0 0.0
    %2751 = vmatpush1.msra.mxu0 0.0
    %2752 = vmatprep.subr.mxu0 0.0
    %2753 = vmatpush1.msra.mxu0 0.0
    %2754 = vmatprep.subr.mxu0 0.0
    %2755 = vmatpush1.msra.mxu0 0.0
    %2756 = vmatprep.subr.mxu0 0.0
    %2757 = vmatpush1.msra.mxu0 0.0
    %2758 = vmatprep.subr.mxu0 0.0
    %2759 = vmatpush1.msra.mxu0 0.0
    %2760 = vmatprep.subr.mxu0 0.0
    %2761 = vmatpush1.msra.mxu0 0.0
    %2762 = vmatprep.subr.mxu0 0.0
    %2763 = vmatpush1.msra.mxu0 0.0
    %2764 = vmatprep.subr.mxu0 0.0
    %2765 = vmatpush1.msra.mxu0 0.0
    %2766 = vmatprep.subr.mxu0 0.0
    %2767 = vmatpush1.msra.mxu0 0.0
    %2768 = vmatprep.subr.mxu0 0.0
    %2769 = vmatpush1.msra.mxu0 0.0
    %2770 = vmatprep.subr.mxu0 0.0
    %2771 = vmatpush1.msra.mxu0 0.0
    %2772 = vmatprep.subr.mxu0 0.0
    %2773 = vmatpush1.msra.mxu0 0.0
    %2774 = vmatprep.subr.mxu0 0.0
    %2775 = vmatpush1.msra.mxu0 0.0
    %2776 = vmatprep.subr.mxu0 0.0
    %2777 = vmatpush1.msra.mxu0 0.0
    %2778 = vmatprep.subr.mxu0 0.0
    %2779 = vmatpush1.msra.mxu0 0.0
    %2780 = vmatprep.subr.mxu0 0.0
    %2781 = vmatpush1.msra.mxu0 0.0
    %2782 = vmatprep.subr.mxu0 0.0
    %2783 = vmatpush1.msra.mxu0 0.0
    %2784 = vmatprep.subr.mxu0 0.0
    %2785 = vmatpush1.msra.mxu0 0.0
    %2786 = vmatprep.subr.mxu0 0.0
    %2787 = vmatpush1.msra.mxu0 0.0
    %2788 = vmatprep.mubr.f32.mxu0 0.0
    %2789 = vmatmul.mubr.f32.gmra.mrb[0].mxu0 %v2722
    %v2790 = vpop.f32.mrb[0].mxu0
    %v2791 = vadd.f32 %v2714, %v2790
    %v2792 = vpop.f32.mrb[0].mxu0
    %2793 = vdwg.mxu0
    %2794 = vmatprep.subr.mxu0 0.0
    %2795 = vmatpush1.msra.mxu0 %v2703
    %2796 = vmatprep.subr.mxu0 0.0
    %2797 = vmatpush1.msra.mxu0 %v2704
    %2798 = vmatprep.subr.mxu0 0.0
    %2799 = vmatpush1.msra.mxu0 %v2705
    %2800 = vmatprep.subr.mxu0 0.0
    %2801 = vmatpush1.msra.mxu0 %v2706
    %2802 = vmatprep.subr.mxu0 0.0
    %2803 = vmatpush1.msra.mxu0 0.0
    %2804 = vmatprep.subr.mxu0 0.0
    %2805 = vmatpush1.msra.mxu0 0.0
    %2806 = vmatprep.subr.mxu0 0.0
    %2807 = vmatpush1.msra.mxu0 0.0
    %2808 = vmatprep.subr.mxu0 0.0
    %2809 = vmatpush1.msra.mxu0 0.0
    %2810 = vmatprep.subr.mxu0 0.0
    %2811 = vmatpush1.msra.mxu0 0.0
    %2812 = vmatprep.subr.mxu0 0.0
    %2813 = vmatpush1.msra.mxu0 0.0
    %2814 = vmatprep.subr.mxu0 0.0
    %2815 = vmatpush1.msra.mxu0 0.0
    %2816 = vmatprep.subr.mxu0 0.0
    %2817 = vmatpush1.msra.mxu0 0.0
    %2818 = vmatprep.subr.mxu0 0.0
    %2819 = vmatpush1.msra.mxu0 0.0
    %2820 = vmatprep.subr.mxu0 0.0
    %2821 = vmatpush1.msra.mxu0 0.0
    %2822 = vmatprep.subr.mxu0 0.0
    %2823 = vmatpush1.msra.mxu0 0.0
    %2824 = vmatprep.subr.mxu0 0.0
    %2825 = vmatpush1.msra.mxu0 0.0
    %2826 = vmatprep.subr.mxu0 0.0
    %2827 = vmatpush1.msra.mxu0 0.0
    %2828 = vmatprep.subr.mxu0 0.0
    %2829 = vmatpush1.msra.mxu0 0.0
    %2830 = vmatprep.subr.mxu0 0.0
    %2831 = vmatpush1.msra.mxu0 0.0
    %2832 = vmatprep.subr.mxu0 0.0
    %2833 = vmatpush1.msra.mxu0 0.0
    %2834 = vmatprep.subr.mxu0 0.0
    %2835 = vmatpush1.msra.mxu0 0.0
    %2836 = vmatprep.subr.mxu0 0.0
    %2837 = vmatpush1.msra.mxu0 0.0
    %2838 = vmatprep.subr.mxu0 0.0
    %2839 = vmatpush1.msra.mxu0 0.0
    %2840 = vmatprep.subr.mxu0 0.0
    %2841 = vmatpush1.msra.mxu0 0.0
    %2842 = vmatprep.subr.mxu0 0.0
    %2843 = vmatpush1.msra.mxu0 0.0
    %2844 = vmatprep.subr.mxu0 0.0
    %2845 = vmatpush1.msra.mxu0 0.0
    %2846 = vmatprep.subr.mxu0 0.0
    %2847 = vmatpush1.msra.mxu0 0.0
    %2848 = vmatprep.subr.mxu0 0.0
    %2849 = vmatpush1.msra.mxu0 0.0
    %2850 = vmatprep.subr.mxu0 0.0
    %2851 = vmatpush1.msra.mxu0 0.0
    %2852 = vmatprep.subr.mxu0 0.0
    %2853 = vmatpush1.msra.mxu0 0.0
    %2854 = vmatprep.subr.mxu0 0.0
    %2855 = vmatpush1.msra.mxu0 0.0
    %2856 = vmatprep.subr.mxu0 0.0
    %2857 = vmatpush1.msra.mxu0 0.0
    %2858 = vmatprep.mubr.f32.mxu0 0.0
    %2859 = vmatmul.mubr.f32.gmra.mrb[0].mxu0 %v2722
    %v2860 = vpop.f32.mrb[0].mxu0
    %v2861 = vadd.f32 %v2718, %v2860
    %v2862 = vpop.f32.mrb[0].mxu0
    %2863 = vdwg.mxu0
    %v2865 = vsel %vm492, %v2698, 0
    %2867 = vmatprep.subr.mxu0 0.0
    %2868 = vmatpush1.msra.mxu0 %v2699
    %2869 = vmatprep.subr.mxu0 0.0
    %2870 = vmatpush1.msra.mxu0 %v2700
    %2871 = vmatprep.subr.mxu0 0.0
    %2872 = vmatpush1.msra.mxu0 %v2701
    %2873 = vmatprep.subr.mxu0 0.0
    %2874 = vmatpush1.msra.mxu0 %v2702
    %2875 = vmatprep.subr.mxu0 0.0
    %2876 = vmatpush1.msra.mxu0 0.0
    %2877 = vmatprep.subr.mxu0 0.0
    %2878 = vmatpush1.msra.mxu0 0.0
    %2879 = vmatprep.subr.mxu0 0.0
    %2880 = vmatpush1.msra.mxu0 0.0
    %2881 = vmatprep.subr.mxu0 0.0
    %2882 = vmatpush1.msra.mxu0 0.0
    %2883 = vmatprep.subr.mxu0 0.0
    %2884 = vmatpush1.msra.mxu0 0.0
    %2885 = vmatprep.subr.mxu0 0.0
    %2886 = vmatpush1.msra.mxu0 0.0
    %2887 = vmatprep.subr.mxu0 0.0
    %2888 = vmatpush1.msra.mxu0 0.0
    %2889 = vmatprep.subr.mxu0 0.0
    %2890 = vmatpush1.msra.mxu0 0.0
    %2891 = vmatprep.subr.mxu0 0.0
    %2892 = vmatpush1.msra.mxu0 0.0
    %2893 = vmatprep.subr.mxu0 0.0
    %2894 = vmatpush1.msra.mxu0 0.0
    %2895 = vmatprep.subr.mxu0 0.0
    %2896 = vmatpush1.msra.mxu0 0.0
    %2897 = vmatprep.subr.mxu0 0.0
    %2898 = vmatpush1.msra.mxu0 0.0
    %2899 = vmatprep.subr.mxu0 0.0
    %2900 = vmatpush1.msra.mxu0 0.0
    %2901 = vmatprep.subr.mxu0 0.0
    %2902 = vmatpush1.msra.mxu0 0.0
    %2903 = vmatprep.subr.mxu0 0.0
    %2904 = vmatpush1.msra.mxu0 0.0
    %2905 = vmatprep.subr.mxu0 0.0
    %2906 = vmatpush1.msra.mxu0 0.0
    %2907 = vmatprep.subr.mxu0 0.0
    %2908 = vmatpush1.msra.mxu0 0.0
    %2909 = vmatprep.subr.mxu0 0.0
    %2910 = vmatpush1.msra.mxu0 0.0
    %2911 = vmatprep.subr.mxu0 0.0
    %2912 = vmatpush1.msra.mxu0 0.0
    %2913 = vmatprep.subr.mxu0 0.0
    %2914 = vmatpush1.msra.mxu0 0.0
    %2915 = vmatprep.subr.mxu0 0.0
    %2916 = vmatpush1.msra.mxu0 0.0
    %2917 = vmatprep.subr.mxu0 0.0
    %2918 = vmatpush1.msra.mxu0 0.0
    %2919 = vmatprep.subr.mxu0 0.0
    %2920 = vmatpush1.msra.mxu0 0.0
    %2921 = vmatprep.subr.mxu0 0.0
    %2922 = vmatpush1.msra.mxu0 0.0
    %2923 = vmatprep.subr.mxu0 0.0
    %2924 = vmatpush1.msra.mxu0 0.0
    %2925 = vmatprep.subr.mxu0 0.0
    %2926 = vmatpush1.msra.mxu0 0.0
    %2927 = vmatprep.subr.mxu0 0.0
    %2928 = vmatpush1.msra.mxu0 0.0
    %2929 = vmatprep.subr.mxu0 0.0
    %2930 = vmatpush1.msra.mxu0 0.0
    %2931 = vmatprep.mubr.f32.mxu0 0.0
    %2932 = vmatmul.mubr.f32.gmra.mrb[0].mxu0 %v2865
    %v2933 = vpop.f32.mrb[0].mxu0
    %v2934 = vadd.f32 %v2714, %v2933
    %v2935 = vpop.f32.mrb[0].mxu0
    %2936 = vdwg.mxu0
    %2937 = vmatprep.subr.mxu0 0.0
    %2938 = vmatpush1.msra.mxu0 %v2703
    %2939 = vmatprep.subr.mxu0 0.0
    %2940 = vmatpush1.msra.mxu0 %v2704
    %2941 = vmatprep.subr.mxu0 0.0
    %2942 = vmatpush1.msra.mxu0 %v2705
    %2943 = vmatprep.subr.mxu0 0.0
    %2944 = vmatpush1.msra.mxu0 %v2706
    %2945 = vmatprep.subr.mxu0 0.0
    %2946 = vmatpush1.msra.mxu0 0.0
    %2947 = vmatprep.subr.mxu0 0.0
    %2948 = vmatpush1.msra.mxu0 0.0
    %2949 = vmatprep.subr.mxu0 0.0
    %2950 = vmatpush1.msra.mxu0 0.0
    %2951 = vmatprep.subr.mxu0 0.0
    %2952 = vmatpush1.msra.mxu0 0.0
    %2953 = vmatprep.subr.mxu0 0.0
    %2954 = vmatpush1.msra.mxu0 0.0
    %2955 = vmatprep.subr.mxu0 0.0
    %2956 = vmatpush1.msra.mxu0 0.0
    %2957 = vmatprep.subr.mxu0 0.0
    %2958 = vmatpush1.msra.mxu0 0.0
    %2959 = vmatprep.subr.mxu0 0.0
    %2960 = vmatpush1.msra.mxu0 0.0
    %2961 = vmatprep.subr.mxu0 0.0
    %2962 = vmatpush1.msra.mxu0 0.0
    %2963 = vmatprep.subr.mxu0 0.0
    %2964 = vmatpush1.msra.mxu0 0.0
    %2965 = vmatprep.subr.mxu0 0.0
    %2966 = vmatpush1.msra.mxu0 0.0
    %2967 = vmatprep.subr.mxu0 0.0
    %2968 = vmatpush1.msra.mxu0 0.0
    %2969 = vmatprep.subr.mxu0 0.0
    %2970 = vmatpush1.msra.mxu0 0.0
    %2971 = vmatprep.subr.mxu0 0.0
    %2972 = vmatpush1.msra.mxu0 0.0
    %2973 = vmatprep.subr.mxu0 0.0
    %2974 = vmatpush1.msra.mxu0 0.0
    %2975 = vmatprep.subr.mxu0 0.0
    %2976 = vmatpush1.msra.mxu0 0.0
    %2977 = vmatprep.subr.mxu0 0.0
    %2978 = vmatpush1.msra.mxu0 0.0
    %2979 = vmatprep.subr.mxu0 0.0
    %2980 = vmatpush1.msra.mxu0 0.0
    %2981 = vmatprep.subr.mxu0 0.0
    %2982 = vmatpush1.msra.mxu0 0.0
    %2983 = vmatprep.subr.mxu0 0.0
    %2984 = vmatpush1.msra.mxu0 0.0
    %2985 = vmatprep.subr.mxu0 0.0
    %2986 = vmatpush1.msra.mxu0 0.0
    %2987 = vmatprep.subr.mxu0 0.0
    %2988 = vmatpush1.msra.mxu0 0.0
    %2989 = vmatprep.subr.mxu0 0.0
    %2990 = vmatpush1.msra.mxu0 0.0
    %2991 = vmatprep.subr.mxu0 0.0
    %2992 = vmatpush1.msra.mxu0 0.0
    %2993 = vmatprep.subr.mxu0 0.0
    %2994 = vmatpush1.msra.mxu0 0.0
    %2995 = vmatprep.subr.mxu0 0.0
    %2996 = vmatpush1.msra.mxu0 0.0
    %2997 = vmatprep.subr.mxu0 0.0
    %2998 = vmatpush1.msra.mxu0 0.0
    %2999 = vmatprep.subr.mxu0 0.0
    %3000 = vmatpush1.msra.mxu0 0.0
    %3001 = vmatprep.mubr.f32.mxu0 0.0
    %3002 = vmatmul.mubr.f32.gmra.mrb[0].mxu0 %v2865
    %v3003 = vpop.f32.mrb[0].mxu0
    %v3004 = vadd.f32 %v2718, %v3003
    %v3005 = vpop.f32.mrb[0].mxu0
    %3006 = vdwg.mxu0
    %v3007 = vld [vmem:[%s51] sm:$0xff]
    %v3008 = vld [vmem:[%s51 + $0x8] sm:$0xff]
    %v3009 = vld [vmem:[%s51 + $0x10] sm:$0xff]
    %v3010 = vld [vmem:[%s51 + $0x18] sm:$0xff]
    %v3011 = vld [vmem:[%s51 + $0x20] sm:$0xff]
    %v3012 = vld [vmem:[%s51 + $0x28] sm:$0xff]
    %v3013 = vld [vmem:[%s51 + $0x30] sm:$0xff]
    %v3014 = vld [vmem:[%s51 + $0x38] sm:$0xff]
    %v3015 = vld [vmem:[%s57] sm:$0x1]
    %v3016 = vld [vmem:[%s57 + $0x1] sm:$0x1]
    %v3019 = vlaneseq
    %v3020 = vshrl.u32 %v3019, 7
    %v3021 = vsub.s32 0, %v3020
    %v3022 = vrot.slane %v3015, %v3021
    %v3023 = vlaneseq
    %v3024 = vshrl.u32 %v3023, 7
    %v3025 = vsub.s32 0, %v3024
    %v3026 = vrot.slane %v3016, %v3025
    %3029 = vmatprep.subr.mxu0 0.0
    %3030 = vmatpush1.msra.mxu0 %v3007
    %3031 = vmatprep.subr.mxu0 0.0
    %3032 = vmatpush1.msra.mxu0 %v3008
    %3033 = vmatprep.subr.mxu0 0.0
    %3034 = vmatpush1.msra.mxu0 %v3009
    %3035 = vmatprep.subr.mxu0 0.0
    %3036 = vmatpush1.msra.mxu0 %v3010
    %3037 = vmatprep.subr.mxu0 0.0
    %3038 = vmatpush1.msra.mxu0 0.0
    %3039 = vmatprep.subr.mxu0 0.0
    %3040 = vmatpush1.msra.mxu0 0.0
    %3041 = vmatprep.subr.mxu0 0.0
    %3042 = vmatpush1.msra.mxu0 0.0
    %3043 = vmatprep.subr.mxu0 0.0
    %3044 = vmatpush1.msra.mxu0 0.0
    %3045 = vmatprep.subr.mxu0 0.0
    %3046 = vmatpush1.msra.mxu0 0.0
    %3047 = vmatprep.subr.mxu0 0.0
    %3048 = vmatpush1.msra.mxu0 0.0
    %3049 = vmatprep.subr.mxu0 0.0
    %3050 = vmatpush1.msra.mxu0 0.0
    %3051 = vmatprep.subr.mxu0 0.0
    %3052 = vmatpush1.msra.mxu0 0.0
    %3053 = vmatprep.subr.mxu0 0.0
    %3054 = vmatpush1.msra.mxu0 0.0
    %3055 = vmatprep.subr.mxu0 0.0
    %3056 = vmatpush1.msra.mxu0 0.0
    %3057 = vmatprep.subr.mxu0 0.0
    %3058 = vmatpush1.msra.mxu0 0.0
    %3059 = vmatprep.subr.mxu0 0.0
    %3060 = vmatpush1.msra.mxu0 0.0
    %3061 = vmatprep.subr.mxu0 0.0
    %3062 = vmatpush1.msra.mxu0 0.0
    %3063 = vmatprep.subr.mxu0 0.0
    %3064 = vmatpush1.msra.mxu0 0.0
    %3065 = vmatprep.subr.mxu0 0.0
    %3066 = vmatpush1.msra.mxu0 0.0
    %3067 = vmatprep.subr.mxu0 0.0
    %3068 = vmatpush1.msra.mxu0 0.0
    %3069 = vmatprep.subr.mxu0 0.0
    %3070 = vmatpush1.msra.mxu0 0.0
    %3071 = vmatprep.subr.mxu0 0.0
    %3072 = vmatpush1.msra.mxu0 0.0
    %3073 = vmatprep.subr.mxu0 0.0
    %3074 = vmatpush1.msra.mxu0 0.0
    %3075 = vmatprep.subr.mxu0 0.0
    %3076 = vmatpush1.msra.mxu0 0.0
    %3077 = vmatprep.subr.mxu0 0.0
    %3078 = vmatpush1.msra.mxu0 0.0
    %3079 = vmatprep.subr.mxu0 0.0
    %3080 = vmatpush1.msra.mxu0 0.0
    %3081 = vmatprep.subr.mxu0 0.0
    %3082 = vmatpush1.msra.mxu0 0.0
    %3083 = vmatprep.subr.mxu0 0.0
    %3084 = vmatpush1.msra.mxu0 0.0
    %3085 = vmatprep.subr.mxu0 0.0
    %3086 = vmatpush1.msra.mxu0 0.0
    %3087 = vmatprep.subr.mxu0 0.0
    %3088 = vmatpush1.msra.mxu0 0.0
    %3089 = vmatprep.subr.mxu0 0.0
    %3090 = vmatpush1.msra.mxu0 0.0
    %3091 = vmatprep.subr.mxu0 0.0
    %3092 = vmatpush1.msra.mxu0 0.0
    %3093 = vmatprep.mubr.f32.mxu0 0.0
    %3094 = vmatmul.mubr.f32.gmra.mrb[0].mxu0 %v2722
    %v3095 = vpop.f32.mrb[0].mxu0
    %v3096 = vadd.f32 %v3022, %v3095
    %v3097 = vpop.f32.mrb[0].mxu0
    %3098 = vdwg.mxu0
    %3099 = vmatprep.subr.mxu0 0.0
    %3100 = vmatpush1.msra.mxu0 %v3011
    %3101 = vmatprep.subr.mxu0 0.0
    %3102 = vmatpush1.msra.mxu0 %v3012
    %3103 = vmatprep.subr.mxu0 0.0
    %3104 = vmatpush1.msra.mxu0 %v3013
    %3105 = vmatprep.subr.mxu0 0.0
    %3106 = vmatpush1.msra.mxu0 %v3014
    %3107 = vmatprep.subr.mxu0 0.0
    %3108 = vmatpush1.msra.mxu0 0.0
    %3109 = vmatprep.subr.mxu0 0.0
    %3110 = vmatpush1.msra.mxu0 0.0
    %3111 = vmatprep.subr.mxu0 0.0
    %3112 = vmatpush1.msra.mxu0 0.0
    %3113 = vmatprep.subr.mxu0 0.0
    %3114 = vmatpush1.msra.mxu0 0.0
    %3115 = vmatprep.subr.mxu0 0.0
    %3116 = vmatpush1.msra.mxu0 0.0
    %3117 = vmatprep.subr.mxu0 0.0
    %3118 = vmatpush1.msra.mxu0 0.0
    %3119 = vmatprep.subr.mxu0 0.0
    %3120 = vmatpush1.msra.mxu0 0.0
    %3121 = vmatprep.subr.mxu0 0.0
    %3122 = vmatpush1.msra.mxu0 0.0
    %3123 = vmatprep.subr.mxu0 0.0
    %3124 = vmatpush1.msra.mxu0 0.0
    %3125 = vmatprep.subr.mxu0 0.0
    %3126 = vmatpush1.msra.mxu0 0.0
    %3127 = vmatprep.subr.mxu0 0.0
    %3128 = vmatpush1.msra.mxu0 0.0
    %3129 = vmatprep.subr.mxu0 0.0
    %3130 = vmatpush1.msra.mxu0 0.0
    %3131 = vmatprep.subr.mxu0 0.0
    %3132 = vmatpush1.msra.mxu0 0.0
    %3133 = vmatprep.subr.mxu0 0.0
    %3134 = vmatpush1.msra.mxu0 0.0
    %3135 = vmatprep.subr.mxu0 0.0
    %3136 = vmatpush1.msra.mxu0 0.0
    %3137 = vmatprep.subr.mxu0 0.0
    %3138 = vmatpush1.msra.mxu0 0.0
    %3139 = vmatprep.subr.mxu0 0.0
    %3140 = vmatpush1.msra.mxu0 0.0
    %3141 = vmatprep.subr.mxu0 0.0
    %3142 = vmatpush1.msra.mxu0 0.0
    %3143 = vmatprep.subr.mxu0 0.0
    %3144 = vmatpush1.msra.mxu0 0.0
    %3145 = vmatprep.subr.mxu0 0.0
    %3146 = vmatpush1.msra.mxu0 0.0
    %3147 = vmatprep.subr.mxu0 0.0
    %3148 = vmatpush1.msra.mxu0 0.0
    %3149 = vmatprep.subr.mxu0 0.0
    %3150 = vmatpush1.msra.mxu0 0.0
    %3151 = vmatprep.subr.mxu0 0.0
    %3152 = vmatpush1.msra.mxu0 0.0
    %3153 = vmatprep.subr.mxu0 0.0
    %3154 = vmatpush1.msra.mxu0 0.0
    %3155 = vmatprep.subr.mxu0 0.0
    %3156 = vmatpush1.msra.mxu0 0.0
    %3157 = vmatprep.subr.mxu0 0.0
    %3158 = vmatpush1.msra.mxu0 0.0
    %3159 = vmatprep.subr.mxu0 0.0
    %3160 = vmatpush1.msra.mxu0 0.0
    %3161 = vmatprep.subr.mxu0 0.0
    %3162 = vmatpush1.msra.mxu0 0.0
    %3163 = vmatprep.mubr.f32.mxu0 0.0
    %3164 = vmatmul.mubr.f32.gmra.mrb[0].mxu0 %v2722
    %v3165 = vpop.f32.mrb[0].mxu0
    %v3166 = vadd.f32 %v3026, %v3165
    %v3167 = vpop.f32.mrb[0].mxu0
    %3168 = vdwg.mxu0
    %3169 = vmatprep.subr.mxu0 0.0
    %3170 = vmatpush1.msra.mxu0 %v3007
    %3171 = vmatprep.subr.mxu0 0.0
    %3172 = vmatpush1.msra.mxu0 %v3008
    %3173 = vmatprep.subr.mxu0 0.0
    %3174 = vmatpush1.msra.mxu0 %v3009
    %3175 = vmatprep.subr.mxu0 0.0
    %3176 = vmatpush1.msra.mxu0 %v3010
    %3177 = vmatprep.subr.mxu0 0.0
    %3178 = vmatpush1.msra.mxu0 0.0
    %3179 = vmatprep.subr.mxu0 0.0
    %3180 = vmatpush1.msra.mxu0 0.0
    %3181 = vmatprep.subr.mxu0 0.0
    %3182 = vmatpush1.msra.mxu0 0.0
    %3183 = vmatprep.subr.mxu0 0.0
    %3184 = vmatpush1.msra.mxu0 0.0
    %3185 = vmatprep.subr.mxu0 0.0
    %3186 = vmatpush1.msra.mxu0 0.0
    %3187 = vmatprep.subr.mxu0 0.0
    %3188 = vmatpush1.msra.mxu0 0.0
    %3189 = vmatprep.subr.mxu0 0.0
    %3190 = vmatpush1.msra.mxu0 0.0
    %3191 = vmatprep.subr.mxu0 0.0
    %3192 = vmatpush1.msra.mxu0 0.0
    %3193 = vmatprep.subr.mxu0 0.0
    %3194 = vmatpush1.msra.mxu0 0.0
    %3195 = vmatprep.subr.mxu0 0.0
    %3196 = vmatpush1.msra.mxu0 0.0
    %3197 = vmatprep.subr.mxu0 0.0
    %3198 = vmatpush1.msra.mxu0 0.0
    %3199 = vmatprep.subr.mxu0 0.0
    %3200 = vmatpush1.msra.mxu0 0.0
    %3201 = vmatprep.subr.mxu0 0.0
    %3202 = vmatpush1.msra.mxu0 0.0
    %3203 = vmatprep.subr.mxu0 0.0
    %3204 = vmatpush1.msra.mxu0 0.0
    %3205 = vmatprep.subr.mxu0 0.0
    %3206 = vmatpush1.msra.mxu0 0.0
    %3207 = vmatprep.subr.mxu0 0.0
    %3208 = vmatpush1.msra.mxu0 0.0
    %3209 = vmatprep.subr.mxu0 0.0
    %3210 = vmatpush1.msra.mxu0 0.0
    %3211 = vmatprep.subr.mxu0 0.0
    %3212 = vmatpush1.msra.mxu0 0.0
    %3213 = vmatprep.subr.mxu0 0.0
    %3214 = vmatpush1.msra.mxu0 0.0
    %3215 = vmatprep.subr.mxu0 0.0
    %3216 = vmatpush1.msra.mxu0 0.0
    %3217 = vmatprep.subr.mxu0 0.0
    %3218 = vmatpush1.msra.mxu0 0.0
    %3219 = vmatprep.subr.mxu0 0.0
    %3220 = vmatpush1.msra.mxu0 0.0
    %3221 = vmatprep.subr.mxu0 0.0
    %3222 = vmatpush1.msra.mxu0 0.0
    %3223 = vmatprep.subr.mxu0 0.0
    %3224 = vmatpush1.msra.mxu0 0.0
    %3225 = vmatprep.subr.mxu0 0.0
    %3226 = vmatpush1.msra.mxu0 0.0
    %3227 = vmatprep.subr.mxu0 0.0
    %3228 = vmatpush1.msra.mxu0 0.0
    %3229 = vmatprep.subr.mxu0 0.0
    %3230 = vmatpush1.msra.mxu0 0.0
    %3231 = vmatprep.subr.mxu0 0.0
    %3232 = vmatpush1.msra.mxu0 0.0
    %3233 = vmatprep.mubr.f32.mxu0 0.0
    %3234 = vmatmul.mubr.f32.gmra.mrb[0].mxu0 %v2865
    %v3235 = vpop.f32.mrb[0].mxu0
    %v3236 = vadd.f32 %v3022, %v3235
    %v3237 = vpop.f32.mrb[0].mxu0
    %3238 = vdwg.mxu0
    %3239 = vmatprep.subr.mxu0 0.0
    %3240 = vmatpush1.msra.mxu0 %v3011
    %3241 = vmatprep.subr.mxu0 0.0
    %3242 = vmatpush1.msra.mxu0 %v3012
    %3243 = vmatprep.subr.mxu0 0.0
    %3244 = vmatpush1.msra.mxu0 %v3013
    %3245 = vmatprep.subr.mxu0 0.0
    %3246 = vmatpush1.msra.mxu0 %v3014
    %3247 = vmatprep.subr.mxu0 0.0
    %3248 = vmatpush1.msra.mxu0 0.0
    %3249 = vmatprep.subr.mxu0 0.0
    %3250 = vmatpush1.msra.mxu0 0.0
    %3251 = vmatprep.subr.mxu0 0.0
    %3252 = vmatpush1.msra.mxu0 0.0
    %3253 = vmatprep.subr.mxu0 0.0
    %3254 = vmatpush1.msra.mxu0 0.0
    %3255 = vmatprep.subr.mxu0 0.0
    %3256 = vmatpush1.msra.mxu0 0.0
    %3257 = vmatprep.subr.mxu0 0.0
    %3258 = vmatpush1.msra.mxu0 0.0
    %3259 = vmatprep.subr.mxu0 0.0
    %3260 = vmatpush1.msra.mxu0 0.0
    %3261 = vmatprep.subr.mxu0 0.0
    %3262 = vmatpush1.msra.mxu0 0.0
    %3263 = vmatprep.subr.mxu0 0.0
    %3264 = vmatpush1.msra.mxu0 0.0
    %3265 = vmatprep.subr.mxu0 0.0
    %3266 = vmatpush1.msra.mxu0 0.0
    %3267 = vmatprep.subr.mxu0 0.0
    %3268 = vmatpush1.msra.mxu0 0.0
    %3269 = vmatprep.subr.mxu0 0.0
    %3270 = vmatpush1.msra.mxu0 0.0
    %3271 = vmatprep.subr.mxu0 0.0
    %3272 = vmatpush1.msra.mxu0 0.0
    %3273 = vmatprep.subr.mxu0 0.0
    %3274 = vmatpush1.msra.mxu0 0.0
    %3275 = vmatprep.subr.mxu0 0.0
    %3276 = vmatpush1.msra.mxu0 0.0
    %3277 = vmatprep.subr.mxu0 0.0
    %3278 = vmatpush1.msra.mxu0 0.0
    %3279 = vmatprep.subr.mxu0 0.0
    %3280 = vmatpush1.msra.mxu0 0.0
    %3281 = vmatprep.subr.mxu0 0.0
    %3282 = vmatpush1.msra.mxu0 0.0
    %3283 = vmatprep.subr.mxu0 0.0
    %3284 = vmatpush1.msra.mxu0 0.0
    %3285 = vmatprep.subr.mxu0 0.0
    %3286 = vmatpush1.msra.mxu0 0.0
    %3287 = vmatprep.subr.mxu0 0.0
    %3288 = vmatpush1.msra.mxu0 0.0
    %3289 = vmatprep.subr.mxu0 0.0
    %3290 = vmatpush1.msra.mxu0 0.0
    %3291 = vmatprep.subr.mxu0 0.0
    %3292 = vmatpush1.msra.mxu0 0.0
    %3293 = vmatprep.subr.mxu0 0.0
    %3294 = vmatpush1.msra.mxu0 0.0
    %3295 = vmatprep.subr.mxu0 0.0
    %3296 = vmatpush1.msra.mxu0 0.0
    %3297 = vmatprep.subr.mxu0 0.0
    %3298 = vmatpush1.msra.mxu0 0.0
    %3299 = vmatprep.subr.mxu0 0.0
    %3300 = vmatpush1.msra.mxu0 0.0
    %3301 = vmatprep.subr.mxu0 0.0
    %3302 = vmatpush1.msra.mxu0 0.0
    %3303 = vmatprep.mubr.f32.mxu0 0.0
    %3304 = vmatmul.mubr.f32.gmra.mrb[0].mxu0 %v2865
    %v3305 = vpop.f32.mrb[0].mxu0
    %v3306 = vadd.f32 %v3026, %v3305
    %v3307 = vpop.f32.mrb[0].mxu0
    %3308 = vdwg.mxu0
    %v3309 = vld [vmem:[%s53] sm:$0xff]
    %v3310 = vld [vmem:[%s53 + $0x8] sm:$0xff]
    %v3311 = vld [vmem:[%s53 + $0x10] sm:$0xff]
    %v3312 = vld [vmem:[%s53 + $0x18] sm:$0xff]
    %v3313 = vld [vmem:[%s53 + $0x20] sm:$0xff]
    %v3314 = vld [vmem:[%s53 + $0x28] sm:$0xff]
    %v3315 = vld [vmem:[%s53 + $0x30] sm:$0xff]
    %v3316 = vld [vmem:[%s53 + $0x38] sm:$0xff]
    %v3317 = vld [vmem:[%s59] sm:$0x1]
    %v3318 = vld [vmem:[%s59 + $0x1] sm:$0x1]
    %v3321 = vlaneseq
    %v3322 = vshrl.u32 %v3321, 7
    %v3323 = vsub.s32 0, %v3322
    %v3324 = vrot.slane %v3317, %v3323
    %v3325 = vlaneseq
    %v3326 = vshrl.u32 %v3325, 7
    %v3327 = vsub.s32 0, %v3326
    %v3328 = vrot.slane %v3318, %v3327
    %3331 = vmatprep.subr.mxu0 0.0
    %3332 = vmatpush1.msra.mxu0 %v3309
    %3333 = vmatprep.subr.mxu0 0.0
    %3334 = vmatpush1.msra.mxu0 %v3310
    %3335 = vmatprep.subr.mxu0 0.0
    %3336 = vmatpush1.msra.mxu0 %v3311
    %3337 = vmatprep.subr.mxu0 0.0
    %3338 = vmatpush1.msra.mxu0 %v3312
    %3339 = vmatprep.subr.mxu0 0.0
    %3340 = vmatpush1.msra.mxu0 0.0
    %3341 = vmatprep.subr.mxu0 0.0
    %3342 = vmatpush1.msra.mxu0 0.0
    %3343 = vmatprep.subr.mxu0 0.0
    %3344 = vmatpush1.msra.mxu0 0.0
    %3345 = vmatprep.subr.mxu0 0.0
    %3346 = vmatpush1.msra.mxu0 0.0
    %3347 = vmatprep.subr.mxu0 0.0
    %3348 = vmatpush1.msra.mxu0 0.0
    %3349 = vmatprep.subr.mxu0 0.0
    %3350 = vmatpush1.msra.mxu0 0.0
    %3351 = vmatprep.subr.mxu0 0.0
    %3352 = vmatpush1.msra.mxu0 0.0
    %3353 = vmatprep.subr.mxu0 0.0
    %3354 = vmatpush1.msra.mxu0 0.0
    %3355 = vmatprep.subr.mxu0 0.0
    %3356 = vmatpush1.msra.mxu0 0.0
    %3357 = vmatprep.subr.mxu0 0.0
    %3358 = vmatpush1.msra.mxu0 0.0
    %3359 = vmatprep.subr.mxu0 0.0
    %3360 = vmatpush1.msra.mxu0 0.0
    %3361 = vmatprep.subr.mxu0 0.0
    %3362 = vmatpush1.msra.mxu0 0.0
    %3363 = vmatprep.subr.mxu0 0.0
    %3364 = vmatpush1.msra.mxu0 0.0
    %3365 = vmatprep.subr.mxu0 0.0
    %3366 = vmatpush1.msra.mxu0 0.0
    %3367 = vmatprep.subr.mxu0 0.0
    %3368 = vmatpush1.msra.mxu0 0.0
    %3369 = vmatprep.subr.mxu0 0.0
    %3370 = vmatpush1.msra.mxu0 0.0
    %3371 = vmatprep.subr.mxu0 0.0
    %3372 = vmatpush1.msra.mxu0 0.0
    %3373 = vmatprep.subr.mxu0 0.0
    %3374 = vmatpush1.msra.mxu0 0.0
    %3375 = vmatprep.subr.mxu0 0.0
    %3376 = vmatpush1.msra.mxu0 0.0
    %3377 = vmatprep.subr.mxu0 0.0
    %3378 = vmatpush1.msra.mxu0 0.0
    %3379 = vmatprep.subr.mxu0 0.0
    %3380 = vmatpush1.msra.mxu0 0.0
    %3381 = vmatprep.subr.mxu0 0.0
    %3382 = vmatpush1.msra.mxu0 0.0
    %3383 = vmatprep.subr.mxu0 0.0
    %3384 = vmatpush1.msra.mxu0 0.0
    %3385 = vmatprep.subr.mxu0 0.0
    %3386 = vmatpush1.msra.mxu0 0.0
    %3387 = vmatprep.subr.mxu0 0.0
    %3388 = vmatpush1.msra.mxu0 0.0
    %3389 = vmatprep.subr.mxu0 0.0
    %3390 = vmatpush1.msra.mxu0 0.0
    %3391 = vmatprep.subr.mxu0 0.0
    %3392 = vmatpush1.msra.mxu0 0.0
    %3393 = vmatprep.subr.mxu0 0.0
    %3394 = vmatpush1.msra.mxu0 0.0
    %3395 = vmatprep.mubr.f32.mxu0 0.0
    %3396 = vmatmul.mubr.f32.gmra.mrb[0].mxu0 %v2722
    %v3397 = vpop.f32.mrb[0].mxu0
    %v3398 = vadd.f32 %v3324, %v3397
    %v3399 = vpop.f32.mrb[0].mxu0
    %3400 = vdwg.mxu0
    %3401 = vmatprep.subr.mxu0 0.0
    %3402 = vmatpush1.msra.mxu0 %v3313
    %3403 = vmatprep.subr.mxu0 0.0
    %3404 = vmatpush1.msra.mxu0 %v3314
    %3405 = vmatprep.subr.mxu0 0.0
    %3406 = vmatpush1.msra.mxu0 %v3315
    %3407 = vmatprep.subr.mxu0 0.0
    %3408 = vmatpush1.msra.mxu0 %v3316
    %3409 = vmatprep.subr.mxu0 0.0
    %3410 = vmatpush1.msra.mxu0 0.0
    %3411 = vmatprep.subr.mxu0 0.0
    %3412 = vmatpush1.msra.mxu0 0.0
    %3413 = vmatprep.subr.mxu0 0.0
    %3414 = vmatpush1.msra.mxu0 0.0
    %3415 = vmatprep.subr.mxu0 0.0
    %3416 = vmatpush1.msra.mxu0 0.0
    %3417 = vmatprep.subr.mxu0 0.0
    %3418 = vmatpush1.msra.mxu0 0.0
    %3419 = vmatprep.subr.mxu0 0.0
    %3420 = vmatpush1.msra.mxu0 0.0
    %3421 = vmatprep.subr.mxu0 0.0
    %3422 = vmatpush1.msra.mxu0 0.0
    %3423 = vmatprep.subr.mxu0 0.0
    %3424 = vmatpush1.msra.mxu0 0.0
    %3425 = vmatprep.subr.mxu0 0.0
    %3426 = vmatpush1.msra.mxu0 0.0
    %3427 = vmatprep.subr.mxu0 0.0
    %3428 = vmatpush1.msra.mxu0 0.0
    %3429 = vmatprep.subr.mxu0 0.0
    %3430 = vmatpush1.msra.mxu0 0.0
    %3431 = vmatprep.subr.mxu0 0.0
    %3432 = vmatpush1.msra.mxu0 0.0
    %3433 = vmatprep.subr.mxu0 0.0
    %3434 = vmatpush1.msra.mxu0 0.0
    %3435 = vmatprep.subr.mxu0 0.0
    %3436 = vmatpush1.msra.mxu0 0.0
    %3437 = vmatprep.subr.mxu0 0.0
    %3438 = vmatpush1.msra.mxu0 0.0
    %3439 = vmatprep.subr.mxu0 0.0
    %3440 = vmatpush1.msra.mxu0 0.0
    %3441 = vmatprep.subr.mxu0 0.0
    %3442 = vmatpush1.msra.mxu0 0.0
    %3443 = vmatprep.subr.mxu0 0.0
    %3444 = vmatpush1.msra.mxu0 0.0
    %3445 = vmatprep.subr.mxu0 0.0
    %3446 = vmatpush1.msra.mxu0 0.0
    %3447 = vmatprep.subr.mxu0 0.0
    %3448 = vmatpush1.msra.mxu0 0.0
    %3449 = vmatprep.subr.mxu0 0.0
    %3450 = vmatpush1.msra.mxu0 0.0
    %3451 = vmatprep.subr.mxu0 0.0
    %3452 = vmatpush1.msra.mxu0 0.0
    %3453 = vmatprep.subr.mxu0 0.0
    %3454 = vmatpush1.msra.mxu0 0.0
    %3455 = vmatprep.subr.mxu0 0.0
    %3456 = vmatpush1.msra.mxu0 0.0
    %3457 = vmatprep.subr.mxu0 0.0
    %3458 = vmatpush1.msra.mxu0 0.0
    %3459 = vmatprep.subr.mxu0 0.0
    %3460 = vmatpush1.msra.mxu0 0.0
    %3461 = vmatprep.subr.mxu0 0.0
    %3462 = vmatpush1.msra.mxu0 0.0
    %3463 = vmatprep.subr.mxu0 0.0
    %3464 = vmatpush1.msra.mxu0 0.0
    %3465 = vmatprep.mubr.f32.mxu0 0.0
    %3466 = vmatmul.mubr.f32.gmra.mrb[0].mxu0 %v2722
    %v3467 = vpop.f32.mrb[0].mxu0
    %v3468 = vadd.f32 %v3328, %v3467
    %v3469 = vpop.f32.mrb[0].mxu0
    %3470 = vdwg.mxu0
    %3471 = vmatprep.subr.mxu0 0.0
    %3472 = vmatpush1.msra.mxu0 %v3309
    %3473 = vmatprep.subr.mxu0 0.0
    %3474 = vmatpush1.msra.mxu0 %v3310
    %3475 = vmatprep.subr.mxu0 0.0
    %3476 = vmatpush1.msra.mxu0 %v3311
    %3477 = vmatprep.subr.mxu0 0.0
    %3478 = vmatpush1.msra.mxu0 %v3312
    %3479 = vmatprep.subr.mxu0 0.0
    %3480 = vmatpush1.msra.mxu0 0.0
    %3481 = vmatprep.subr.mxu0 0.0
    %3482 = vmatpush1.msra.mxu0 0.0
    %3483 = vmatprep.subr.mxu0 0.0
    %3484 = vmatpush1.msra.mxu0 0.0
    %3485 = vmatprep.subr.mxu0 0.0
    %3486 = vmatpush1.msra.mxu0 0.0
    %3487 = vmatprep.subr.mxu0 0.0
    %3488 = vmatpush1.msra.mxu0 0.0
    %3489 = vmatprep.subr.mxu0 0.0
    %3490 = vmatpush1.msra.mxu0 0.0
    %3491 = vmatprep.subr.mxu0 0.0
    %3492 = vmatpush1.msra.mxu0 0.0
    %3493 = vmatprep.subr.mxu0 0.0
    %3494 = vmatpush1.msra.mxu0 0.0
    %3495 = vmatprep.subr.mxu0 0.0
    %3496 = vmatpush1.msra.mxu0 0.0
    %3497 = vmatprep.subr.mxu0 0.0
    %3498 = vmatpush1.msra.mxu0 0.0
    %3499 = vmatprep.subr.mxu0 0.0
    %3500 = vmatpush1.msra.mxu0 0.0
    %3501 = vmatprep.subr.mxu0 0.0
    %3502 = vmatpush1.msra.mxu0 0.0
    %3503 = vmatprep.subr.mxu0 0.0
    %3504 = vmatpush1.msra.mxu0 0.0
    %3505 = vmatprep.subr.mxu0 0.0
    %3506 = vmatpush1.msra.mxu0 0.0
    %3507 = vmatprep.subr.mxu0 0.0
    %3508 = vmatpush1.msra.mxu0 0.0
    %3509 = vmatprep.subr.mxu0 0.0
    %3510 = vmatpush1.msra.mxu0 0.0
    %3511 = vmatprep.subr.mxu0 0.0
    %3512 = vmatpush1.msra.mxu0 0.0
    %3513 = vmatprep.subr.mxu0 0.0
    %3514 = vmatpush1.msra.mxu0 0.0
    %3515 = vmatprep.subr.mxu0 0.0
    %3516 = vmatpush1.msra.mxu0 0.0
    %3517 = vmatprep.subr.mxu0 0.0
    %3518 = vmatpush1.msra.mxu0 0.0
    %3519 = vmatprep.subr.mxu0 0.0
    %3520 = vmatpush1.msra.mxu0 0.0
    %3521 = vmatprep.subr.mxu0 0.0
    %3522 = vmatpush1.msra.mxu0 0.0
    %3523 = vmatprep.subr.mxu0 0.0
    %3524 = vmatpush1.msra.mxu0 0.0
    %3525 = vmatprep.subr.mxu0 0.0
    %3526 = vmatpush1.msra.mxu0 0.0
    %3527 = vmatprep.subr.mxu0 0.0
    %3528 = vmatpush1.msra.mxu0 0.0
    %3529 = vmatprep.subr.mxu0 0.0
    %3530 = vmatpush1.msra.mxu0 0.0
    %3531 = vmatprep.subr.mxu0 0.0
    %3532 = vmatpush1.msra.mxu0 0.0
    %3533 = vmatprep.subr.mxu0 0.0
    %3534 = vmatpush1.msra.mxu0 0.0
    %3535 = vmatprep.mubr.f32.mxu0 0.0
    %3536 = vmatmul.mubr.f32.gmra.mrb[0].mxu0 %v2865
    %v3537 = vpop.f32.mrb[0].mxu0
    %v3538 = vadd.f32 %v3324, %v3537
    %v3539 = vpop.f32.mrb[0].mxu0
    %3540 = vdwg.mxu0
    %3541 = vmatprep.subr.mxu0 0.0
    %3542 = vmatpush1.msra.mxu0 %v3313
    %3543 = vmatprep.subr.mxu0 0.0
    %3544 = vmatpush1.msra.mxu0 %v3314
    %3545 = vmatprep.subr.mxu0 0.0
    %3546 = vmatpush1.msra.mxu0 %v3315
    %3547 = vmatprep.subr.mxu0 0.0
    %3548 = vmatpush1.msra.mxu0 %v3316
    %3549 = vmatprep.subr.mxu0 0.0
    %3550 = vmatpush1.msra.mxu0 0.0
    %3551 = vmatprep.subr.mxu0 0.0
    %3552 = vmatpush1.msra.mxu0 0.0
    %3553 = vmatprep.subr.mxu0 0.0
    %3554 = vmatpush1.msra.mxu0 0.0
    %3555 = vmatprep.subr.mxu0 0.0
    %3556 = vmatpush1.msra.mxu0 0.0
    %3557 = vmatprep.subr.mxu0 0.0
    %3558 = vmatpush1.msra.mxu0 0.0
    %3559 = vmatprep.subr.mxu0 0.0
    %3560 = vmatpush1.msra.mxu0 0.0
    %3561 = vmatprep.subr.mxu0 0.0
    %3562 = vmatpush1.msra.mxu0 0.0
    %3563 = vmatprep.subr.mxu0 0.0
    %3564 = vmatpush1.msra.mxu0 0.0
    %3565 = vmatprep.subr.mxu0 0.0
    %3566 = vmatpush1.msra.mxu0 0.0
    %3567 = vmatprep.subr.mxu0 0.0
    %3568 = vmatpush1.msra.mxu0 0.0
    %3569 = vmatprep.subr.mxu0 0.0
    %3570 = vmatpush1.msra.mxu0 0.0
    %3571 = vmatprep.subr.mxu0 0.0
    %3572 = vmatpush1.msra.mxu0 0.0
    %3573 = vmatprep.subr.mxu0 0.0
    %3574 = vmatpush1.msra.mxu0 0.0
    %3575 = vmatprep.subr.mxu0 0.0
    %3576 = vmatpush1.msra.mxu0 0.0
    %3577 = vmatprep.subr.mxu0 0.0
    %3578 = vmatpush1.msra.mxu0 0.0
    %3579 = vmatprep.subr.mxu0 0.0
    %3580 = vmatpush1.msra.mxu0 0.0
    %3581 = vmatprep.subr.mxu0 0.0
    %3582 = vmatpush1.msra.mxu0 0.0
    %3583 = vmatprep.subr.mxu0 0.0
    %3584 = vmatpush1.msra.mxu0 0.0
    %3585 = vmatprep.subr.mxu0 0.0
    %3586 = vmatpush1.msra.mxu0 0.0
    %3587 = vmatprep.subr.mxu0 0.0
    %3588 = vmatpush1.msra.mxu0 0.0
    %3589 = vmatprep.subr.mxu0 0.0
    %3590 = vmatpush1.msra.mxu0 0.0
    %3591 = vmatprep.subr.mxu0 0.0
    %3592 = vmatpush1.msra.mxu0 0.0
    %3593 = vmatprep.subr.mxu0 0.0
    %3594 = vmatpush1.msra.mxu0 0.0
    %3595 = vmatprep.subr.mxu0 0.0
    %3596 = vmatpush1.msra.mxu0 0.0
    %3597 = vmatprep.subr.mxu0 0.0
    %3598 = vmatpush1.msra.mxu0 0.0
    %3599 = vmatprep.subr.mxu0 0.0
    %3600 = vmatpush1.msra.mxu0 0.0
    %3601 = vmatprep.subr.mxu0 0.0
    %3602 = vmatpush1.msra.mxu0 0.0
    %3603 = vmatprep.subr.mxu0 0.0
    %3604 = vmatpush1.msra.mxu0 0.0
    %3605 = vmatprep.mubr.f32.mxu0 0.0
    %3606 = vmatmul.mubr.f32.gmra.mrb[0].mxu0 %v2865
    %v3607 = vpop.f32.mrb[0].mxu0
    %v3608 = vadd.f32 %v3328, %v3607
    %v3609 = vpop.f32.mrb[0].mxu0
    %3610 = vdwg.mxu0
    %v3612 = vsel %vm219, %v2791, 0
    %v3615 = vsel %vm219, %v3096, 0
    %3617 = vmatprep.subr.mxu0 0.0
    %3618 = vmatpush1.xpose.msra.mxu0 %v3615
    %3619 = vmatprep.subr.mxu0 0.0
    %3620 = vmatpush1.xpose.msra.mxu0 0.0
    %3621 = vmatprep.subr.mxu0 0.0
    %3622 = vmatpush1.xpose.msra.mxu0 0.0
    %3623 = vmatprep.subr.mxu0 0.0
    %3624 = vmatpush1.xpose.msra.mxu0 0.0
    %3625 = vmatprep.subr.mxu0 0.0
    %3626 = vmatpush1.xpose.msra.mxu0 0.0
    %3627 = vmatprep.subr.mxu0 0.0
    %3628 = vmatpush1.xpose.msra.mxu0 0.0
    %3629 = vmatprep.subr.mxu0 0.0
    %3630 = vmatpush1.xpose.msra.mxu0 0.0
    %3631 = vmatprep.subr.mxu0 0.0
    %3632 = vmatpush1.xpose.msra.mxu0 0.0
    %3633 = vmatprep.subr.mxu0 0.0
    %3634 = vmatpush1.xpose.msra.mxu0 0.0
    %3635 = vmatprep.subr.mxu0 0.0
    %3636 = vmatpush1.xpose.msra.mxu0 0.0
    %3637 = vmatprep.subr.mxu0 0.0
    %3638 = vmatpush1.xpose.msra.mxu0 0.0
    %3639 = vmatprep.subr.mxu0 0.0
    %3640 = vmatpush1.xpose.msra.mxu0 0.0
    %3641 = vmatprep.subr.mxu0 0.0
    %3642 = vmatpush1.xpose.msra.mxu0 0.0
    %3643 = vmatprep.subr.mxu0 0.0
    %3644 = vmatpush1.xpose.msra.mxu0 0.0
    %3645 = vmatprep.subr.mxu0 0.0
    %3646 = vmatpush1.xpose.msra.mxu0 0.0
    %3647 = vmatprep.subr.mxu0 0.0
    %3648 = vmatpush1.xpose.msra.mxu0 0.0
    %3649 = vmatprep.subr.mxu0 0.0
    %3650 = vmatpush1.xpose.msra.mxu0 0.0
    %3651 = vmatprep.subr.mxu0 0.0
    %3652 = vmatpush1.xpose.msra.mxu0 0.0
    %3653 = vmatprep.subr.mxu0 0.0
    %3654 = vmatpush1.xpose.msra.mxu0 0.0
    %3655 = vmatprep.subr.mxu0 0.0
    %3656 = vmatpush1.xpose.msra.mxu0 0.0
    %3657 = vmatprep.subr.mxu0 0.0
    %3658 = vmatpush1.xpose.msra.mxu0 0.0
    %3659 = vmatprep.subr.mxu0 0.0
    %3660 = vmatpush1.xpose.msra.mxu0 0.0
    %3661 = vmatprep.subr.mxu0 0.0
    %3662 = vmatpush1.xpose.msra.mxu0 0.0
    %3663 = vmatprep.subr.mxu0 0.0
    %3664 = vmatpush1.xpose.msra.mxu0 0.0
    %3665 = vmatprep.subr.mxu0 0.0
    %3666 = vmatpush1.xpose.msra.mxu0 0.0
    %3667 = vmatprep.subr.mxu0 0.0
    %3668 = vmatpush1.xpose.msra.mxu0 0.0
    %3669 = vmatprep.subr.mxu0 0.0
    %3670 = vmatpush1.xpose.msra.mxu0 0.0
    %3671 = vmatprep.subr.mxu0 0.0
    %3672 = vmatpush1.xpose.msra.mxu0 0.0
    %3673 = vmatprep.subr.mxu0 0.0
    %3674 = vmatpush1.xpose.msra.mxu0 0.0
    %3675 = vmatprep.subr.mxu0 0.0
    %3676 = vmatpush1.xpose.msra.mxu0 0.0
    %3677 = vmatprep.subr.mxu0 0.0
    %3678 = vmatpush1.xpose.msra.mxu0 0.0
    %3679 = vmatprep.subr.mxu0 0.0
    %3680 = vmatpush1.xpose.msra.mxu0 0.0
    %3681 = vmatprep.mubr.f32.mxu0 0.0
    %3682 = vmatmul.mubr.f32.gmra.mrb[0].mxu0 %v3612
    %v3683 = vpop.f32.mrb[0].mxu0
    %v3684 = vadd.f32 0.0, %v3683
    %v3685 = vpop.f32.mrb[0].mxu0
    %3686 = vdwg.mxu0
    %v3688 = vsel %vm219, %v2861, 0
    %v3691 = vsel %vm219, %v3166, 0
    %3693 = vmatprep.subr.mxu0 0.0
    %3694 = vmatpush1.xpose.msra.mxu0 %v3691
    %3695 = vmatprep.subr.mxu0 0.0
    %3696 = vmatpush1.xpose.msra.mxu0 0.0
    %3697 = vmatprep.subr.mxu0 0.0
    %3698 = vmatpush1.xpose.msra.mxu0 0.0
    %3699 = vmatprep.subr.mxu0 0.0
    %3700 = vmatpush1.xpose.msra.mxu0 0.0
    %3701 = vmatprep.subr.mxu0 0.0
    %3702 = vmatpush1.xpose.msra.mxu0 0.0
    %3703 = vmatprep.subr.mxu0 0.0
    %3704 = vmatpush1.xpose.msra.mxu0 0.0
    %3705 = vmatprep.subr.mxu0 0.0
    %3706 = vmatpush1.xpose.msra.mxu0 0.0
    %3707 = vmatprep.subr.mxu0 0.0
    %3708 = vmatpush1.xpose.msra.mxu0 0.0
    %3709 = vmatprep.subr.mxu0 0.0
    %3710 = vmatpush1.xpose.msra.mxu0 0.0
    %3711 = vmatprep.subr.mxu0 0.0
    %3712 = vmatpush1.xpose.msra.mxu0 0.0
    %3713 = vmatprep.subr.mxu0 0.0
    %3714 = vmatpush1.xpose.msra.mxu0 0.0
    %3715 = vmatprep.subr.mxu0 0.0
    %3716 = vmatpush1.xpose.msra.mxu0 0.0
    %3717 = vmatprep.subr.mxu0 0.0
    %3718 = vmatpush1.xpose.msra.mxu0 0.0
    %3719 = vmatprep.subr.mxu0 0.0
    %3720 = vmatpush1.xpose.msra.mxu0 0.0
    %3721 = vmatprep.subr.mxu0 0.0
    %3722 = vmatpush1.xpose.msra.mxu0 0.0
    %3723 = vmatprep.subr.mxu0 0.0
    %3724 = vmatpush1.xpose.msra.mxu0 0.0
    %3725 = vmatprep.subr.mxu0 0.0
    %3726 = vmatpush1.xpose.msra.mxu0 0.0
    %3727 = vmatprep.subr.mxu0 0.0
    %3728 = vmatpush1.xpose.msra.mxu0 0.0
    %3729 = vmatprep.subr.mxu0 0.0
    %3730 = vmatpush1.xpose.msra.mxu0 0.0
    %3731 = vmatprep.subr.mxu0 0.0
    %3732 = vmatpush1.xpose.msra.mxu0 0.0
    %3733 = vmatprep.subr.mxu0 0.0
    %3734 = vmatpush1.xpose.msra.mxu0 0.0
    %3735 = vmatprep.subr.mxu0 0.0
    %3736 = vmatpush1.xpose.msra.mxu0 0.0
    %3737 = vmatprep.subr.mxu0 0.0
    %3738 = vmatpush1.xpose.msra.mxu0 0.0
    %3739 = vmatprep.subr.mxu0 0.0
    %3740 = vmatpush1.xpose.msra.mxu0 0.0
    %3741 = vmatprep.subr.mxu0 0.0
    %3742 = vmatpush1.xpose.msra.mxu0 0.0
    %3743 = vmatprep.subr.mxu0 0.0
    %3744 = vmatpush1.xpose.msra.mxu0 0.0
    %3745 = vmatprep.subr.mxu0 0.0
    %3746 = vmatpush1.xpose.msra.mxu0 0.0
    %3747 = vmatprep.subr.mxu0 0.0
    %3748 = vmatpush1.xpose.msra.mxu0 0.0
    %3749 = vmatprep.subr.mxu0 0.0
    %3750 = vmatpush1.xpose.msra.mxu0 0.0
    %3751 = vmatprep.subr.mxu0 0.0
    %3752 = vmatpush1.xpose.msra.mxu0 0.0
    %3753 = vmatprep.subr.mxu0 0.0
    %3754 = vmatpush1.xpose.msra.mxu0 0.0
    %3755 = vmatprep.subr.mxu0 0.0
    %3756 = vmatpush1.xpose.msra.mxu0 0.0
    %3757 = vmatprep.mubr.f32.mxu0 0.0
    %3758 = vmatmul.mubr.f32.gmra.mrb[0].mxu0 %v3688
    %v3759 = vpop.f32.mrb[0].mxu0
    %v3760 = vadd.f32 0.0, %v3759
    %v3761 = vpop.f32.mrb[0].mxu0
    %3762 = vdwg.mxu0
    %v3764 = vsel %vm219, %v2934, 0
    %v3767 = vsel %vm219, %v3236, 0
    %3769 = vmatprep.subr.mxu0 0.0
    %3770 = vmatpush1.xpose.msra.mxu0 %v3767
    %3771 = vmatprep.subr.mxu0 0.0
    %3772 = vmatpush1.xpose.msra.mxu0 0.0
    %3773 = vmatprep.subr.mxu0 0.0
    %3774 = vmatpush1.xpose.msra.mxu0 0.0
    %3775 = vmatprep.subr.mxu0 0.0
    %3776 = vmatpush1.xpose.msra.mxu0 0.0
    %3777 = vmatprep.subr.mxu0 0.0
    %3778 = vmatpush1.xpose.msra.mxu0 0.0
    %3779 = vmatprep.subr.mxu0 0.0
    %3780 = vmatpush1.xpose.msra.mxu0 0.0
    %3781 = vmatprep.subr.mxu0 0.0
    %3782 = vmatpush1.xpose.msra.mxu0 0.0
    %3783 = vmatprep.subr.mxu0 0.0
    %3784 = vmatpush1.xpose.msra.mxu0 0.0
    %3785 = vmatprep.subr.mxu0 0.0
    %3786 = vmatpush1.xpose.msra.mxu0 0.0
    %3787 = vmatprep.subr.mxu0 0.0
    %3788 = vmatpush1.xpose.msra.mxu0 0.0
    %3789 = vmatprep.subr.mxu0 0.0
    %3790 = vmatpush1.xpose.msra.mxu0 0.0
    %3791 = vmatprep.subr.mxu0 0.0
    %3792 = vmatpush1.xpose.msra.mxu0 0.0
    %3793 = vmatprep.subr.mxu0 0.0
    %3794 = vmatpush1.xpose.msra.mxu0 0.0
    %3795 = vmatprep.subr.mxu0 0.0
    %3796 = vmatpush1.xpose.msra.mxu0 0.0
    %3797 = vmatprep.subr.mxu0 0.0
    %3798 = vmatpush1.xpose.msra.mxu0 0.0
    %3799 = vmatprep.subr.mxu0 0.0
    %3800 = vmatpush1.xpose.msra.mxu0 0.0
    %3801 = vmatprep.subr.mxu0 0.0
    %3802 = vmatpush1.xpose.msra.mxu0 0.0
    %3803 = vmatprep.subr.mxu0 0.0
    %3804 = vmatpush1.xpose.msra.mxu0 0.0
    %3805 = vmatprep.subr.mxu0 0.0
    %3806 = vmatpush1.xpose.msra.mxu0 0.0
    %3807 = vmatprep.subr.mxu0 0.0
    %3808 = vmatpush1.xpose.msra.mxu0 0.0
    %3809 = vmatprep.subr.mxu0 0.0
    %3810 = vmatpush1.xpose.msra.mxu0 0.0
    %3811 = vmatprep.subr.mxu0 0.0
    %3812 = vmatpush1.xpose.msra.mxu0 0.0
    %3813 = vmatprep.subr.mxu0 0.0
    %3814 = vmatpush1.xpose.msra.mxu0 0.0
    %3815 = vmatprep.subr.mxu0 0.0
    %3816 = vmatpush1.xpose.msra.mxu0 0.0
    %3817 = vmatprep.subr.mxu0 0.0
    %3818 = vmatpush1.xpose.msra.mxu0 0.0
    %3819 = vmatprep.subr.mxu0 0.0
    %3820 = vmatpush1.xpose.msra.mxu0 0.0
    %3821 = vmatprep.subr.mxu0 0.0
    %3822 = vmatpush1.xpose.msra.mxu0 0.0
    %3823 = vmatprep.subr.mxu0 0.0
    %3824 = vmatpush1.xpose.msra.mxu0 0.0
    %3825 = vmatprep.subr.mxu0 0.0
    %3826 = vmatpush1.xpose.msra.mxu0 0.0
    %3827 = vmatprep.subr.mxu0 0.0
    %3828 = vmatpush1.xpose.msra.mxu0 0.0
    %3829 = vmatprep.subr.mxu0 0.0
    %3830 = vmatpush1.xpose.msra.mxu0 0.0
    %3831 = vmatprep.subr.mxu0 0.0
    %3832 = vmatpush1.xpose.msra.mxu0 0.0
    %3833 = vmatprep.mubr.f32.mxu0 0.0
    %3834 = vmatmul.mubr.f32.gmra.mrb[0].mxu0 %v3764
    %v3835 = vpop.f32.mrb[0].mxu0
    %v3836 = vadd.f32 0.0, %v3835
    %v3837 = vpop.f32.mrb[0].mxu0
    %3838 = vdwg.mxu0
    %v3840 = vsel %vm219, %v3004, 0
    %v3843 = vsel %vm219, %v3306, 0
    %3845 = vmatprep.subr.mxu0 0.0
    %3846 = vmatpush1.xpose.msra.mxu0 %v3843
    %3847 = vmatprep.subr.mxu0 0.0
    %3848 = vmatpush1.xpose.msra.mxu0 0.0
    %3849 = vmatprep.subr.mxu0 0.0
    %3850 = vmatpush1.xpose.msra.mxu0 0.0
    %3851 = vmatprep.subr.mxu0 0.0
    %3852 = vmatpush1.xpose.msra.mxu0 0.0
    %3853 = vmatprep.subr.mxu0 0.0
    %3854 = vmatpush1.xpose.msra.mxu0 0.0
    %3855 = vmatprep.subr.mxu0 0.0
    %3856 = vmatpush1.xpose.msra.mxu0 0.0
    %3857 = vmatprep.subr.mxu0 0.0
    %3858 = vmatpush1.xpose.msra.mxu0 0.0
    %3859 = vmatprep.subr.mxu0 0.0
    %3860 = vmatpush1.xpose.msra.mxu0 0.0
    %3861 = vmatprep.subr.mxu0 0.0
    %3862 = vmatpush1.xpose.msra.mxu0 0.0
    %3863 = vmatprep.subr.mxu0 0.0
    %3864 = vmatpush1.xpose.msra.mxu0 0.0
    %3865 = vmatprep.subr.mxu0 0.0
    %3866 = vmatpush1.xpose.msra.mxu0 0.0
    %3867 = vmatprep.subr.mxu0 0.0
    %3868 = vmatpush1.xpose.msra.mxu0 0.0
    %3869 = vmatprep.subr.mxu0 0.0
    %3870 = vmatpush1.xpose.msra.mxu0 0.0
    %3871 = vmatprep.subr.mxu0 0.0
    %3872 = vmatpush1.xpose.msra.mxu0 0.0
    %3873 = vmatprep.subr.mxu0 0.0
    %3874 = vmatpush1.xpose.msra.mxu0 0.0
    %3875 = vmatprep.subr.mxu0 0.0
    %3876 = vmatpush1.xpose.msra.mxu0 0.0
    %3877 = vmatprep.subr.mxu0 0.0
    %3878 = vmatpush1.xpose.msra.mxu0 0.0
    %3879 = vmatprep.subr.mxu0 0.0
    %3880 = vmatpush1.xpose.msra.mxu0 0.0
    %3881 = vmatprep.subr.mxu0 0.0
    %3882 = vmatpush1.xpose.msra.mxu0 0.0
    %3883 = vmatprep.subr.mxu0 0.0
    %3884 = vmatpush1.xpose.msra.mxu0 0.0
    %3885 = vmatprep.subr.mxu0 0.0
    %3886 = vmatpush1.xpose.msra.mxu0 0.0
    %3887 = vmatprep.subr.mxu0 0.0
    %3888 = vmatpush1.xpose.msra.mxu0 0.0
    %3889 = vmatprep.subr.mxu0 0.0
    %3890 = vmatpush1.xpose.msra.mxu0 0.0
    %3891 = vmatprep.subr.mxu0 0.0
    %3892 = vmatpush1.xpose.msra.mxu0 0.0
    %3893 = vmatprep.subr.mxu0 0.0
    %3894 = vmatpush1.xpose.msra.mxu0 0.0
    %3895 = vmatprep.subr.mxu0 0.0
    %3896 = vmatpush1.xpose.msra.mxu0 0.0
    %3897 = vmatprep.subr.mxu0 0.0
    %3898 = vmatpush1.xpose.msra.mxu0 0.0
    %3899 = vmatprep.subr.mxu0 0.0
    %3900 = vmatpush1.xpose.msra.mxu0 0.0
    %3901 = vmatprep.subr.mxu0 0.0
    %3902 = vmatpush1.xpose.msra.mxu0 0.0
    %3903 = vmatprep.subr.mxu0 0.0
    %3904 = vmatpush1.xpose.msra.mxu0 0.0
    %3905 = vmatprep.subr.mxu0 0.0
    %3906 = vmatpush1.xpose.msra.mxu0 0.0
    %3907 = vmatprep.subr.mxu0 0.0
    %3908 = vmatpush1.xpose.msra.mxu0 0.0
    %3909 = vmatprep.mubr.f32.mxu0 0.0
    %3910 = vmatmul.mubr.f32.gmra.mrb[0].mxu0 %v3840
    %v3911 = vpop.f32.mrb[0].mxu0
    %v3912 = vadd.f32 0.0, %v3911
    %v3913 = vpop.f32.mrb[0].mxu0
    %3914 = vdwg.mxu0
    %v3915 = vsel %vm1752, %v3684, -inf
    %3916 = vmax.xlane.f32.xlu0 %v3915
    %v3917 = vpop.xlane.xlu0 %3916
    %v3918 = vsel %vm1752, %v3760, -inf
    %3919 = vmax.xlane.f32.xlu0 %v3918
    %v3920 = vpop.xlane.xlu0 %3919
    %v3921 = vsel %vm1752, %v3836, -inf
    %3922 = vmax.xlane.f32.xlu0 %v3921
    %v3923 = vpop.xlane.xlu0 %3922
    %v3924 = vsel %vm1752, %v3912, -inf
    %3925 = vmax.xlane.f32.xlu0 %v3924
    %v3926 = vpop.xlane.xlu0 %3925
    %v3927 = vsub.f32 %v3684, %v3917
    %v3928 = vsub.f32 %v3760, %v3920
    %v3929 = vsub.f32 %v3836, %v3923
    %v3930 = vsub.f32 %v3912, %v3926
    %v3931 = vmul.f32 %v3927, 1.442695
    %v3932 = vpow.pop %v3931
    %v3933 = vmul.f32 %v3928, 1.442695
    %v3934 = vpow.pop %v3933
    %v3935 = vmul.f32 %v3929, 1.442695
    %v3936 = vpow.pop %v3935
    %v3937 = vmul.f32 %v3930, 1.442695
    %v3938 = vpow.pop %v3937
    %v3939 = vsel %vm1752, %v3932, 0.0
    %3940 = vadd.xlane.f32.xlu0 %v3939
    %v3941 = vpop.xlane.xlu0 %3940
    %v3942 = vsel %vm1752, %v3934, 0.0
    %3943 = vadd.xlane.f32.xlu0 %v3942
    %v3944 = vpop.xlane.xlu0 %3943
    %v3945 = vsel %vm1752, %v3936, 0.0
    %3946 = vadd.xlane.f32.xlu0 %v3945
    %v3947 = vpop.xlane.xlu0 %3946
    %v3948 = vsel %vm1752, %v3938, 0.0
    %3949 = vadd.xlane.f32.xlu0 %v3948
    %v3950 = vpop.xlane.xlu0 %3949
    %v3951 = vrcp.pop %v3941
    %v3952 = vrcp.pop %v3944
    %v3953 = vrcp.pop %v3947
    %v3954 = vrcp.pop %v3950
    %v3955 = vmul.f32 %v3932, %v3951
    %v3956 = vmul.f32 %v3934, %v3952
    %v3957 = vmul.f32 %v3936, %v3953
    %v3958 = vmul.f32 %v3938, %v3954
    %v3960 = vsel %vm1752, %v3955, 0
    %3962 = vmatprep.subr.mxu0 0.0
    %3963 = vmatpush1.msra.mxu0 %v3398
    %3964 = vmatprep.subr.mxu0 0.0
    %3965 = vmatpush1.msra.mxu0 0.0
    %3966 = vmatprep.subr.mxu0 0.0
    %3967 = vmatpush1.msra.mxu0 0.0
    %3968 = vmatprep.subr.mxu0 0.0
    %3969 = vmatpush1.msra.mxu0 0.0
    %3970 = vmatprep.subr.mxu0 0.0
    %3971 = vmatpush1.msra.mxu0 0.0
    %3972 = vmatprep.subr.mxu0 0.0
    %3973 = vmatpush1.msra.mxu0 0.0
    %3974 = vmatprep.subr.mxu0 0.0
    %3975 = vmatpush1.msra.mxu0 0.0
    %3976 = vmatprep.subr.mxu0 0.0
    %3977 = vmatpush1.msra.mxu0 0.0
    %3978 = vmatprep.subr.mxu0 0.0
    %3979 = vmatpush1.msra.mxu0 0.0
    %3980 = vmatprep.subr.mxu0 0.0
    %3981 = vmatpush1.msra.mxu0 0.0
    %3982 = vmatprep.subr.mxu0 0.0
    %3983 = vmatpush1.msra.mxu0 0.0
    %3984 = vmatprep.subr.mxu0 0.0
    %3985 = vmatpush1.msra.mxu0 0.0
    %3986 = vmatprep.subr.mxu0 0.0
    %3987 = vmatpush1.msra.mxu0 0.0
    %3988 = vmatprep.subr.mxu0 0.0
    %3989 = vmatpush1.msra.mxu0 0.0
    %3990 = vmatprep.subr.mxu0 0.0
    %3991 = vmatpush1.msra.mxu0 0.0
    %3992 = vmatprep.subr.mxu0 0.0
    %3993 = vmatpush1.msra.mxu0 0.0
    %3994 = vmatprep.subr.mxu0 0.0
    %3995 = vmatpush1.msra.mxu0 0.0
    %3996 = vmatprep.subr.mxu0 0.0
    %3997 = vmatpush1.msra.mxu0 0.0
    %3998 = vmatprep.subr.mxu0 0.0
    %3999 = vmatpush1.msra.mxu0 0.0
    %4000 = vmatprep.subr.mxu0 0.0
    %4001 = vmatpush1.msra.mxu0 0.0
    %4002 = vmatprep.subr.mxu0 0.0
    %4003 = vmatpush1.msra.mxu0 0.0
    %4004 = vmatprep.subr.mxu0 0.0
    %4005 = vmatpush1.msra.mxu0 0.0
    %4006 = vmatprep.subr.mxu0 0.0
    %4007 = vmatpush1.msra.mxu0 0.0
    %4008 = vmatprep.subr.mxu0 0.0
    %4009 = vmatpush1.msra.mxu0 0.0
    %4010 = vmatprep.subr.mxu0 0.0
    %4011 = vmatpush1.msra.mxu0 0.0
    %4012 = vmatprep.subr.mxu0 0.0
    %4013 = vmatpush1.msra.mxu0 0.0
    %4014 = vmatprep.subr.mxu0 0.0
    %4015 = vmatpush1.msra.mxu0 0.0
    %4016 = vmatprep.subr.mxu0 0.0
    %4017 = vmatpush1.msra.mxu0 0.0
    %4018 = vmatprep.subr.mxu0 0.0
    %4019 = vmatpush1.msra.mxu0 0.0
    %4020 = vmatprep.subr.mxu0 0.0
    %4021 = vmatpush1.msra.mxu0 0.0
    %4022 = vmatprep.subr.mxu0 0.0
    %4023 = vmatpush1.msra.mxu0 0.0
    %4024 = vmatprep.subr.mxu0 0.0
    %4025 = vmatpush1.msra.mxu0 0.0
    %4026 = vmatprep.mubr.f32.mxu0 0.0
    %4027 = vmatmul.mubr.f32.gmra.mrb[0].mxu0 %v3960
    %v4028 = vpop.f32.mrb[0].mxu0
    %v4029 = vadd.f32 0.0, %v4028
    %v4030 = vpop.f32.mrb[0].mxu0
    %4031 = vdwg.mxu0
    %v4033 = vsel %vm1752, %v3956, 0
    %4035 = vmatprep.subr.mxu0 0.0
    %4036 = vmatpush1.msra.mxu0 %v3468
    %4037 = vmatprep.subr.mxu0 0.0
    %4038 = vmatpush1.msra.mxu0 0.0
    %4039 = vmatprep.subr.mxu0 0.0
    %4040 = vmatpush1.msra.mxu0 0.0
    %4041 = vmatprep.subr.mxu0 0.0
    %4042 = vmatpush1.msra.mxu0 0.0
    %4043 = vmatprep.subr.mxu0 0.0
    %4044 = vmatpush1.msra.mxu0 0.0
    %4045 = vmatprep.subr.mxu0 0.0
    %4046 = vmatpush1.msra.mxu0 0.0
    %4047 = vmatprep.subr.mxu0 0.0
    %4048 = vmatpush1.msra.mxu0 0.0
    %4049 = vmatprep.subr.mxu0 0.0
    %4050 = vmatpush1.msra.mxu0 0.0
    %4051 = vmatprep.subr.mxu0 0.0
    %4052 = vmatpush1.msra.mxu0 0.0
    %4053 = vmatprep.subr.mxu0 0.0
    %4054 = vmatpush1.msra.mxu0 0.0
    %4055 = vmatprep.subr.mxu0 0.0
    %4056 = vmatpush1.msra.mxu0 0.0
    %4057 = vmatprep.subr.mxu0 0.0
    %4058 = vmatpush1.msra.mxu0 0.0
    %4059 = vmatprep.subr.mxu0 0.0
    %4060 = vmatpush1.msra.mxu0 0.0
    %4061 = vmatprep.subr.mxu0 0.0
    %4062 = vmatpush1.msra.mxu0 0.0
    %4063 = vmatprep.subr.mxu0 0.0
    %4064 = vmatpush1.msra.mxu0 0.0
    %4065 = vmatprep.subr.mxu0 0.0
    %4066 = vmatpush1.msra.mxu0 0.0
    %4067 = vmatprep.subr.mxu0 0.0
    %4068 = vmatpush1.msra.mxu0 0.0
    %4069 = vmatprep.subr.mxu0 0.0
    %4070 = vmatpush1.msra.mxu0 0.0
    %4071 = vmatprep.subr.mxu0 0.0
    %4072 = vmatpush1.msra.mxu0 0.0
    %4073 = vmatprep.subr.mxu0 0.0
    %4074 = vmatpush1.msra.mxu0 0.0
    %4075 = vmatprep.subr.mxu0 0.0
    %4076 = vmatpush1.msra.mxu0 0.0
    %4077 = vmatprep.subr.mxu0 0.0
    %4078 = vmatpush1.msra.mxu0 0.0
    %4079 = vmatprep.subr.mxu0 0.0
    %4080 = vmatpush1.msra.mxu0 0.0
    %4081 = vmatprep.subr.mxu0 0.0
    %4082 = vmatpush1.msra.mxu0 0.0
    %4083 = vmatprep.subr.mxu0 0.0
    %4084 = vmatpush1.msra.mxu0 0.0
    %4085 = vmatprep.subr.mxu0 0.0
    %4086 = vmatpush1.msra.mxu0 0.0
    %4087 = vmatprep.subr.mxu0 0.0
    %4088 = vmatpush1.msra.mxu0 0.0
    %4089 = vmatprep.subr.mxu0 0.0
    %4090 = vmatpush1.msra.mxu0 0.0
    %4091 = vmatprep.subr.mxu0 0.0
    %4092 = vmatpush1.msra.mxu0 0.0
    %4093 = vmatprep.subr.mxu0 0.0
    %4094 = vmatpush1.msra.mxu0 0.0
    %4095 = vmatprep.subr.mxu0 0.0
    %4096 = vmatpush1.msra.mxu0 0.0
    %4097 = vmatprep.subr.mxu0 0.0
    %4098 = vmatpush1.msra.mxu0 0.0
    %4099 = vmatprep.mubr.f32.mxu0 0.0
    %4100 = vmatmul.mubr.f32.gmra.mrb[0].mxu0 %v4033
    %v4101 = vpop.f32.mrb[0].mxu0
    %v4102 = vadd.f32 0.0, %v4101
    %v4103 = vpop.f32.mrb[0].mxu0
    %4104 = vdwg.mxu0
    %v4106 = vsel %vm1752, %v3957, 0
    %4108 = vmatprep.subr.mxu0 0.0
    %4109 = vmatpush1.msra.mxu0 %v3538
    %4110 = vmatprep.subr.mxu0 0.0
    %4111 = vmatpush1.msra.mxu0 0.0
    %4112 = vmatprep.subr.mxu0 0.0
    %4113 = vmatpush1.msra.mxu0 0.0
    %4114 = vmatprep.subr.mxu0 0.0
    %4115 = vmatpush1.msra.mxu0 0.0
    %4116 = vmatprep.subr.mxu0 0.0
    %4117 = vmatpush1.msra.mxu0 0.0
    %4118 = vmatprep.subr.mxu0 0.0
    %4119 = vmatpush1.msra.mxu0 0.0
    %4120 = vmatprep.subr.mxu0 0.0
    %4121 = vmatpush1.msra.mxu0 0.0
    %4122 = vmatprep.subr.mxu0 0.0
    %4123 = vmatpush1.msra.mxu0 0.0
    %4124 = vmatprep.subr.mxu0 0.0
    %4125 = vmatpush1.msra.mxu0 0.0
    %4126 = vmatprep.subr.mxu0 0.0
    %4127 = vmatpush1.msra.mxu0 0.0
    %4128 = vmatprep.subr.mxu0 0.0
    %4129 = vmatpush1.msra.mxu0 0.0
    %4130 = vmatprep.subr.mxu0 0.0
    %4131 = vmatpush1.msra.mxu0 0.0
    %4132 = vmatprep.subr.mxu0 0.0
    %4133 = vmatpush1.msra.mxu0 0.0
    %4134 = vmatprep.subr.mxu0 0.0
    %4135 = vmatpush1.msra.mxu0 0.0
    %4136 = vmatprep.subr.mxu0 0.0
    %4137 = vmatpush1.msra.mxu0 0.0
    %4138 = vmatprep.subr.mxu0 0.0
    %4139 = vmatpush1.msra.mxu0 0.0
    %4140 = vmatprep.subr.mxu0 0.0
    %4141 = vmatpush1.msra.mxu0 0.0
    %4142 = vmatprep.subr.mxu0 0.0
    %4143 = vmatpush1.msra.mxu0 0.0
    %4144 = vmatprep.subr.mxu0 0.0
    %4145 = vmatpush1.msra.mxu0 0.0
    %4146 = vmatprep.subr.mxu0 0.0
    %4147 = vmatpush1.msra.mxu0 0.0
    %4148 = vmatprep.subr.mxu0 0.0
    %4149 = vmatpush1.msra.mxu0 0.0
    %4150 = vmatprep.subr.mxu0 0.0
    %4151 = vmatpush1.msra.mxu0 0.0
    %4152 = vmatprep.subr.mxu0 0.0
    %4153 = vmatpush1.msra.mxu0 0.0
    %4154 = vmatprep.subr.mxu0 0.0
    %4155 = vmatpush1.msra.mxu0 0.0
    %4156 = vmatprep.subr.mxu0 0.0
    %4157 = vmatpush1.msra.mxu0 0.0
    %4158 = vmatprep.subr.mxu0 0.0
    %4159 = vmatpush1.msra.mxu0 0.0
    %4160 = vmatprep.subr.mxu0 0.0
    %4161 = vmatpush1.msra.mxu0 0.0
    %4162 = vmatprep.subr.mxu0 0.0
    %4163 = vmatpush1.msra.mxu0 0.0
    %4164 = vmatprep.subr.mxu0 0.0
    %4165 = vmatpush1.msra.mxu0 0.0
    %4166 = vmatprep.subr.mxu0 0.0
    %4167 = vmatpush1.msra.mxu0 0.0
    %4168 = vmatprep.subr.mxu0 0.0
    %4169 = vmatpush1.msra.mxu0 0.0
    %4170 = vmatprep.subr.mxu0 0.0
    %4171 = vmatpush1.msra.mxu0 0.0
    %4172 = vmatprep.mubr.f32.mxu0 0.0
    %4173 = vmatmul.mubr.f32.gmra.mrb[0].mxu0 %v4106
    %v4174 = vpop.f32.mrb[0].mxu0
    %v4175 = vadd.f32 0.0, %v4174
    %v4176 = vpop.f32.mrb[0].mxu0
    %4177 = vdwg.mxu0
    %v4179 = vsel %vm1752, %v3958, 0
    %4181 = vmatprep.subr.mxu0 0.0
    %4182 = vmatpush1.msra.mxu0 %v3608
    %4183 = vmatprep.subr.mxu0 0.0
    %4184 = vmatpush1.msra.mxu0 0.0
    %4185 = vmatprep.subr.mxu0 0.0
    %4186 = vmatpush1.msra.mxu0 0.0
    %4187 = vmatprep.subr.mxu0 0.0
    %4188 = vmatpush1.msra.mxu0 0.0
    %4189 = vmatprep.subr.mxu0 0.0
    %4190 = vmatpush1.msra.mxu0 0.0
    %4191 = vmatprep.subr.mxu0 0.0
    %4192 = vmatpush1.msra.mxu0 0.0
    %4193 = vmatprep.subr.mxu0 0.0
    %4194 = vmatpush1.msra.mxu0 0.0
    %4195 = vmatprep.subr.mxu0 0.0
    %4196 = vmatpush1.msra.mxu0 0.0
    %4197 = vmatprep.subr.mxu0 0.0
    %4198 = vmatpush1.msra.mxu0 0.0
    %4199 = vmatprep.subr.mxu0 0.0
    %4200 = vmatpush1.msra.mxu0 0.0
    %4201 = vmatprep.subr.mxu0 0.0
    %4202 = vmatpush1.msra.mxu0 0.0
    %4203 = vmatprep.subr.mxu0 0.0
    %4204 = vmatpush1.msra.mxu0 0.0
    %4205 = vmatprep.subr.mxu0 0.0
    %4206 = vmatpush1.msra.mxu0 0.0
    %4207 = vmatprep.subr.mxu0 0.0
    %4208 = vmatpush1.msra.mxu0 0.0
    %4209 = vmatprep.subr.mxu0 0.0
    %4210 = vmatpush1.msra.mxu0 0.0
    %4211 = vmatprep.subr.mxu0 0.0
    %4212 = vmatpush1.msra.mxu0 0.0
    %4213 = vmatprep.subr.mxu0 0.0
    %4214 = vmatpush1.msra.mxu0 0.0
    %4215 = vmatprep.subr.mxu0 0.0
    %4216 = vmatpush1.msra.mxu0 0.0
    %4217 = vmatprep.subr.mxu0 0.0
    %4218 = vmatpush1.msra.mxu0 0.0
    %4219 = vmatprep.subr.mxu0 0.0
    %4220 = vmatpush1.msra.mxu0 0.0
    %4221 = vmatprep.subr.mxu0 0.0
    %4222 = vmatpush1.msra.mxu0 0.0
    %4223 = vmatprep.subr.mxu0 0.0
    %4224 = vmatpush1.msra.mxu0 0.0
    %4225 = vmatprep.subr.mxu0 0.0
    %4226 = vmatpush1.msra.mxu0 0.0
    %4227 = vmatprep.subr.mxu0 0.0
    %4228 = vmatpush1.msra.mxu0 0.0
    %4229 = vmatprep.subr.mxu0 0.0
    %4230 = vmatpush1.msra.mxu0 0.0
    %4231 = vmatprep.subr.mxu0 0.0
    %4232 = vmatpush1.msra.mxu0 0.0
    %4233 = vmatprep.subr.mxu0 0.0
    %4234 = vmatpush1.msra.mxu0 0.0
    %4235 = vmatprep.subr.mxu0 0.0
    %4236 = vmatpush1.msra.mxu0 0.0
    %4237 = vmatprep.subr.mxu0 0.0
    %4238 = vmatpush1.msra.mxu0 0.0
    %4239 = vmatprep.subr.mxu0 0.0
    %4240 = vmatpush1.msra.mxu0 0.0
    %4241 = vmatprep.subr.mxu0 0.0
    %4242 = vmatpush1.msra.mxu0 0.0
    %4243 = vmatprep.subr.mxu0 0.0
    %4244 = vmatpush1.msra.mxu0 0.0
    %4245 = vmatprep.mubr.f32.mxu0 0.0
    %4246 = vmatmul.mubr.f32.gmra.mrb[0].mxu0 %v4179
    %v4247 = vpop.f32.mrb[0].mxu0
    %v4248 = vadd.f32 0.0, %v4247
    %v4249 = vpop.f32.mrb[0].mxu0
    %4250 = vdwg.mxu0
    %v4251 = vld [vmem:[%s61] sm:$0xff]
    %v4252 = vld [vmem:[%s61 + $0x8] sm:$0xff]
    %v4253 = vld [vmem:[%s61 + $0x10] sm:$0xff]
    %v4254 = vld [vmem:[%s61 + $0x18] sm:$0xff]
    %v4256 = vsel %vm219, %v4029, 0
    %4258 = vmatprep.subr.mxu0 0.0
    %4259 = vmatpush1.msra.mxu0 %v4251
    %4260 = vmatprep.subr.mxu0 0.0
    %4261 = vmatpush1.msra.mxu0 %v4252
    %4262 = vmatprep.subr.mxu0 0.0
    %4263 = vmatpush1.msra.mxu0 0.0
    %4264 = vmatprep.subr.mxu0 0.0
    %4265 = vmatpush1.msra.mxu0 0.0
    %4266 = vmatprep.subr.mxu0 0.0
    %4267 = vmatpush1.msra.mxu0 0.0
    %4268 = vmatprep.subr.mxu0 0.0
    %4269 = vmatpush1.msra.mxu0 0.0
    %4270 = vmatprep.subr.mxu0 0.0
    %4271 = vmatpush1.msra.mxu0 0.0
    %4272 = vmatprep.subr.mxu0 0.0
    %4273 = vmatpush1.msra.mxu0 0.0
    %4274 = vmatprep.subr.mxu0 0.0
    %4275 = vmatpush1.msra.mxu0 0.0
    %4276 = vmatprep.subr.mxu0 0.0
    %4277 = vmatpush1.msra.mxu0 0.0
    %4278 = vmatprep.subr.mxu0 0.0
    %4279 = vmatpush1.msra.mxu0 0.0
    %4280 = vmatprep.subr.mxu0 0.0
    %4281 = vmatpush1.msra.mxu0 0.0
    %4282 = vmatprep.subr.mxu0 0.0
    %4283 = vmatpush1.msra.mxu0 0.0
    %4284 = vmatprep.subr.mxu0 0.0
    %4285 = vmatpush1.msra.mxu0 0.0
    %4286 = vmatprep.subr.mxu0 0.0
    %4287 = vmatpush1.msra.mxu0 0.0
    %4288 = vmatprep.subr.mxu0 0.0
    %4289 = vmatpush1.msra.mxu0 0.0
    %4290 = vmatprep.subr.mxu0 0.0
    %4291 = vmatpush1.msra.mxu0 0.0
    %4292 = vmatprep.subr.mxu0 0.0
    %4293 = vmatpush1.msra.mxu0 0.0
    %4294 = vmatprep.subr.mxu0 0.0
    %4295 = vmatpush1.msra.mxu0 0.0
    %4296 = vmatprep.subr.mxu0 0.0
    %4297 = vmatpush1.msra.mxu0 0.0
    %4298 = vmatprep.subr.mxu0 0.0
    %4299 = vmatpush1.msra.mxu0 0.0
    %4300 = vmatprep.subr.mxu0 0.0
    %4301 = vmatpush1.msra.mxu0 0.0
    %4302 = vmatprep.subr.mxu0 0.0
    %4303 = vmatpush1.msra.mxu0 0.0
    %4304 = vmatprep.subr.mxu0 0.0
    %4305 = vmatpush1.msra.mxu0 0.0
    %4306 = vmatprep.subr.mxu0 0.0
    %4307 = vmatpush1.msra.mxu0 0.0
    %4308 = vmatprep.subr.mxu0 0.0
    %4309 = vmatpush1.msra.mxu0 0.0
    %4310 = vmatprep.subr.mxu0 0.0
    %4311 = vmatpush1.msra.mxu0 0.0
    %4312 = vmatprep.subr.mxu0 0.0
    %4313 = vmatpush1.msra.mxu0 0.0
    %4314 = vmatprep.subr.mxu0 0.0
    %4315 = vmatpush1.msra.mxu0 0.0
    %4316 = vmatprep.subr.mxu0 0.0
    %4317 = vmatpush1.msra.mxu0 0.0
    %4318 = vmatprep.subr.mxu0 0.0
    %4319 = vmatpush1.msra.mxu0 0.0
    %4320 = vmatprep.subr.mxu0 0.0
    %4321 = vmatpush1.msra.mxu0 0.0
    %4322 = vmatprep.mubr.f32.mxu0 0.0
    %4323 = vmatmul.mubr.f32.gmra.mrb[0].mxu0 %v4256
    %v4324 = vpop.f32.mrb[0].mxu0
    %v4325 = vadd.f32 0.0, %v4324
    %v4326 = vpop.f32.mrb[0].mxu0
    %4327 = vdwg.mxu0
    %v4329 = vsel %vm219, %v4102, 0
    %4331 = vmatprep.subr.mxu0 0.0
    %4332 = vmatpush1.msra.mxu0 %v4253
    %4333 = vmatprep.subr.mxu0 0.0
    %4334 = vmatpush1.msra.mxu0 %v4254
    %4335 = vmatprep.subr.mxu0 0.0
    %4336 = vmatpush1.msra.mxu0 0.0
    %4337 = vmatprep.subr.mxu0 0.0
    %4338 = vmatpush1.msra.mxu0 0.0
    %4339 = vmatprep.subr.mxu0 0.0
    %4340 = vmatpush1.msra.mxu0 0.0
    %4341 = vmatprep.subr.mxu0 0.0
    %4342 = vmatpush1.msra.mxu0 0.0
    %4343 = vmatprep.subr.mxu0 0.0
    %4344 = vmatpush1.msra.mxu0 0.0
    %4345 = vmatprep.subr.mxu0 0.0
    %4346 = vmatpush1.msra.mxu0 0.0
    %4347 = vmatprep.subr.mxu0 0.0
    %4348 = vmatpush1.msra.mxu0 0.0
    %4349 = vmatprep.subr.mxu0 0.0
    %4350 = vmatpush1.msra.mxu0 0.0
    %4351 = vmatprep.subr.mxu0 0.0
    %4352 = vmatpush1.msra.mxu0 0.0
    %4353 = vmatprep.subr.mxu0 0.0
    %4354 = vmatpush1.msra.mxu0 0.0
    %4355 = vmatprep.subr.mxu0 0.0
    %4356 = vmatpush1.msra.mxu0 0.0
    %4357 = vmatprep.subr.mxu0 0.0
    %4358 = vmatpush1.msra.mxu0 0.0
    %4359 = vmatprep.subr.mxu0 0.0
    %4360 = vmatpush1.msra.mxu0 0.0
    %4361 = vmatprep.subr.mxu0 0.0
    %4362 = vmatpush1.msra.mxu0 0.0
    %4363 = vmatprep.subr.mxu0 0.0
    %4364 = vmatpush1.msra.mxu0 0.0
    %4365 = vmatprep.subr.mxu0 0.0
    %4366 = vmatpush1.msra.mxu0 0.0
    %4367 = vmatprep.subr.mxu0 0.0
    %4368 = vmatpush1.msra.mxu0 0.0
    %4369 = vmatprep.subr.mxu0 0.0
    %4370 = vmatpush1.msra.mxu0 0.0
    %4371 = vmatprep.subr.mxu0 0.0
    %4372 = vmatpush1.msra.mxu0 0.0
    %4373 = vmatprep.subr.mxu0 0.0
    %4374 = vmatpush1.msra.mxu0 0.0
    %4375 = vmatprep.subr.mxu0 0.0
    %4376 = vmatpush1.msra.mxu0 0.0
    %4377 = vmatprep.subr.mxu0 0.0
    %4378 = vmatpush1.msra.mxu0 0.0
    %4379 = vmatprep.subr.mxu0 0.0
    %4380 = vmatpush1.msra.mxu0 0.0
    %4381 = vmatprep.subr.mxu0 0.0
    %4382 = vmatpush1.msra.mxu0 0.0
    %4383 = vmatprep.subr.mxu0 0.0
    %4384 = vmatpush1.msra.mxu0 0.0
    %4385 = vmatprep.subr.mxu0 0.0
    %4386 = vmatpush1.msra.mxu0 0.0
    %4387 = vmatprep.subr.mxu0 0.0
    %4388 = vmatpush1.msra.mxu0 0.0
    %4389 = vmatprep.subr.mxu0 0.0
    %4390 = vmatpush1.msra.mxu0 0.0
    %4391 = vmatprep.subr.mxu0 0.0
    %4392 = vmatpush1.msra.mxu0 0.0
    %4393 = vmatprep.subr.mxu0 0.0
    %4394 = vmatpush1.msra.mxu0 0.0
    %4395 = vmatprep.mubr.f32.mxu0 0.0
    %4396 = vmatmul.mubr.f32.gmra.mrb[0].mxu0 %v4329
    %v4397 = vpop.f32.mrb[0].mxu0
    %v4398 = vadd.f32 0.0, %v4397
    %v4399 = vpop.f32.mrb[0].mxu0
    %4400 = vdwg.mxu0
    %v4402 = vsel %vm219, %v4175, 0
    %4404 = vmatprep.subr.mxu0 0.0
    %4405 = vmatpush1.msra.mxu0 %v4251
    %4406 = vmatprep.subr.mxu0 0.0
    %4407 = vmatpush1.msra.mxu0 %v4252
    %4408 = vmatprep.subr.mxu0 0.0
    %4409 = vmatpush1.msra.mxu0 0.0
    %4410 = vmatprep.subr.mxu0 0.0
    %4411 = vmatpush1.msra.mxu0 0.0
    %4412 = vmatprep.subr.mxu0 0.0
    %4413 = vmatpush1.msra.mxu0 0.0
    %4414 = vmatprep.subr.mxu0 0.0
    %4415 = vmatpush1.msra.mxu0 0.0
    %4416 = vmatprep.subr.mxu0 0.0
    %4417 = vmatpush1.msra.mxu0 0.0
    %4418 = vmatprep.subr.mxu0 0.0
    %4419 = vmatpush1.msra.mxu0 0.0
    %4420 = vmatprep.subr.mxu0 0.0
    %4421 = vmatpush1.msra.mxu0 0.0
    %4422 = vmatprep.subr.mxu0 0.0
    %4423 = vmatpush1.msra.mxu0 0.0
    %4424 = vmatprep.subr.mxu0 0.0
    %4425 = vmatpush1.msra.mxu0 0.0
    %4426 = vmatprep.subr.mxu0 0.0
    %4427 = vmatpush1.msra.mxu0 0.0
    %4428 = vmatprep.subr.mxu0 0.0
    %4429 = vmatpush1.msra.mxu0 0.0
    %4430 = vmatprep.subr.mxu0 0.0
    %4431 = vmatpush1.msra.mxu0 0.0
    %4432 = vmatprep.subr.mxu0 0.0
    %4433 = vmatpush1.msra.mxu0 0.0
    %4434 = vmatprep.subr.mxu0 0.0
    %4435 = vmatpush1.msra.mxu0 0.0
    %4436 = vmatprep.subr.mxu0 0.0
    %4437 = vmatpush1.msra.mxu0 0.0
    %4438 = vmatprep.subr.mxu0 0.0
    %4439 = vmatpush1.msra.mxu0 0.0
    %4440 = vmatprep.subr.mxu0 0.0
    %4441 = vmatpush1.msra.mxu0 0.0
    %4442 = vmatprep.subr.mxu0 0.0
    %4443 = vmatpush1.msra.mxu0 0.0
    %4444 = vmatprep.subr.mxu0 0.0
    %4445 = vmatpush1.msra.mxu0 0.0
    %4446 = vmatprep.subr.mxu0 0.0
    %4447 = vmatpush1.msra.mxu0 0.0
    %4448 = vmatprep.subr.mxu0 0.0
    %4449 = vmatpush1.msra.mxu0 0.0
    %4450 = vmatprep.subr.mxu0 0.0
    %4451 = vmatpush1.msra.mxu0 0.0
    %4452 = vmatprep.subr.mxu0 0.0
    %4453 = vmatpush1.msra.mxu0 0.0
    %4454 = vmatprep.subr.mxu0 0.0
    %4455 = vmatpush1.msra.mxu0 0.0
    %4456 = vmatprep.subr.mxu0 0.0
    %4457 = vmatpush1.msra.mxu0 0.0
    %4458 = vmatprep.subr.mxu0 0.0
    %4459 = vmatpush1.msra.mxu0 0.0
    %4460 = vmatprep.subr.mxu0 0.0
    %4461 = vmatpush1.msra.mxu0 0.0
    %4462 = vmatprep.subr.mxu0 0.0
    %4463 = vmatpush1.msra.mxu0 0.0
    %4464 = vmatprep.subr.mxu0 0.0
    %4465 = vmatpush1.msra.mxu0 0.0
    %4466 = vmatprep.subr.mxu0 0.0
    %4467 = vmatpush1.msra.mxu0 0.0
    %4468 = vmatprep.mubr.f32.mxu0 0.0
    %4469 = vmatmul.mubr.f32.gmra.mrb[0].mxu0 %v4402
    %v4470 = vpop.f32.mrb[0].mxu0
    %v4471 = vadd.f32 0.0, %v4470
    %v4472 = vpop.f32.mrb[0].mxu0
    %4473 = vdwg.mxu0
    %v4475 = vsel %vm219, %v4248, 0
    %4477 = vmatprep.subr.mxu0 0.0
    %4478 = vmatpush1.msra.mxu0 %v4253
    %4479 = vmatprep.subr.mxu0 0.0
    %4480 = vmatpush1.msra.mxu0 %v4254
    %4481 = vmatprep.subr.mxu0 0.0
    %4482 = vmatpush1.msra.mxu0 0.0
    %4483 = vmatprep.subr.mxu0 0.0
    %4484 = vmatpush1.msra.mxu0 0.0
    %4485 = vmatprep.subr.mxu0 0.0
    %4486 = vmatpush1.msra.mxu0 0.0
    %4487 = vmatprep.subr.mxu0 0.0
    %4488 = vmatpush1.msra.mxu0 0.0
    %4489 = vmatprep.subr.mxu0 0.0
    %4490 = vmatpush1.msra.mxu0 0.0
    %4491 = vmatprep.subr.mxu0 0.0
    %4492 = vmatpush1.msra.mxu0 0.0
    %4493 = vmatprep.subr.mxu0 0.0
    %4494 = vmatpush1.msra.mxu0 0.0
    %4495 = vmatprep.subr.mxu0 0.0
    %4496 = vmatpush1.msra.mxu0 0.0
    %4497 = vmatprep.subr.mxu0 0.0
    %4498 = vmatpush1.msra.mxu0 0.0
    %4499 = vmatprep.subr.mxu0 0.0
    %4500 = vmatpush1.msra.mxu0 0.0
    %4501 = vmatprep.subr.mxu0 0.0
    %4502 = vmatpush1.msra.mxu0 0.0
    %4503 = vmatprep.subr.mxu0 0.0
    %4504 = vmatpush1.msra.mxu0 0.0
    %4505 = vmatprep.subr.mxu0 0.0
    %4506 = vmatpush1.msra.mxu0 0.0
    %4507 = vmatprep.subr.mxu0 0.0
    %4508 = vmatpush1.msra.mxu0 0.0
    %4509 = vmatprep.subr.mxu0 0.0
    %4510 = vmatpush1.msra.mxu0 0.0
    %4511 = vmatprep.subr.mxu0 0.0
    %4512 = vmatpush1.msra.mxu0 0.0
    %4513 = vmatprep.subr.mxu0 0.0
    %4514 = vmatpush1.msra.mxu0 0.0
    %4515 = vmatprep.subr.mxu0 0.0
    %4516 = vmatpush1.msra.mxu0 0.0
    %4517 = vmatprep.subr.mxu0 0.0
    %4518 = vmatpush1.msra.mxu0 0.0
    %4519 = vmatprep.subr.mxu0 0.0
    %4520 = vmatpush1.msra.mxu0 0.0
    %4521 = vmatprep.subr.mxu0 0.0
    %4522 = vmatpush1.msra.mxu0 0.0
    %4523 = vmatprep.subr.mxu0 0.0
    %4524 = vmatpush1.msra.mxu0 0.0
    %4525 = vmatprep.subr.mxu0 0.0
    %4526 = vmatpush1.msra.mxu0 0.0
    %4527 = vmatprep.subr.mxu0 0.0
    %4528 = vmatpush1.msra.mxu0 0.0
    %4529 = vmatprep.subr.mxu0 0.0
    %4530 = vmatpush1.msra.mxu0 0.0
    %4531 = vmatprep.subr.mxu0 0.0
    %4532 = vmatpush1.msra.mxu0 0.0
    %4533 = vmatprep.subr.mxu0 0.0
    %4534 = vmatpush1.msra.mxu0 0.0
    %4535 = vmatprep.subr.mxu0 0.0
    %4536 = vmatpush1.msra.mxu0 0.0
    %4537 = vmatprep.subr.mxu0 0.0
    %4538 = vmatpush1.msra.mxu0 0.0
    %4539 = vmatprep.subr.mxu0 0.0
    %4540 = vmatpush1.msra.mxu0 0.0
    %4541 = vmatprep.mubr.f32.mxu0 0.0
    %4542 = vmatmul.mubr.f32.gmra.mrb[0].mxu0 %v4475
    %v4543 = vpop.f32.mrb[0].mxu0
    %v4544 = vadd.f32 0.0, %v4543
    %v4545 = vpop.f32.mrb[0].mxu0
    %4546 = vdwg.mxu0
    %v4547 = vsel %vm492, %v4325, 0.0
    %v4548 = vsel %vm492, %v4398, 0.0
    %v4549 = vadd.f32 %v4547, %v4548
    %v4550 = vsel %vm492, %v4471, 0.0
    %v4551 = vsel %vm492, %v4544, 0.0
    %v4552 = vadd.f32 %v4550, %v4551
    %v4553 = vld [vmem:[%s63] sm:$0x1]
    %v4555 = vlaneseq
    %v4556 = vshrl.u32 %v4555, 7
    %v4557 = vsub.s32 0, %v4556
    %v4558 = vrot.slane %v4553, %v4557
    %v4560 = vadd.f32 %v4549, %v4558
    %v4561 = vadd.f32 %v4552, %v4558
    %v4562 = vadd.f32 %v2697, %v4560
    %v4563 = vadd.f32 %v2698, %v4561
    %v4564 = vld [vmem:[%s65] sm:$0x1]
    %v4565 = vld [vmem:[%s67] sm:$0x1]
    %v4566 = vsel %vm492, %v4562, 0.0
    %4567 = vadd.xlane.f32.xlu0 %v4566
    %v4568 = vpop.xlane.xlu0 %4567
    %v4569 = vsel %vm492, %v4563, 0.0
    %4570 = vadd.xlane.f32.xlu0 %v4569
    %v4571 = vpop.xlane.xlu0 %4570
    %v4572 = vmul.f32 %v4568, %v499
    %v4573 = vmul.f32 %v4571, %v499
    %v4574 = vsub.f32 %v4562, %v4572
    %v4575 = vsub.f32 %v4563, %v4573
    %v4576 = vmul.f32 %v4574, %v4574
    %v4577 = vmul.f32 %v4575, %v4575
    %v4578 = vsel %vm492, %v4576, 0.0
    %4579 = vadd.xlane.f32.xlu0 %v4578
    %v4580 = vpop.xlane.xlu0 %4579
    %v4581 = vsel %vm492, %v4577, 0.0
    %4582 = vadd.xlane.f32.xlu0 %v4581
    %v4583 = vpop.xlane.xlu0 %4582
    %v4584 = vmul.f32 %v4580, %v499
    %v4585 = vmul.f32 %v4583, %v499
    %v4586 = vadd.f32 %v4584, 1e-12
    %v4587 = vadd.f32 %v4585, 1e-12
    %v4588 = vrsqrt.pop %v4586
    %v4589 = vrsqrt.pop %v4587
    %v4590 = vmul.f32 %v4574, %v4588
    %v4591 = vmul.f32 %v4575, %v4589
    %v4593 = vlaneseq
    %v4594 = vshrl.u32 %v4593, 7
    %v4595 = vsub.s32 0, %v4594
    %v4596 = vrot.slane %v4564, %v4595
    %v4598 = vmul.f32 %v4590, %v4596
    %v4599 = vmul.f32 %v4591, %v4596
    %v4601 = vlaneseq
    %v4602 = vshrl.u32 %v4601, 7
    %v4603 = vsub.s32 0, %v4602
    %v4604 = vrot.slane %v4565, %v4603
    %v4606 = vadd.f32 %v4598, %v4604
    %v4607 = vadd.f32 %v4599, %v4604
    %v4608 = vld [vmem:[%s69] sm:$0xff]
    %v4609 = vld [vmem:[%s69 + $0x8] sm:$0xff]
    %v4610 = vld [vmem:[%s69 + $0x10] sm:$0xff]
    %v4611 = vld [vmem:[%s69 + $0x18] sm:$0xff]
    %v4612 = vld [vmem:[%s71] sm:$0x1]
    %v4614 = vlaneseq
    %v4615 = vshrl.u32 %v4614, 7
    %v4616 = vsub.s32 0, %v4615
    %v4617 = vrot.slane %v4612, %v4616
    %v4620 = vsel %vm492, %v4606, 0
    %v4623 = vsel %vm492, %v4607, 0
    %4625 = vmatprep.subr.mxu0 0.0
    %4626 = vmatpush1.msra.mxu0 %v4608
    %4627 = vmatprep.subr.mxu0 0.0
    %4628 = vmatpush1.msra.mxu0 %v4609
    %4629 = vmatprep.subr.mxu0 0.0
    %4630 = vmatpush1.msra.mxu0 %v4610
    %4631 = vmatprep.subr.mxu0 0.0
    %4632 = vmatpush1.msra.mxu0 %v4611
    %4633 = vmatprep.subr.mxu0 0.0
    %4634 = vmatpush1.msra.mxu0 0.0
    %4635 = vmatprep.subr.mxu0 0.0
    %4636 = vmatpush1.msra.mxu0 0.0
    %4637 = vmatprep.subr.mxu0 0.0
    %4638 = vmatpush1.msra.mxu0 0.0
    %4639 = vmatprep.subr.mxu0 0.0
    %4640 = vmatpush1.msra.mxu0 0.0
    %4641 = vmatprep.subr.mxu0 0.0
    %4642 = vmatpush1.msra.mxu0 0.0
    %4643 = vmatprep.subr.mxu0 0.0
    %4644 = vmatpush1.msra.mxu0 0.0
    %4645 = vmatprep.subr.mxu0 0.0
    %4646 = vmatpush1.msra.mxu0 0.0
    %4647 = vmatprep.subr.mxu0 0.0
    %4648 = vmatpush1.msra.mxu0 0.0
    %4649 = vmatprep.subr.mxu0 0.0
    %4650 = vmatpush1.msra.mxu0 0.0
    %4651 = vmatprep.subr.mxu0 0.0
    %4652 = vmatpush1.msra.mxu0 0.0
    %4653 = vmatprep.subr.mxu0 0.0
    %4654 = vmatpush1.msra.mxu0 0.0
    %4655 = vmatprep.subr.mxu0 0.0
    %4656 = vmatpush1.msra.mxu0 0.0
    %4657 = vmatprep.subr.mxu0 0.0
    %4658 = vmatpush1.msra.mxu0 0.0
    %4659 = vmatprep.subr.mxu0 0.0
    %4660 = vmatpush1.msra.mxu0 0.0
    %4661 = vmatprep.subr.mxu0 0.0
    %4662 = vmatpush1.msra.mxu0 0.0
    %4663 = vmatprep.subr.mxu0 0.0
    %4664 = vmatpush1.msra.mxu0 0.0
    %4665 = vmatprep.subr.mxu0 0.0
    %4666 = vmatpush1.msra.mxu0 0.0
    %4667 = vmatprep.subr.mxu0 0.0
    %4668 = vmatpush1.msra.mxu0 0.0
    %4669 = vmatprep.subr.mxu0 0.0
    %4670 = vmatpush1.msra.mxu0 0.0
    %4671 = vmatprep.subr.mxu0 0.0
    %4672 = vmatpush1.msra.mxu0 0.0
    %4673 = vmatprep.subr.mxu0 0.0
    %4674 = vmatpush1.msra.mxu0 0.0
    %4675 = vmatprep.subr.mxu0 0.0
    %4676 = vmatpush1.msra.mxu0 0.0
    %4677 = vmatprep.subr.mxu0 0.0
    %4678 = vmatpush1.msra.mxu0 0.0
    %4679 = vmatprep.subr.mxu0 0.0
    %4680 = vmatpush1.msra.mxu0 0.0
    %4681 = vmatprep.subr.mxu0 0.0
    %4682 = vmatpush1.msra.mxu0 0.0
    %4683 = vmatprep.subr.mxu0 0.0
    %4684 = vmatpush1.msra.mxu0 0.0
    %4685 = vmatprep.subr.mxu0 0.0
    %4686 = vmatpush1.msra.mxu0 0.0
    %4687 = vmatprep.subr.mxu0 0.0
    %4688 = vmatpush1.msra.mxu0 0.0
    %4689 = vmatprep.mubr.f32.mxu0 0.0
    %4690 = vmatmul.mubr.f32.gmra.mrb[0].mxu0 %v4620
    %v4691 = vpop.f32.mrb[0].mxu0
    %v4692 = vadd.f32 %v4617, %v4691
    %v4693 = vpop.f32.mrb[0].mxu0
    %4694 = vmatprep.mubr.f32.mxu0 0.0
    %4695 = vmatmul.mubr.f32.gmra.mrb[0].mxu0 %v4623
    %v4696 = vpop.f32.mrb[0].mxu0
    %v4697 = vadd.f32 %v4617, %v4696
    %v4698 = vpop.f32.mrb[0].mxu0
    %4699 = vdwg.mxu0
    %v4700 = vmul.f32 %v4692, 0.5
    %v4701 = vmul.f32 %v4697, 0.5
    %v4702 = vmul.f32 %v4692, 0.044715
    %v4703 = vmul.f32 %v4697, 0.044715
    %v4704 = vmul.f32 %v4702, %v4692
    %v4705 = vmul.f32 %v4703, %v4697
    %v4706 = vmul.f32 %v4704, %v4692
    %v4707 = vmul.f32 %v4705, %v4697
    %v4708 = vadd.f32 %v4692, %v4706
    %v4709 = vadd.f32 %v4697, %v4707
    %v4710 = vmul.f32 %v4708, 0.7978846
    %v4711 = vmul.f32 %v4709, 0.7978846
    %v4712 = vtanh.pop %v4710
    %v4713 = vtanh.pop %v4711
    %v4714 = vadd.f32 %v4712, 1.0
    %v4715 = vadd.f32 %v4713, 1.0
    %v4716 = vmul.f32 %v4700, %v4714
    %v4717 = vmul.f32 %v4701, %v4715
    %v4718 = vld [vmem:[%s73] sm:$0xff]
    %v4719 = vld [vmem:[%s73 + $0x8] sm:$0xff]
    %v4720 = vld [vmem:[%s73 + $0x10] sm:$0xff]
    %v4721 = vld [vmem:[%s73 + $0x18] sm:$0xff]
    %v4722 = vld [vmem:[%s73 + $0x20] sm:$0xff]
    %v4723 = vld [vmem:[%s73 + $0x28] sm:$0xff]
    %v4724 = vld [vmem:[%s73 + $0x30] sm:$0xff]
    %v4725 = vld [vmem:[%s73 + $0x38] sm:$0xff]
    %v4726 = vld [vmem:[%s75] sm:$0x1]
    %v4728 = vlaneseq
    %v4729 = vshrl.u32 %v4728, 7
    %v4730 = vsub.s32 0, %v4729
    %v4731 = vrot.slane %v4726, %v4730
    %v4734 = vsel %vm2571, %v4716, 0
    %v4737 = vsel %vm2571, %v4717, 0
    %4739 = vmatprep.subr.mxu0 0.0
    %4740 = vmatpush1.msra.mxu0 %v4718
    %4741 = vmatprep.subr.mxu0 0.0
    %4742 = vmatpush1.msra.mxu0 %v4719
    %4743 = vmatprep.subr.mxu0 0.0
    %4744 = vmatpush1.msra.mxu0 %v4720
    %4745 = vmatprep.subr.mxu0 0.0
    %4746 = vmatpush1.msra.mxu0 %v4721
    %4747 = vmatprep.subr.mxu0 0.0
    %4748 = vmatpush1.msra.mxu0 %v4722
    %4749 = vmatprep.subr.mxu0 0.0
    %4750 = vmatpush1.msra.mxu0 %v4723
    %4751 = vmatprep.subr.mxu0 0.0
    %4752 = vmatpush1.msra.mxu0 %v4724
    %4753 = vmatprep.subr.mxu0 0.0
    %4754 = vmatpush1.msra.mxu0 %v4725
    %4755 = vmatprep.subr.mxu0 0.0
    %4756 = vmatpush1.msra.mxu0 0.0
    %4757 = vmatprep.subr.mxu0 0.0
    %4758 = vmatpush1.msra.mxu0 0.0
    %4759 = vmatprep.subr.mxu0 0.0
    %4760 = vmatpush1.msra.mxu0 0.0
    %4761 = vmatprep.subr.mxu0 0.0
    %4762 = vmatpush1.msra.mxu0 0.0
    %4763 = vmatprep.subr.mxu0 0.0
    %4764 = vmatpush1.msra.mxu0 0.0
    %4765 = vmatprep.subr.mxu0 0.0
    %4766 = vmatpush1.msra.mxu0 0.0
    %4767 = vmatprep.subr.mxu0 0.0
    %4768 = vmatpush1.msra.mxu0 0.0
    %4769 = vmatprep.subr.mxu0 0.0
    %4770 = vmatpush1.msra.mxu0 0.0
    %4771 = vmatprep.subr.mxu0 0.0
    %4772 = vmatpush1.msra.mxu0 0.0
    %4773 = vmatprep.subr.mxu0 0.0
    %4774 = vmatpush1.msra.mxu0 0.0
    %4775 = vmatprep.subr.mxu0 0.0
    %4776 = vmatpush1.msra.mxu0 0.0
    %4777 = vmatprep.subr.mxu0 0.0
    %4778 = vmatpush1.msra.mxu0 0.0
    %4779 = vmatprep.subr.mxu0 0.0
    %4780 = vmatpush1.msra.mxu0 0.0
    %4781 = vmatprep.subr.mxu0 0.0
    %4782 = vmatpush1.msra.mxu0 0.0
    %4783 = vmatprep.subr.mxu0 0.0
    %4784 = vmatpush1.msra.mxu0 0.0
    %4785 = vmatprep.subr.mxu0 0.0
    %4786 = vmatpush1.msra.mxu0 0.0
    %4787 = vmatprep.subr.mxu0 0.0
    %4788 = vmatpush1.msra.mxu0 0.0
    %4789 = vmatprep.subr.mxu0 0.0
    %4790 = vmatpush1.msra.mxu0 0.0
    %4791 = vmatprep.subr.mxu0 0.0
    %4792 = vmatpush1.msra.mxu0 0.0
    %4793 = vmatprep.subr.mxu0 0.0
    %4794 = vmatpush1.msra.mxu0 0.0
    %4795 = vmatprep.subr.mxu0 0.0
    %4796 = vmatpush1.msra.mxu0 0.0
    %4797 = vmatprep.subr.mxu0 0.0
    %4798 = vmatpush1.msra.mxu0 0.0
    %4799 = vmatprep.subr.mxu0 0.0
    %4800 = vmatpush1.msra.mxu0 0.0
    %4801 = vmatprep.subr.mxu0 0.0
    %4802 = vmatpush1.msra.mxu0 0.0
    %4803 = vmatprep.mubr.f32.mxu0 0.0
    %4804 = vmatmul.mubr.f32.gmra.mrb[0].mxu0 %v4734
    %v4805 = vpop.f32.mrb[0].mxu0
    %v4806 = vadd.f32 %v4731, %v4805
    %v4807 = vpop.f32.mrb[0].mxu0
    %4808 = vmatprep.mubr.f32.mxu0 0.0
    %4809 = vmatmul.mubr.f32.gmra.mrb[0].mxu0 %v4737
    %v4810 = vpop.f32.mrb[0].mxu0
    %v4811 = vadd.f32 %v4731, %v4810
    %v4812 = vpop.f32.mrb[0].mxu0
    %4813 = vdwg.mxu0
    %v4814 = vadd.f32 %v4606, %v4806
    %v4815 = vadd.f32 %v4607, %v4811
    %v4816 = vld [vmem:[%s77] sm:$0x1]
    %v4817 = vld [vmem:[%s79] sm:$0x1]
    %v4818 = vsel %vm492, %v4814, 0.0
    %4819 = vadd.xlane.f32.xlu0 %v4818
    %v4820 = vpop.xlane.xlu0 %4819
    %v4821 = vsel %vm492, %v4815, 0.0
    %4822 = vadd.xlane.f32.xlu0 %v4821
    %v4823 = vpop.xlane.xlu0 %4822
    %v4824 = vmul.f32 %v4820, %v499
    %v4825 = vmul.f32 %v4823, %v499
    %v4826 = vsub.f32 %v4814, %v4824
    %v4827 = vsub.f32 %v4815, %v4825
    %v4828 = vmul.f32 %v4826, %v4826
    %v4829 = vmul.f32 %v4827, %v4827
    %v4830 = vsel %vm492, %v4828, 0.0
    %4831 = vadd.xlane.f32.xlu0 %v4830
    %v4832 = vpop.xlane.xlu0 %4831
    %v4833 = vsel %vm492, %v4829, 0.0
    %4834 = vadd.xlane.f32.xlu0 %v4833
    %v4835 = vpop.xlane.xlu0 %4834
    %v4836 = vmul.f32 %v4832, %v499
    %v4837 = vmul.f32 %v4835, %v499
    %v4838 = vadd.f32 %v4836, 1e-12
    %v4839 = vadd.f32 %v4837, 1e-12
    %v4840 = vrsqrt.pop %v4838
    %v4841 = vrsqrt.pop %v4839
    %v4842 = vmul.f32 %v4826, %v4840
    %v4843 = vmul.f32 %v4827, %v4841
    %v4845 = vlaneseq
    %v4846 = vshrl.u32 %v4845, 7
    %v4847 = vsub.s32 0, %v4846
    %v4848 = vrot.slane %v4816, %v4847
    %v4850 = vmul.f32 %v4842, %v4848
    %v4851 = vmul.f32 %v4843, %v4848
    %v4853 = vlaneseq
    %v4854 = vshrl.u32 %v4853, 7
    %v4855 = vsub.s32 0, %v4854
    %v4856 = vrot.slane %v4817, %v4855
    %v4858 = vadd.f32 %v4850, %v4856
    %v4859 = vadd.f32 %v4851, %v4856
    %v4860 = vlaneseq
    %v4861 = vshrl.u32 %v4860, 7
    %v4862 = vmul.u32 %v4861, 8
    %vm4863 = vcmp.eq.s32.totalorder %v184, %v4862
    %v4864 = vsel %vm4863, 1, 0
    %v4865 = vcvt.s32.f32 %v4864
    %v4867 = vsel %vm219, %v4865, 0
    %4869 = vmatprep.subr.mxu0 0.0
    %4870 = vmatpush1.msra.mxu0 %v4858
    %4871 = vmatprep.subr.mxu0 0.0
    %4872 = vmatpush1.msra.mxu0 %v4859
    %4873 = vmatprep.subr.mxu0 0.0
    %4874 = vmatpush1.msra.mxu0 0.0
    %4875 = vmatprep.subr.mxu0 0.0
    %4876 = vmatpush1.msra.mxu0 0.0
    %4877 = vmatprep.subr.mxu0 0.0
    %4878 = vmatpush1.msra.mxu0 0.0
    %4879 = vmatprep.subr.mxu0 0.0
    %4880 = vmatpush1.msra.mxu0 0.0
    %4881 = vmatprep.subr.mxu0 0.0
    %4882 = vmatpush1.msra.mxu0 0.0
    %4883 = vmatprep.subr.mxu0 0.0
    %4884 = vmatpush1.msra.mxu0 0.0
    %4885 = vmatprep.subr.mxu0 0.0
    %4886 = vmatpush1.msra.mxu0 0.0
    %4887 = vmatprep.subr.mxu0 0.0
    %4888 = vmatpush1.msra.mxu0 0.0
    %4889 = vmatprep.subr.mxu0 0.0
    %4890 = vmatpush1.msra.mxu0 0.0
    %4891 = vmatprep.subr.mxu0 0.0
    %4892 = vmatpush1.msra.mxu0 0.0
    %4893 = vmatprep.subr.mxu0 0.0
    %4894 = vmatpush1.msra.mxu0 0.0
    %4895 = vmatprep.subr.mxu0 0.0
    %4896 = vmatpush1.msra.mxu0 0.0
    %4897 = vmatprep.subr.mxu0 0.0
    %4898 = vmatpush1.msra.mxu0 0.0
    %4899 = vmatprep.subr.mxu0 0.0
    %4900 = vmatpush1.msra.mxu0 0.0
    %4901 = vmatprep.subr.mxu0 0.0
    %4902 = vmatpush1.msra.mxu0 0.0
    %4903 = vmatprep.subr.mxu0 0.0
    %4904 = vmatpush1.msra.mxu0 0.0
    %4905 = vmatprep.subr.mxu0 0.0
    %4906 = vmatpush1.msra.mxu0 0.0
    %4907 = vmatprep.subr.mxu0 0.0
    %4908 = vmatpush1.msra.mxu0 0.0
    %4909 = vmatprep.subr.mxu0 0.0
    %4910 = vmatpush1.msra.mxu0 0.0
    %4911 = vmatprep.subr.mxu0 0.0
    %4912 = vmatpush1.msra.mxu0 0.0
    %4913 = vmatprep.subr.mxu0 0.0
    %4914 = vmatpush1.msra.mxu0 0.0
    %4915 = vmatprep.subr.mxu0 0.0
    %4916 = vmatpush1.msra.mxu0 0.0
    %4917 = vmatprep.subr.mxu0 0.0
    %4918 = vmatpush1.msra.mxu0 0.0
    %4919 = vmatprep.subr.mxu0 0.0
    %4920 = vmatpush1.msra.mxu0 0.0
    %4921 = vmatprep.subr.mxu0 0.0
    %4922 = vmatpush1.msra.mxu0 0.0
    %4923 = vmatprep.subr.mxu0 0.0
    %4924 = vmatpush1.msra.mxu0 0.0
    %4925 = vmatprep.subr.mxu0 0.0
    %4926 = vmatpush1.msra.mxu0 0.0
    %4927 = vmatprep.subr.mxu0 0.0
    %4928 = vmatpush1.msra.mxu0 0.0
    %4929 = vmatprep.subr.mxu0 0.0
    %4930 = vmatpush1.msra.mxu0 0.0
    %4931 = vmatprep.subr.mxu0 0.0
    %4932 = vmatpush1.msra.mxu0 0.0
    %4933 = vmatprep.mubr.f32.mxu0 0.0
    %4934 = vmatmul.mubr.f32.gmra.mrb[0].mxu0 %v4867
    %v4935 = vpop.f32.mrb[0].mxu0
    %v4936 = vadd.f32 0.0, %v4935
    %v4937 = vpop.f32.mrb[0].mxu0
    %4938 = vdwg.mxu0
    %v4939 = vld [vmem:[%s81] sm:$0xff]
    %v4940 = vld [vmem:[%s81 + $0x8] sm:$0xff]
    %v4941 = vld [vmem:[%s81 + $0x10] sm:$0xff]
    %v4942 = vld [vmem:[%s81 + $0x18] sm:$0xff]
    %v4943 = vld [vmem:[%s83] sm:$0x1]
    %v4945 = vlaneseq
    %v4946 = vshrl.u32 %v4945, 7
    %v4947 = vsub.s32 0, %v4946
    %v4948 = vrot.slane %v4943, %v4947
    %v4951 = vsel %vm492, %v4936, 0
    %4953 = vmatprep.subr.mxu0 0.0
    %4954 = vmatpush1.msra.mxu0 %v4939
    %4955 = vmatprep.subr.mxu0 0.0
    %4956 = vmatpush1.msra.mxu0 %v4940
    %4957 = vmatprep.subr.mxu0 0.0
    %4958 = vmatpush1.msra.mxu0 %v4941
    %4959 = vmatprep.subr.mxu0 0.0
    %4960 = vmatpush1.msra.mxu0 %v4942
    %4961 = vmatprep.subr.mxu0 0.0
    %4962 = vmatpush1.msra.mxu0 0.0
    %4963 = vmatprep.subr.mxu0 0.0
    %4964 = vmatpush1.msra.mxu0 0.0
    %4965 = vmatprep.subr.mxu0 0.0
    %4966 = vmatpush1.msra.mxu0 0.0
    %4967 = vmatprep.subr.mxu0 0.0
    %4968 = vmatpush1.msra.mxu0 0.0
    %4969 = vmatprep.subr.mxu0 0.0
    %4970 = vmatpush1.msra.mxu0 0.0
    %4971 = vmatprep.subr.mxu0 0.0
    %4972 = vmatpush1.msra.mxu0 0.0
    %4973 = vmatprep.subr.mxu0 0.0
    %4974 = vmatpush1.msra.mxu0 0.0
    %4975 = vmatprep.subr.mxu0 0.0
    %4976 = vmatpush1.msra.mxu0 0.0
    %4977 = vmatprep.subr.mxu0 0.0
    %4978 = vmatpush1.msra.mxu0 0.0
    %4979 = vmatprep.subr.mxu0 0.0
    %4980 = vmatpush1.msra.mxu0 0.0
    %4981 = vmatprep.subr.mxu0 0.0
    %4982 = vmatpush1.msra.mxu0 0.0
    %4983 = vmatprep.subr.mxu0 0.0
    %4984 = vmatpush1.msra.mxu0 0.0
    %4985 = vmatprep.subr.mxu0 0.0
    %4986 = vmatpush1.msra.mxu0 0.0
    %4987 = vmatprep.subr.mxu0 0.0
    %4988 = vmatpush1.msra.mxu0 0.0
    %4989 = vmatprep.subr.mxu0 0.0
    %4990 = vmatpush1.msra.mxu0 0.0
    %4991 = vmatprep.subr.mxu0 0.0
    %4992 = vmatpush1.msra.mxu0 0.0
    %4993 = vmatprep.subr.mxu0 0.0
    %4994 = vmatpush1.msra.mxu0 0.0
    %4995 = vmatprep.subr.mxu0 0.0
    %4996 = vmatpush1.msra.mxu0 0.0
    %4997 = vmatprep.subr.mxu0 0.0
    %4998 = vmatpush1.msra.mxu0 0.0
    %4999 = vmatprep.subr.mxu0 0.0
    %5000 = vmatpush1.msra.mxu0 0.0
    %5001 = vmatprep.subr.mxu0 0.0
    %5002 = vmatpush1.msra.mxu0 0.0
    %5003 = vmatprep.subr.mxu0 0.0
    %5004 = vmatpush1.msra.mxu0 0.0
    %5005 = vmatprep.subr.mxu0 0.0
    %5006 = vmatpush1.msra.mxu0 0.0
    %5007 = vmatprep.subr.mxu0 0.0
    %5008 = vmatpush1.msra.mxu0 0.0
    %5009 = vmatprep.subr.mxu0 0.0
    %5010 = vmatpush1.msra.mxu0 0.0
    %5011 = vmatprep.subr.mxu0 0.0
    %5012 = vmatpush1.msra.mxu0 0.0
    %5013 = vmatprep.subr.mxu0 0.0
    %5014 = vmatpush1.msra.mxu0 0.0
    %5015 = vmatprep.subr.mxu0 0.0
    %5016 = vmatpush1.msra.mxu0 0.0
    %5017 = vmatprep.mubr.f32.mxu0 0.0
    %5018 = vmatmul.mubr.f32.gmra.mrb[0].mxu0 %v4951
    %v5019 = vpop.f32.mrb[0].mxu0
    %v5020 = vadd.f32 %v4948, %v5019
    %v5021 = vpop.f32.mrb[0].mxu0
    %5022 = vdwg.mxu0
    %v5023 = vtanh.pop %v5020
    %v5024 = vld [vmem:[%s85] sm:$0xff]
    %v5025 = vld [vmem:[%s85 + $0x8] sm:$0xff]
    %v5026 = vld [vmem:[%s85 + $0x10] sm:$0xff]
    %v5027 = vld [vmem:[%s85 + $0x18] sm:$0xff]
    %v5028 = vld [vmem:[%s87] sm:$0x1]
    %v5030 = vlaneseq
    %v5031 = vshrl.u32 %v5030, 7
    %v5032 = vsub.s32 0, %v5031
    %v5033 = vrot.slane %v5028, %v5032
    %v5036 = vsel %vm492, %v5023, 0
    %5038 = vmatprep.subr.mxu0 0.0
    %5039 = vmatpush1.msra.mxu0 %v5024
    %5040 = vmatprep.subr.mxu0 0.0
    %5041 = vmatpush1.msra.mxu0 %v5025
    %5042 = vmatprep.subr.mxu0 0.0
    %5043 = vmatpush1.msra.mxu0 %v5026
    %5044 = vmatprep.subr.mxu0 0.0
    %5045 = vmatpush1.msra.mxu0 %v5027
    %5046 = vmatprep.subr.mxu0 0.0
    %5047 = vmatpush1.msra.mxu0 0.0
    %5048 = vmatprep.subr.mxu0 0.0
    %5049 = vmatpush1.msra.mxu0 0.0
    %5050 = vmatprep.subr.mxu0 0.0
    %5051 = vmatpush1.msra.mxu0 0.0
    %5052 = vmatprep.subr.mxu0 0.0
    %5053 = vmatpush1.msra.mxu0 0.0
    %5054 = vmatprep.subr.mxu0 0.0
    %5055 = vmatpush1.msra.mxu0 0.0
    %5056 = vmatprep.subr.mxu0 0.0
    %5057 = vmatpush1.msra.mxu0 0.0
    %5058 = vmatprep.subr.mxu0 0.0
    %5059 = vmatpush1.msra.mxu0 0.0
    %5060 = vmatprep.subr.mxu0 0.0
    %5061 = vmatpush1.msra.mxu0 0.0
    %5062 = vmatprep.subr.mxu0 0.0
    %5063 = vmatpush1.msra.mxu0 0.0
    %5064 = vmatprep.subr.mxu0 0.0
    %5065 = vmatpush1.msra.mxu0 0.0
    %5066 = vmatprep.subr.mxu0 0.0
    %5067 = vmatpush1.msra.mxu0 0.0
    %5068 = vmatprep.subr.mxu0 0.0
    %5069 = vmatpush1.msra.mxu0 0.0
    %5070 = vmatprep.subr.mxu0 0.0
    %5071 = vmatpush1.msra.mxu0 0.0
    %5072 = vmatprep.subr.mxu0 0.0
    %5073 = vmatpush1.msra.mxu0 0.0
    %5074 = vmatprep.subr.mxu0 0.0
    %5075 = vmatpush1.msra.mxu0 0.0
    %5076 = vmatprep.subr.mxu0 0.0
    %5077 = vmatpush1.msra.mxu0 0.0
    %5078 = vmatprep.subr.mxu0 0.0
    %5079 = vmatpush1.msra.mxu0 0.0
    %5080 = vmatprep.subr.mxu0 0.0
    %5081 = vmatpush1.msra.mxu0 0.0
    %5082 = vmatprep.subr.mxu0 0.0
    %5083 = vmatpush1.msra.mxu0 0.0
    %5084 = vmatprep.subr.mxu0 0.0
    %5085 = vmatpush1.msra.mxu0 0.0
    %5086 = vmatprep.subr.mxu0 0.0
    %5087 = vmatpush1.msra.mxu0 0.0
    %5088 = vmatprep.subr.mxu0 0.0
    %5089 = vmatpush1.msra.mxu0 0.0
    %5090 = vmatprep.subr.mxu0 0.0
    %5091 = vmatpush1.msra.mxu0 0.0
    %5092 = vmatprep.subr.mxu0 0.0
    %5093 = vmatpush1.msra.mxu0 0.0
    %5094 = vmatprep.subr.mxu0 0.0
    %5095 = vmatpush1.msra.mxu0 0.0
    %5096 = vmatprep.subr.mxu0 0.0
    %5097 = vmatpush1.msra.mxu0 0.0
    %5098 = vmatprep.subr.mxu0 0.0
    %5099 = vmatpush1.msra.mxu0 0.0
    %5100 = vmatprep.subr.mxu0 0.0
    %5101 = vmatpush1.msra.mxu0 0.0
    %5102 = vmatprep.mubr.f32.mxu0 0.0
    %5103 = vmatmul.mubr.f32.gmra.mrb[0].mxu0 %v5036
    %v5104 = vpop.f32.mrb[0].mxu0
    %v5105 = vadd.f32 %v5033, %v5104
    %v5106 = vpop.f32.mrb[0].mxu0
    %5107 = vdwg.mxu0
    %vm5108 = vcmask 17408
    %5109 = vst.msk [vmem:[#allocation2] sm:$0x3] %vm5108, %v5105
    // Predicated region
    $region178: #{_lambda_.1} parent=1 // pred_check
      _
    $region179: #{_lambda_.1} parent=1 // pred_check_branch
      %5111 = sbr.rel (0) target = $region181
    $region180: #{_lambda_.1} parent=1 // pred_region
      %s5113 = ssub.s32 32, 32
      %5114 = vsyncadd [#allocation3], %s5113
      %s5116 = sshll.u32 [#allocation2], 4
      %s5117 = int_to_ptr.vmem [resolvable:$true] %s5116
      %5119 = dma.vmem_to_hbm [thread:$0]  %s5117, 32, %s89, [#allocation3]
    $region181: #{_lambda_.1} parent=1 // pred_fallthru
      _
    // Predicated region
    $region182: #{_lambda_.1} parent=1 // pred_check
      _
    $region183: #{_lambda_.1} parent=1 // pred_check_branch
      %5121 = sbr.rel (0) target = $region185
    $region184: #{_lambda_.1} parent=1 // pred_region
      %5122 = dma.done [#allocation3], 32
    $region185: #{_lambda_.1} parent=1 // pred_fallthru
      _
    %5123 = vsyncpa [#allocation3], 1

</llo_original>
